<compile_context>
chip_gen: v5e
topology: v5e:2x2
jax: 0.10.0
libtpu: 0.0.40
codegen_flags: <defaults>
</compile_context>

<pallas_src>
import functools
import math

import jax
import jax.numpy as jnp
from jax import lax
from jax.experimental import pallas as pl
from jax.experimental.pallas import tpu as pltpu

LN_EPS = 1e-12      # TODO(synk): LayerNorm eps is config-dependent in the repo.
BIG_NEG = 1e30


# ----------------------------------------------------------------------------
# helpers
# ----------------------------------------------------------------------------
def _tile(dim, target, align):
    """Largest tile <= target that divides dim and is `align`-aligned.
    Falls back to the full dimension (always legal for BlockSpec)."""
    if dim <= target:
        return dim
    t = (target // align) * align
    while t >= align:
        if dim % t == 0:
            return t
        t -= align
    return dim


def _heads_per_step(n_head, d_head):
    """Smallest head-group size whose lane width (group*d_head) is a multiple
    of 128; falls back to all heads (full-dim block is always legal)."""
    for h in range(1, n_head + 1):
        if n_head % h == 0 and (h * d_head) % 128 == 0:
            return h
    return n_head


def _vmem_limit(block_bytes):
    """Scoped-VMEM request: 2x blocks (double buffering) + headroom, clamped so
    it is safe on every generation (v7x physical VMEM is 64 MiB)."""
    return int(min(max(2 * block_bytes + (8 << 20), 32 << 20), 64 << 20))


# ----------------------------------------------------------------------------
# Pallas kernels: tiled dense matmuls with fused epilogues
# ----------------------------------------------------------------------------
def _mm_epilogue_kernel(*refs, activation, has_bias):
    """Tiled matmul with f32 accumulator; optional bias + GELU epilogue."""
    if has_bias:
        a_ref, w_ref, b_ref, o_ref, acc_ref = refs
    else:
        a_ref, w_ref, o_ref, acc_ref = refs
        b_ref = None

    @pl.when(pl.program_id(2) == 0)
    def _():
        acc_ref[...] = jnp.zeros_like(acc_ref)

    acc_ref[...] += jnp.dot(a_ref[...], w_ref[...],
                            preferred_element_type=jnp.float32)

    @pl.when(pl.program_id(2) == pl.num_programs(2) - 1)
    def _():
        acc = acc_ref[...]
        if b_ref is not None:
            acc = acc + b_ref[...]
        if activation == "gelu":
            acc = jax.nn.gelu(acc)   # tanh-approx GELU (EUP friendly)
        o_ref[...] = acc.astype(o_ref.dtype)


def dense_act(a, w, b=None, activation=None, out_dtype=jnp.float32,
              tm=256, tn=512, tk=512):
    """out = act(a @ w [+ b]); bf16 MXU matmul, f32 accumulation."""
    M, K = a.shape
    N = w.shape[1]
    btm, btn, btk = _tile(M, tm, 16), _tile(N, tn, 128), _tile(K, tk, 128)
    grid = (M // btm, N // btn, K // btk)
    in_specs = [pl.BlockSpec((btm, btk), lambda i, j, k: (i, k)),
                pl.BlockSpec((btk, btn), lambda i, j, k: (k, j))]
    args = [a.astype(jnp.bfloat16), w.astype(jnp.bfloat16)]
    if b is not None:
        in_specs.append(pl.BlockSpec((1, btn), lambda i, j, k: (0, j)))
        args.append(b.reshape(1, N).astype(jnp.float32))
    return pl.pallas_call(
        functools.partial(_mm_epilogue_kernel, activation=activation,
                          has_bias=b is not None),
        grid=grid,
        in_specs=in_specs,
        out_specs=pl.BlockSpec((btm, btn), lambda i, j, k: (i, j)),
        out_shape=jax.ShapeDtypeStruct((M, N), out_dtype),
        scratch_shapes=[pltpu.VMEM((btm, btn), jnp.float32)],
        compiler_params=pltpu.CompilerParams(
            dimension_semantics=("parallel", "parallel", "arbitrary")),
    )(*args)


def _mm_res_ln_kernel(*refs, eps, has_bias):
    """Tiled matmul; epilogue = [bias +] residual add + LayerNorm (full row)."""
    if has_bias:
        a_ref, w_ref, b_ref, r_ref, g_ref, beta_ref, o_ref, acc_ref = refs
    else:
        a_ref, w_ref, r_ref, g_ref, beta_ref, o_ref, acc_ref = refs
        b_ref = None

    @pl.when(pl.program_id(1) == 0)
    def _():
        acc_ref[...] = jnp.zeros_like(acc_ref)

    acc_ref[...] += jnp.dot(a_ref[...], w_ref[...],
                            preferred_element_type=jnp.float32)

    @pl.when(pl.program_id(1) == pl.num_programs(1) - 1)
    def _():
        x = acc_ref[...] + r_ref[...].astype(jnp.float32)
        if b_ref is not None:
            x = x + b_ref[...]
        mu = jnp.mean(x, axis=-1, keepdims=True)
        var = jnp.mean(jnp.square(x - mu), axis=-1, keepdims=True)
        xn = (x - mu) * lax.rsqrt(var + eps)
        o_ref[...] = (xn * g_ref[...] + beta_ref[...]).astype(o_ref.dtype)


def dense_res_ln(a, w, b, res, gamma, beta, eps=LN_EPS,
                 out_dtype=jnp.float32, tm=256, tk=512):
    """LayerNorm(a @ w [+ b] + res); matmul in bf16, LN math in f32."""
    M, K = a.shape
    N = w.shape[1]
    btm, btk = _tile(M, tm, 16), _tile(K, tk, 128)
    grid = (M // btm, K // btk)
    in_specs = [pl.BlockSpec((btm, btk), lambda i, k: (i, k)),
                pl.BlockSpec((btk, N), lambda i, k: (k, 0))]
    args = [a.astype(jnp.bfloat16), w.astype(jnp.bfloat16)]
    if b is not None:
        in_specs.append(pl.BlockSpec((1, N), lambda i, k: (0, 0)))
        args.append(b.reshape(1, N).astype(jnp.float32))
    in_specs += [pl.BlockSpec((btm, N), lambda i, k: (i, 0)),
                 pl.BlockSpec((1, N), lambda i, k: (0, 0)),
                 pl.BlockSpec((1, N), lambda i, k: (0, 0))]
    args += [res, gamma.reshape(1, N).astype(jnp.float32),
             beta.reshape(1, N).astype(jnp.float32)]
    return pl.pallas_call(
        functools.partial(_mm_res_ln_kernel, eps=eps, has_bias=b is not None),
        grid=grid,
        in_specs=in_specs,
        out_specs=pl.BlockSpec((btm, N), lambda i, k: (i, 0)),
        out_shape=jax.ShapeDtypeStruct((M, N), out_dtype),
        scratch_shapes=[pltpu.VMEM((btm, N), jnp.float32)],
        compiler_params=pltpu.CompilerParams(
            dimension_semantics=("parallel", "arbitrary")),
    )(*args)


# ----------------------------------------------------------------------------
# Pallas kernels: relative-position scores + attention core
# ----------------------------------------------------------------------------
def _bd_kernel(q_ref, rrb_ref, kr_ref, o_ref, *, hps, d_head):
    """Raw relative-position scores (q + r_r_bias) . k_r^T for one head group."""
    q_rr = (q_ref[0].astype(jnp.float32) + rrb_ref[...]).astype(jnp.bfloat16)
    for t in range(hps):
        sl = slice(t * d_head, (t + 1) * d_head)
        o_ref[0, t] = lax.dot_general(
            q_rr[:, sl], kr_ref[:, sl], (((1,), (1,)), ((), ())),
            preferred_element_type=jnp.float32).astype(o_ref.dtype)


def rel_pos_scores(q_head, rrb, k_r, n_head, d_head, hps):
    """q_head: [B, Q, N*D] bf16 (pre-scaled); k_r: [R, N*D] bf16
    -> raw scores [B, N, Q, R] (bf16)."""
    B, Qr, ND = q_head.shape
    R = k_r.shape[0]
    hd = hps * d_head
    blk = Qr * hd * 2 + hd * 4 + R * ND * 2 + hps * Qr * R * 2
    return pl.pallas_call(
        functools.partial(_bd_kernel, hps=hps, d_head=d_head),
        grid=(B, n_head // hps),
        in_specs=[
            pl.BlockSpec((1, Qr, hd), lambda b, p: (b, 0, p)),
            pl.BlockSpec((1, hd), lambda b, p: (0, p)),
            pl.BlockSpec((R, hd), lambda b, p: (0, p)),
        ],
        out_specs=pl.BlockSpec((1, hps, Qr, R), lambda b, p: (b, p, 0, 0)),
        out_shape=jax.ShapeDtypeStruct((B, n_head, Qr, R), jnp.bfloat16),
        compiler_params=pltpu.CompilerParams(
            dimension_semantics=("parallel", "parallel"),
            vmem_limit_bytes=_vmem_limit(blk)),
    )(q_head, rrb, k_r)


def rel_shift_bnij(x, klen):
    """Exact Transformer-XL/XLNet relative shift on [B, N, Q, R] scores."""
    # TODO(synk): fuse this shift (and the BD matmul) into the attention kernel
    # with a strided pltpu.roll so the [B, N, Q, R] tensor never hits HBM.
    b, n, q, r = x.shape
    x = x.reshape(b, n, r, q)
    x = x[:, :, 1:, :]
    x = x.reshape(b, n, q, r - 1)
    return x[:, :, :, :klen]


def _attn_core_kernel(q_ref, k_ref, v_ref, bd_ref, mb_ref, sm_ref,
                      rwb_ref, segw_ref, rsb_ref, o_ref, *, hps, d_head):
    """One (batch, head-group) step; lane-dense [Q, hps*d_head] output store."""
    # hoisted over the head group: (q + r_w_bias), segment scores, mask/seg planes
    qw = (q_ref[0].astype(jnp.float32) + rwb_ref[...]).astype(jnp.bfloat16)
    # segment scores for all heads of the group in ONE small MXU matmul against
    # a block-diagonal seg table; r_s_bias term folded into rsb_ref upstream.
    ef01 = jnp.dot(q_ref[0], segw_ref[0],
                   preferred_element_type=jnp.float32) + rsb_ref[0]  # [Q, 2*hps]
    mb = mb_ref[0].astype(jnp.float32)          # -1e30 * mask, precomputed
    sm = sm_ref[0].astype(jnp.float32)          # seg_mat[..., 0] (one-hot plane)

    outs = []
    for t in range(hps):
        sl = slice(t * d_head, (t + 1) * d_head)
        ac = lax.dot_general(qw[:, sl], k_ref[0, :, sl],
                             (((1,), (1,)), ((), ())),
                             preferred_element_type=jnp.float32)      # [Q, K]
        ef0 = ef01[:, 2 * t:2 * t + 1]
        ef1 = ef01[:, 2 * t + 1:2 * t + 2]
        # seg_mat is one-hot: sm0*ef0 + sm1*ef1 == ef1 + sm0*(ef0 - ef1)
        score = ac + bd_ref[0, t].astype(jnp.float32) + mb + ef1 + sm * (ef0 - ef1)
        score = score - jnp.max(score, axis=-1, keepdims=True)
        p = jnp.exp(score)
        p = p * pl.reciprocal(jnp.sum(p, axis=-1, keepdims=True), approx=True)
        outs.append(lax.dot_general(
            p.astype(jnp.bfloat16), v_ref[0, :, sl], (((1,), (0,)), ((), ())),
            preferred_element_type=jnp.float32).astype(o_ref.dtype))
    o_ref[0] = outs[0] if hps == 1 else jnp.concatenate(outs, axis=-1)


def attn_core(q_head, k_h, v_h, bd, rwb, segw, rsb_seg, sm0, mask_bias,
              n_head, d_head, hps):
    B, Qr, ND = q_head.shape
    K = k_h.shape[1]
    hd = hps * d_head
    # TODO(synk): add an inner K (klen) grid axis with online softmax so k/v
    # VMEM is bounded independently of mem length.
    blk = (Qr * hd * 2 + 2 * K * hd * 2 + hps * Qr * K * 2 + 2 * Qr * K * 2
           + hd * 4 + hd * 2 * hps * 2 + 2 * hps * 4 + Qr * hd * 2
           + 4 * Qr * K * 4)  # headroom for f32 score intermediates
    return pl.pallas_call(
        functools.partial(_attn_core_kernel, hps=hps, d_head=d_head),
        grid=(B, n_head // hps),
        in_specs=[
            pl.BlockSpec((1, Qr, hd), lambda b, p: (b, 0, p)),          # q
            pl.BlockSpec((1, K, hd), lambda b, p: (b, 0, p)),           # k
            pl.BlockSpec((1, K, hd), lambda b, p: (b, 0, p)),           # v
            pl.BlockSpec((1, hps, Qr, K), lambda b, p: (b, p, 0, 0)),   # bd
            pl.BlockSpec((1, Qr, K), lambda b, p: (b, 0, 0)),           # mask bias
            pl.BlockSpec((1, Qr, K), lambda b, p: (b, 0, 0)),           # seg plane 0
            pl.BlockSpec((1, hd), lambda b, p: (0, p)),                 # r_w_bias
            pl.BlockSpec((1, hd, 2 * hps), lambda b, p: (p, 0, 0)),     # seg table
            pl.BlockSpec((1, 1, 2 * hps), lambda b, p: (p, 0, 0)),      # rsb.seg
        ],
        out_specs=pl.BlockSpec((1, Qr, hd), lambda b, p: (b, 0, p)),
        out_shape=jax.ShapeDtypeStruct((B, Qr, ND), jnp.bfloat16),
        compiler_params=pltpu.CompilerParams(
            dimension_semantics=("parallel", "parallel"),
            vmem_limit_bytes=_vmem_limit(blk)),
    )(q_head, k_h, v_h, bd, mask_bias, sm0, rwb, segw, rsb_seg)


# ----------------------------------------------------------------------------
# Model glue (batch-major, head-flattened layouts)
# ----------------------------------------------------------------------------
def _mask_bias(m, B, Qr, K):
    if m is None:
        return jnp.zeros((B, Qr, K), jnp.bfloat16)
    return (jnp.transpose(m[..., 0], (2, 0, 1)) * (-BIG_NEG)).astype(jnp.bfloat16)


def _build_seg_tables(seg_embed, rsb_scaled, hps):
    """Block-diagonal seg table [N/hps, hps*D, 2*hps] (bf16) and the folded
    r_s_bias . seg_embed constants [N/hps, 1, 2*hps] (f32)."""
    _, N, D = seg_embed.shape
    se_t = jnp.transpose(seg_embed.astype(jnp.float32), (1, 2, 0))  # [N, D, 2]
    se_p = se_t.reshape(N // hps, hps, D, 2)
    row_blocks = []
    for u in range(hps):
        cols = []
        for t in range(hps):
            cols.append(se_p[:, u] if t == u else jnp.zeros_like(se_p[:, u]))
        row_blocks.append(jnp.concatenate(cols, axis=-1))            # [N/hps, D, 2*hps]
    segw = jnp.concatenate(row_blocks, axis=1)                       # [N/hps, hps*D, 2*hps]
    rsb = jnp.einsum("nd,snd->ns", rsb_scaled,
                     seg_embed.astype(jnp.float32))                  # [N, 2]
    rsb_seg = rsb.reshape(N // hps, 1, 2 * hps)
    return segw.astype(jnp.bfloat16), rsb_seg.astype(jnp.float32)


def _batch_major_cat(h_bm, mem):
    if mem is not None and mem.shape[0] > 0:
        return jnp.concatenate(
            [jnp.transpose(mem, (1, 0, 2)).astype(jnp.float32), h_bm], axis=1)
    return h_bm


def rel_attn_core(prep, q_head, k_h, v_h, k_r, segw, rsb_seg, sm0, mask_bias,
                  n_head, d_head, hps):
    """q_head: [B, Q, ND] bf16 (pre-scaled), k_h/v_h: [B, K, ND] bf16,
    k_r: [R, ND] bf16 -> [B, Q, ND] bf16."""
    klen = k_h.shape[1]
    bd_raw = rel_pos_scores(q_head, prep["rrb"], k_r, n_head, d_head, hps)
    bd = rel_shift_bnij(bd_raw, klen)                                 # bf16
    return attn_core(q_head, k_h, v_h, bd, prep["rwb"], segw, rsb_seg,
                     sm0, mask_bias, n_head, d_head, hps)


def two_stream_layer(prep, h, g, seg_mat, seg_embed, pos_embed, mem,
                     attn_mask, target_mapping, non_tgt_mask, n_head, d_head):
    ND = n_head * d_head
    Q, B, H = h.shape
    P = g.shape[0]
    hps = _heads_per_step(n_head, d_head)

    hb = jnp.transpose(h, (1, 0, 2)).astype(jnp.float32)      # [B, Q, H]
    gb = jnp.transpose(g, (1, 0, 2)).astype(jnp.float32)      # [B, P, H]
    catb = _batch_major_cat(hb, mem)                          # [B, K, H]
    K = catb.shape[1]
    r2 = pos_embed[:, 0, :].astype(jnp.float32)               # [R, H]

    # fused Q projection over h- and g-streams (weights pre-scaled by 1/sqrt(d))
    xq = jnp.concatenate([hb.reshape(B * Q, H), gb.reshape(B * P, H)], axis=0)
    q_all = dense_act(xq, prep["wq"], out_dtype=jnp.bfloat16)
    q_h = q_all[:B * Q].reshape(B, Q, ND)
    q_g = q_all[B * Q:].reshape(B, P, ND)

    # fused K/V projection over [mem; h]
    kv = dense_act(catb.reshape(B * K, H), prep["wkv"], out_dtype=jnp.bfloat16)
    k_h = kv[:, :ND].reshape(B, K, ND)
    v_h = kv[:, ND:].reshape(B, K, ND)

    # relative-position key projection (pos_embed batch must be 1)
    k_r = dense_act(r2, prep["wr"], out_dtype=jnp.bfloat16)           # [R, ND]

    segw, rsb_seg = _build_seg_tables(seg_embed, prep["rsb"], hps)
    sm0 = jnp.transpose(seg_mat[..., 0], (2, 0, 1)).astype(jnp.bfloat16)
    mb_h = _mask_bias(non_tgt_mask, B, Q, K)
    qr_g = Q if target_mapping is not None else P
    mb_g = _mask_bias(attn_mask, B, qr_g, K)

    # ---- content (h) stream ----
    av_h = rel_attn_core(prep, q_h, k_h, v_h, k_r, segw, rsb_seg,
                         sm0, mb_h, n_head, d_head, hps)              # [B, Q, ND]

    # ---- query (g) stream ----
    if target_mapping is not None:
        tmap = target_mapping.astype(jnp.float32)                     # [P, Q, B]
        q_g_m = jnp.einsum("bme,mlb->ble", q_g.astype(jnp.float32),
                           tmap).astype(jnp.bfloat16)
        av_g = rel_attn_core(prep, q_g_m, k_h, v_h, k_r, segw, rsb_seg,
                             sm0, mb_g, n_head, d_head, hps)          # [B, Q, ND]
        av_g = jnp.einsum("ble,mlb->bme", av_g.astype(jnp.float32),
                          tmap).astype(jnp.bfloat16)                  # [B, P, ND]
    else:
        av_g = rel_attn_core(prep, q_g, k_h, v_h, k_r, segw, rsb_seg,
                             sm0, mb_g, n_head, d_head, hps)          # [B, P, ND]

    # ---- fused o-projection + residual + LayerNorm (both streams stacked) ----
    av = jnp.concatenate([av_h.reshape(B * Q, ND), av_g.reshape(B * P, ND)],
                         axis=0)
    res = jnp.concatenate([hb.reshape(B * Q, H), gb.reshape(B * P, H)], axis=0)
    attn_out = dense_res_ln(av, prep["wo"], None, res,
                            prep["ln_attn_g"], prep["ln_attn_b"],
                            out_dtype=jnp.bfloat16)

    # ---- position-wise FFN (both streams stacked, LN fused into 2nd matmul) ----
    # TODO(synk): source repo's FFN activation not shown; assuming GELU (XLNet).
    h1 = dense_act(attn_out, prep["ff_w1"], prep["ff_b1"],
                   activation="gelu", out_dtype=jnp.bfloat16)
    out = dense_res_ln(h1, prep["ff_w2"], prep["ff_b2"], attn_out,
                       prep["ln_ff_g"], prep["ln_ff_b"], out_dtype=jnp.float32)

    out_h = jnp.transpose(out[:B * Q].reshape(B, Q, H), (1, 0, 2))
    out_g = jnp.transpose(out[B * Q:].reshape(B, P, H), (1, 0, 2))
    return out_g, out_h


def single_stream_layer(prep, h, seg_mat, seg_embed, pos_embed, mem,
                        attn_mask, n_head, d_head):
    ND = n_head * d_head
    Q, B, H = h.shape
    hps = _heads_per_step(n_head, d_head)

    hb = jnp.transpose(h, (1, 0, 2)).astype(jnp.float32)
    catb = _batch_major_cat(hb, mem)
    K = catb.shape[1]
    r2 = pos_embed[:, 0, :].astype(jnp.float32)

    q_h = dense_act(hb.reshape(B * Q, H), prep["wq"],
                    out_dtype=jnp.bfloat16).reshape(B, Q, ND)
    kv = dense_act(catb.reshape(B * K, H), prep["wkv"], out_dtype=jnp.bfloat16)
    k_h = kv[:, :ND].reshape(B, K, ND)
    v_h = kv[:, ND:].reshape(B, K, ND)
    k_r = dense_act(r2, prep["wr"], out_dtype=jnp.bfloat16)

    segw, rsb_seg = _build_seg_tables(seg_embed, prep["rsb"], hps)
    sm0 = jnp.transpose(seg_mat[..., 0], (2, 0, 1)).astype(jnp.bfloat16)
    mb = _mask_bias(attn_mask, B, Q, K)

    av = rel_attn_core(prep, q_h, k_h, v_h, k_r, segw, rsb_seg,
                       sm0, mb, n_head, d_head, hps)
    attn_out = dense_res_ln(av.reshape(B * Q, ND), prep["wo"], None,
                            hb.reshape(B * Q, H),
                            prep["ln_attn_g"], prep["ln_attn_b"],
                            out_dtype=jnp.bfloat16)
    h1 = dense_act(attn_out, prep["ff_w1"], prep["ff_b1"],
                   activation="gelu", out_dtype=jnp.bfloat16)
    out = dense_res_ln(h1, prep["ff_w2"], prep["ff_b2"], attn_out,
                       prep["ln_ff_g"], prep["ln_ff_b"], out_dtype=jnp.float32)
    return jnp.transpose(out.reshape(B, Q, H), (1, 0, 2))


def transformer_xl_layer(prep, h, g, seg_mat, seg_embed, pos_embed, mem,
                         attn_mask, target_mapping=None, non_tgt_mask=None,
                         *, n_head, d_head, with_input_query=True):
    if with_input_query:
        return two_stream_layer(prep, h, g, seg_mat, seg_embed, pos_embed,
                                mem, attn_mask, target_mapping, non_tgt_mask,
                                n_head, d_head)
    return single_stream_layer(prep, h, seg_mat, seg_embed, pos_embed, mem,
                               attn_mask, n_head, d_head)


# ----------------------------------------------------------------------------
# Deterministic parameter init + one-time parameter prep (hoisted per-call work)
# ----------------------------------------------------------------------------
def init_params(key, d_model, n_head, d_head, d_inner):
    keys = jax.random.split(key, 10)
    std = 0.02

    def nrm(k, shape):
        return std * jax.random.normal(k, shape, jnp.float32)

    return dict(
        q=nrm(keys[0], (d_model, n_head, d_head)),
        k=nrm(keys[1], (d_model, n_head, d_head)),
        v=nrm(keys[2], (d_model, n_head, d_head)),
        r=nrm(keys[3], (d_model, n_head, d_head)),
        o=nrm(keys[4], (d_model, n_head, d_head)),
        r_w_bias=nrm(keys[5], (n_head, d_head)),
        r_r_bias=nrm(keys[6], (n_head, d_head)),
        r_s_bias=nrm(keys[7], (n_head, d_head)),
        ln_attn_g=jnp.ones((d_model,), jnp.float32),
        ln_attn_b=jnp.zeros((d_model,), jnp.float32),
        ff_w1=nrm(keys[8], (d_model, d_inner)),
        ff_b1=jnp.zeros((d_inner,), jnp.float32),
        ff_w2=nrm(keys[9], (d_inner, d_model)),
        ff_b2=jnp.zeros((d_model,), jnp.float32),
        ln_ff_g=jnp.ones((d_model,), jnp.float32),
        ln_ff_b=jnp.zeros((d_model,), jnp.float32),
    )


def prepare_params(p, n_head, d_head):
    """One-time prep: bf16 weight casts, K/V concat, o-proj transpose, and the
    1/sqrt(d_head) attention scale folded into q weights and r_* biases."""
    d_model = p["q"].shape[0]
    nd = n_head * d_head
    scale = 1.0 / math.sqrt(d_head)
    return dict(
        wq=(p["q"].reshape(d_model, nd) * scale).astype(jnp.bfloat16),
        wkv=jnp.concatenate([p["k"].reshape(d_model, nd),
                             p["v"].reshape(d_model, nd)],
                            axis=1).astype(jnp.bfloat16),
        wr=p["r"].reshape(d_model, nd).astype(jnp.bfloat16),
        wo=jnp.transpose(p["o"].reshape(d_model, nd)).astype(jnp.bfloat16),
        rwb=(p["r_w_bias"].reshape(1, nd) * scale).astype(jnp.float32),
        rrb=(p["r_r_bias"].reshape(1, nd) * scale).astype(jnp.float32),
        rsb=(p["r_s_bias"] * scale).astype(jnp.float32),
        ln_attn_g=p["ln_attn_g"], ln_attn_b=p["ln_attn_b"],
        ff_w1=p["ff_w1"].astype(jnp.bfloat16), ff_b1=p["ff_b1"],
        ff_w2=p["ff_w2"].astype(jnp.bfloat16), ff_b2=p["ff_b2"],
        ln_ff_g=p["ln_ff_g"], ln_ff_b=p["ln_ff_b"],
    )


# ----------------------------------------------------------------------------
# Demo
# ----------------------------------------------------------------------------
if __name__ == "__main__":
    d_model, n_head, d_head, d_inner = 32, 4, 8, 64
    qlen, mlen, bsz, num_predict = 8, 8, 2, 4
    klen = mlen + qlen
    rlen = klen + qlen

    key = jax.random.PRNGKey(0)
    k_par, kh, kg, km, kr, kseg, kse = jax.random.split(key, 7)
    params = init_params(k_par, d_model, n_head, d_head, d_inner)
    prep = prepare_params(params, n_head, d_head)

    h = jax.random.normal(kh, (qlen, bsz, d_model), jnp.float32)
    g = jax.random.normal(kg, (num_predict, bsz, d_model), jnp.float32)
    mem = jax.random.normal(km, (mlen, bsz, d_model), jnp.float32)
    pos_embed = jax.random.normal(kr, (rlen, 1, d_model), jnp.float32)
    seg_embed = 0.02 * jax.random.normal(kse, (2, n_head, d_head), jnp.float32)

    seg_q = jax.random.randint(kseg, (qlen, bsz), 0, 2)
    seg_cat = jnp.concatenate([jnp.zeros((mlen, bsz), seg_q.dtype), seg_q],
                              axis=0)
    seg_diff = (seg_q[:, None, :] != seg_cat[None, :, :]).astype(jnp.int32)
    seg_mat = jax.nn.one_hot(seg_diff, 2, dtype=jnp.float32)   # [qlen, klen, bsz, 2]

    qpos = jnp.arange(qlen)[:, None] + mlen
    kpos = jnp.arange(klen)[None, :]
    attn_mask_2d = (kpos >= qpos).astype(jnp.float32)   # g-stream: hide self+future
    non_tgt_2d = (kpos > qpos).astype(jnp.float32)      # h-stream: hide future only
    attn_mask = jnp.broadcast_to(attn_mask_2d[:, :, None, None],
                                 (qlen, klen, bsz, 1))
    non_tgt_mask = jnp.broadcast_to(non_tgt_2d[:, :, None, None],
                                    (qlen, klen, bsz, 1))

    tgt_pos = jnp.array([1, 3, 5, 7], jnp.int32)
    target_mapping = jax.nn.one_hot(tgt_pos, qlen, dtype=jnp.float32)
    target_mapping = jnp.broadcast_to(target_mapping[:, :, None],
                                      (num_predict, qlen, bsz))

    layer_fn = jax.jit(functools.partial(transformer_xl_layer,
                                         n_head=n_head, d_head=d_head,
                                         with_input_query=True))
    out_g, out_h = layer_fn(prep, h, g, seg_mat, seg_embed, pos_embed, mem,
                            attn_mask, target_mapping=target_mapping,
                            non_tgt_mask=non_tgt_mask)
    jax.block_until_ready((out_g, out_h))
    assert out_g.shape == (num_predict, bsz, d_model)
    assert out_h.shape == (qlen, bsz, d_model)
    print("KERNEL_OK")
</pallas_src>

<mosaic_0001>
module attributes {stable_mosaic.version = 11 : i64} {
  func.func @_mm_epilogue_kernel(%arg0: i32, %arg1: i32, %arg2: i32, %arg3: memref<24x32xbf16, #tpu.memory_space<vmem>>, %arg4: memref<32x32xbf16, #tpu.memory_space<vmem>>, %arg5: memref<24x32xbf16, #tpu.memory_space<vmem>>, %arg6: memref<24x32xf32, #tpu.memory_space<vmem>>) attributes {dimension_semantics = [#tpu.dimension_semantics<parallel>, #tpu.dimension_semantics<parallel>, #tpu.dimension_semantics<arbitrary>], iteration_bounds = array<i64: 1, 1, 1>, scalar_prefetch = 0 : i64, scratch_operands = 1 : i64, tpu.core_type = #tpu.core_type<tc>, window_params = [{transform_indices = @transform_0, window_bounds = array<i64: 24, 32>}, {transform_indices = @transform_1, window_bounds = array<i64: 32, 32>}, {transform_indices = @transform_2, window_bounds = array<i64: 24, 32>}]} {
    %c0_i32 = arith.constant 0 : i32
    %0 = arith.cmpi eq, %arg2, %c0_i32 : i32
    %1 = arith.extui %0 : i1 to i32
    %c0_i32_0 = arith.constant 0 : i32
    %2 = arith.cmpi ne, %1, %c0_i32_0 : i32
    scf.if %2 {
      %cst_10 = arith.constant 0.000000e+00 : f32
      %12 = vector.broadcast %cst_10 : f32 to vector<24x32xf32>
      %c0_11 = arith.constant 0 : index
      %c0_12 = arith.constant 0 : index
      %13 = vector.load %arg6[%c0_11, %c0_12] : memref<24x32xf32, #tpu.memory_space<vmem>>, vector<24x32xf32>
      tpu.vector_store %arg6[%c0_11, %c0_12], %12 {strides = array<i32>} : memref<24x32xf32, #tpu.memory_space<vmem>>, vector<24x32xf32>,
    } else {
    }
    %c0 = arith.constant 0 : index
    %c0_1 = arith.constant 0 : index
    %3 = vector.load %arg6[%c0, %c0_1] : memref<24x32xf32, #tpu.memory_space<vmem>>, vector<24x32xf32>
    %c0_2 = arith.constant 0 : index
    %c0_3 = arith.constant 0 : index
    %4 = vector.load %arg3[%c0_2, %c0_3] : memref<24x32xbf16, #tpu.memory_space<vmem>>, vector<24x32xbf16>
    %c0_4 = arith.constant 0 : index
    %c0_5 = arith.constant 0 : index
    %5 = vector.load %arg4[%c0_4, %c0_5] : memref<32x32xbf16, #tpu.memory_space<vmem>>, vector<32x32xbf16>
    %cst = arith.constant dense<0.000000e+00> : vector<24x32xf32>
    %6 = tpu.matmul %4, %5, %cst {dimension_numbers = #tpu.dot_dimension_numbers<[1], [0], [0], [1], [0, 0, 1, 1], [], []>} : vector<24x32xbf16>, vector<32x32xbf16>, vector<24x32xf32> -> vector<24x32xf32>
    %7 = arith.addf %3, %6 : vector<24x32xf32>
    %c0_6 = arith.constant 0 : index
    %c0_7 = arith.constant 0 : index
    %8 = vector.load %arg6[%c0_6, %c0_7] : memref<24x32xf32, #tpu.memory_space<vmem>>, vector<24x32xf32>
    tpu.vector_store %arg6[%c0_6, %c0_7], %7 {strides = array<i32>} : memref<24x32xf32, #tpu.memory_space<vmem>>, vector<24x32xf32>,
    %c0_i32_8 = arith.constant 0 : i32
    %9 = arith.cmpi eq, %arg2, %c0_i32_8 : i32
    %10 = arith.extui %9 : i1 to i32
    %c0_i32_9 = arith.constant 0 : i32
    %11 = arith.cmpi ne, %10, %c0_i32_9 : i32
    scf.if %11 {
      %c0_10 = arith.constant 0 : index
      %c0_11 = arith.constant 0 : index
      %12 = vector.load %arg6[%c0_10, %c0_11] : memref<24x32xf32, #tpu.memory_space<vmem>>, vector<24x32xf32>
      %13 = arith.truncf %12 : vector<24x32xf32> to vector<24x32xbf16>
      %c0_12 = arith.constant 0 : index
      %c0_13 = arith.constant 0 : index
      %14 = vector.load %arg5[%c0_12, %c0_13] : memref<24x32xbf16, #tpu.memory_space<vmem>>, vector<24x32xbf16>
      tpu.vector_store %arg5[%c0_12, %c0_13], %13 {strides = array<i32>} : memref<24x32xbf16, #tpu.memory_space<vmem>>, vector<24x32xbf16>,
    } else {
    }
    return
  }
  func.func @transform_0(%arg0: i32, %arg1: i32, %arg2: i32) -> (i32, i32) {
    %c0_i32 = arith.constant 0 : i32
    return %arg0, %arg2 : i32, i32
  }
  func.func @transform_1(%arg0: i32, %arg1: i32, %arg2: i32) -> (i32, i32) {
    %c0_i32 = arith.constant 0 : i32
    return %arg2, %arg1 : i32, i32
  }
  func.func @transform_2(%arg0: i32, %arg1: i32, %arg2: i32) -> (i32, i32) {
    %c0_i32 = arith.constant 0 : i32
    return %arg0, %arg1 : i32, i32
  }
}

module attributes {stable_mosaic.version = 11 : i64} {
  func.func @_mm_epilogue_kernel(%arg0: i32, %arg1: i32, %arg2: i32, %arg3: memref<32x32xbf16, #tpu.memory_space<vmem>>, %arg4: memref<32x64xbf16, #tpu.memory_space<vmem>>, %arg5: memref<32x64xbf16, #tpu.memory_space<vmem>>, %arg6: memref<32x64xf32, #tpu.memory_space<vmem>>) attributes {dimension_semantics = [#tpu.dimension_semantics<parallel>, #tpu.dimension_semantics<parallel>, #tpu.dimension_semantics<arbitrary>], iteration_bounds = array<i64: 1, 1, 1>, scalar_prefetch = 0 : i64, scratch_operands = 1 : i64, tpu.core_type = #tpu.core_type<tc>, window_params = [{transform_indices = @transform_0, window_bounds = array<i64: 32, 32>}, {transform_indices = @transform_1, window_bounds = array<i64: 32, 64>}, {transform_indices = @transform_2, window_bounds = array<i64: 32, 64>}]} {
    %c0_i32 = arith.constant 0 : i32
    %0 = arith.cmpi eq, %arg2, %c0_i32 : i32
    %1 = arith.extui %0 : i1 to i32
    %c0_i32_0 = arith.constant 0 : i32
    %2 = arith.cmpi ne, %1, %c0_i32_0 : i32
    scf.if %2 {
      %cst_10 = arith.constant 0.000000e+00 : f32
      %12 = vector.broadcast %cst_10 : f32 to vector<32x64xf32>
      %c0_11 = arith.constant 0 : index
      %c0_12 = arith.constant 0 : index
      %13 = vector.load %arg6[%c0_11, %c0_12] : memref<32x64xf32, #tpu.memory_space<vmem>>, vector<32x64xf32>
      tpu.vector_store %arg6[%c0_11, %c0_12], %12 {strides = array<i32>} : memref<32x64xf32, #tpu.memory_space<vmem>>, vector<32x64xf32>,
    } else {
    }
    %c0 = arith.constant 0 : index
    %c0_1 = arith.constant 0 : index
    %3 = vector.load %arg6[%c0, %c0_1] : memref<32x64xf32, #tpu.memory_space<vmem>>, vector<32x64xf32>
    %c0_2 = arith.constant 0 : index
    %c0_3 = arith.constant 0 : index
    %4 = vector.load %arg3[%c0_2, %c0_3] : memref<32x32xbf16, #tpu.memory_space<vmem>>, vector<32x32xbf16>
    %c0_4 = arith.constant 0 : index
    %c0_5 = arith.constant 0 : index
    %5 = vector.load %arg4[%c0_4, %c0_5] : memref<32x64xbf16, #tpu.memory_space<vmem>>, vector<32x64xbf16>
    %cst = arith.constant dense<0.000000e+00> : vector<32x64xf32>
    %6 = tpu.matmul %4, %5, %cst {dimension_numbers = #tpu.dot_dimension_numbers<[1], [0], [0], [1], [0, 0, 1, 1], [], []>} : vector<32x32xbf16>, vector<32x64xbf16>, vector<32x64xf32> -> vector<32x64xf32>
    %7 = arith.addf %3, %6 : vector<32x64xf32>
    %c0_6 = arith.constant 0 : index
    %c0_7 = arith.constant 0 : index
    %8 = vector.load %arg6[%c0_6, %c0_7] : memref<32x64xf32, #tpu.memory_space<vmem>>, vector<32x64xf32>
    tpu.vector_store %arg6[%c0_6, %c0_7], %7 {strides = array<i32>} : memref<32x64xf32, #tpu.memory_space<vmem>>, vector<32x64xf32>,
    %c0_i32_8 = arith.constant 0 : i32
    %9 = arith.cmpi eq, %arg2, %c0_i32_8 : i32
    %10 = arith.extui %9 : i1 to i32
    %c0_i32_9 = arith.constant 0 : i32
    %11 = arith.cmpi ne, %10, %c0_i32_9 : i32
    scf.if %11 {
      %c0_10 = arith.constant 0 : index
      %c0_11 = arith.constant 0 : index
      %12 = vector.load %arg6[%c0_10, %c0_11] : memref<32x64xf32, #tpu.memory_space<vmem>>, vector<32x64xf32>
      %13 = arith.truncf %12 : vector<32x64xf32> to vector<32x64xbf16>
      %c0_12 = arith.constant 0 : index
      %c0_13 = arith.constant 0 : index
      %14 = vector.load %arg5[%c0_12, %c0_13] : memref<32x64xbf16, #tpu.memory_space<vmem>>, vector<32x64xbf16>
      tpu.vector_store %arg5[%c0_12, %c0_13], %13 {strides = array<i32>} : memref<32x64xbf16, #tpu.memory_space<vmem>>, vector<32x64xbf16>,
    } else {
    }
    return
  }
  func.func @transform_0(%arg0: i32, %arg1: i32, %arg2: i32) -> (i32, i32) {
    %c0_i32 = arith.constant 0 : i32
    return %arg0, %arg2 : i32, i32
  }
  func.func @transform_1(%arg0: i32, %arg1: i32, %arg2: i32) -> (i32, i32) {
    %c0_i32 = arith.constant 0 : i32
    return %arg2, %arg1 : i32, i32
  }
  func.func @transform_2(%arg0: i32, %arg1: i32, %arg2: i32) -> (i32, i32) {
    %c0_i32 = arith.constant 0 : i32
    return %arg0, %arg1 : i32, i32
  }
}

module attributes {stable_mosaic.version = 11 : i64} {
  func.func @_bd_kernel(%arg0: i32, %arg1: i32, %arg2: memref<1x8x32xbf16, #tpu.memory_space<vmem>>, %arg3: memref<1x32xf32, #tpu.memory_space<vmem>>, %arg4: memref<24x32xbf16, #tpu.memory_space<vmem>>, %arg5: memref<1x4x8x24xbf16, #tpu.memory_space<vmem>>) attributes {dimension_semantics = [#tpu.dimension_semantics<parallel>, #tpu.dimension_semantics<parallel>], iteration_bounds = array<i64: 2, 1>, scalar_prefetch = 0 : i64, scratch_operands = 0 : i64, tpu.core_type = #tpu.core_type<tc>, window_params = [{transform_indices = @transform_0, window_bounds = array<i64: 1, 8, 32>}, {transform_indices = @transform_1, window_bounds = array<i64: 1, 32>}, {transform_indices = @transform_2, window_bounds = array<i64: 24, 32>}, {transform_indices = @transform_3, window_bounds = array<i64: 1, 4, 8, 24>}]} {
    %c0 = arith.constant 0 : index
    %c0_0 = arith.constant 0 : index
    %c0_1 = arith.constant 0 : index
    %0 = vector.load %arg2[%c0, %c0_0, %c0_1] : memref<1x8x32xbf16, #tpu.memory_space<vmem>>, vector<1x8x32xbf16>
    %1 = vector.shape_cast %0 : vector<1x8x32xbf16> to vector<8x32xbf16>
    %2 = arith.extf %1 : vector<8x32xbf16> to vector<8x32xf32>
    %c0_2 = arith.constant 0 : index
    %c0_3 = arith.constant 0 : index
    %3 = vector.load %arg3[%c0_2, %c0_3] : memref<1x32xf32, #tpu.memory_space<vmem>>, vector<1x32xf32>
    %4 = vector.broadcast %3 : vector<1x32xf32> to vector<8x32xf32>
    %5 = arith.addf %2, %4 : vector<8x32xf32>
    %6 = arith.truncf %5 : vector<8x32xf32> to vector<8x32xbf16>
    %7 = vector.extract_strided_slice %6 {offsets = [0, 0], sizes = [8, 8], strides = [1, 1]} : vector<8x32xbf16> to vector<8x8xbf16>
    %c0_4 = arith.constant 0 : index
    %c0_5 = arith.constant 0 : index
    %8 = vector.load %arg4[%c0_4, %c0_5] : memref<24x32xbf16, #tpu.memory_space<vmem>>, vector<24x8xbf16>
    %cst = arith.constant dense<0.000000e+00> : vector<8x24xf32>
    %9 = tpu.matmul %7, %8, %cst {dimension_numbers = #tpu.dot_dimension_numbers<[1], [1], [0], [0], [0, 0, 1, 0], [], []>} : vector<8x8xbf16>, vector<24x8xbf16>, vector<8x24xf32> -> vector<8x24xf32>
    %10 = arith.truncf %9 : vector<8x24xf32> to vector<8x24xbf16>
    %c0_6 = arith.constant 0 : index
    %c0_7 = arith.constant 0 : index
    %c0_8 = arith.constant 0 : index
    %c0_9 = arith.constant 0 : index
    %11 = vector.load %arg5[%c0_6, %c0_7, %c0_8, %c0_9] : memref<1x4x8x24xbf16, #tpu.memory_space<vmem>>, vector<1x1x8x24xbf16>
    %12 = vector.shape_cast %11 : vector<1x1x8x24xbf16> to vector<8x24xbf16>
    %13 = vector.shape_cast %10 : vector<8x24xbf16> to vector<1x1x8x24xbf16>
    tpu.vector_store %arg5[%c0_6, %c0_7, %c0_8, %c0_9], %13 {strides = array<i32>} : memref<1x4x8x24xbf16, #tpu.memory_space<vmem>>, vector<1x1x8x24xbf16>,
    %14 = vector.extract_strided_slice %6 {offsets = [0, 8], sizes = [8, 8], strides = [1, 1]} : vector<8x32xbf16> to vector<8x8xbf16>
    %c0_10 = arith.constant 0 : index
    %c8 = arith.constant 8 : index
    %15 = vector.load %arg4[%c0_10, %c8] : memref<24x32xbf16, #tpu.memory_space<vmem>>, vector<24x8xbf16>
    %cst_11 = arith.constant dense<0.000000e+00> : vector<8x24xf32>
    %16 = tpu.matmul %14, %15, %cst_11 {dimension_numbers = #tpu.dot_dimension_numbers<[1], [1], [0], [0], [0, 0, 1, 0], [], []>} : vector<8x8xbf16>, vector<24x8xbf16>, vector<8x24xf32> -> vector<8x24xf32>
    %17 = arith.truncf %16 : vector<8x24xf32> to vector<8x24xbf16>
    %c0_12 = arith.constant 0 : index
    %c1 = arith.constant 1 : index
    %c0_13 = arith.constant 0 : index
    %c0_14 = arith.constant 0 : index
    %18 = vector.load %arg5[%c0_12, %c1, %c0_13, %c0_14] : memref<1x4x8x24xbf16, #tpu.memory_space<vmem>>, vector<1x1x8x24xbf16>
    %19 = vector.shape_cast %18 : vector<1x1x8x24xbf16> to vector<8x24xbf16>
    %20 = vector.shape_cast %17 : vector<8x24xbf16> to vector<1x1x8x24xbf16>
    tpu.vector_store %arg5[%c0_12, %c1, %c0_13, %c0_14], %20 {strides = array<i32>} : memref<1x4x8x24xbf16, #tpu.memory_space<vmem>>, vector<1x1x8x24xbf16>,
    %21 = vector.extract_strided_slice %6 {offsets = [0, 16], sizes = [8, 8], strides = [1, 1]} : vector<8x32xbf16> to vector<8x8xbf16>
    %c0_15 = arith.constant 0 : index
    %c16 = arith.constant 16 : index
    %22 = vector.load %arg4[%c0_15, %c16] : memref<24x32xbf16, #tpu.memory_space<vmem>>, vector<24x8xbf16>
    %cst_16 = arith.constant dense<0.000000e+00> : vector<8x24xf32>
    %23 = tpu.matmul %21, %22, %cst_16 {dimension_numbers = #tpu.dot_dimension_numbers<[1], [1], [0], [0], [0, 0, 1, 0], [], []>} : vector<8x8xbf16>, vector<24x8xbf16>, vector<8x24xf32> -> vector<8x24xf32>
    %24 = arith.truncf %23 : vector<8x24xf32> to vector<8x24xbf16>
    %c0_17 = arith.constant 0 : index
    %c2 = arith.constant 2 : index
    %c0_18 = arith.constant 0 : index
    %c0_19 = arith.constant 0 : index
    %25 = vector.load %arg5[%c0_17, %c2, %c0_18, %c0_19] : memref<1x4x8x24xbf16, #tpu.memory_space<vmem>>, vector<1x1x8x24xbf16>
    %26 = vector.shape_cast %25 : vector<1x1x8x24xbf16> to vector<8x24xbf16>
    %27 = vector.shape_cast %24 : vector<8x24xbf16> to vector<1x1x8x24xbf16>
    tpu.vector_store %arg5[%c0_17, %c2, %c0_18, %c0_19], %27 {strides = array<i32>} : memref<1x4x8x24xbf16, #tpu.memory_space<vmem>>, vector<1x1x8x24xbf16>,
    %28 = vector.extract_strided_slice %6 {offsets = [0, 24], sizes = [8, 8], strides = [1, 1]} : vector<8x32xbf16> to vector<8x8xbf16>
    %c0_20 = arith.constant 0 : index
    %c24 = arith.constant 24 : index
    %29 = vector.load %arg4[%c0_20, %c24] : memref<24x32xbf16, #tpu.memory_space<vmem>>, vector<24x8xbf16>
    %cst_21 = arith.constant dense<0.000000e+00> : vector<8x24xf32>
    %30 = tpu.matmul %28, %29, %cst_21 {dimension_numbers = #tpu.dot_dimension_numbers<[1], [1], [0], [0], [0, 0, 1, 0], [], []>} : vector<8x8xbf16>, vector<24x8xbf16>, vector<8x24xf32> -> vector<8x24xf32>
    %31 = arith.truncf %30 : vector<8x24xf32> to vector<8x24xbf16>
    %c0_22 = arith.constant 0 : index
    %c3 = arith.constant 3 : index
    %c0_23 = arith.constant 0 : index
    %c0_24 = arith.constant 0 : index
    %32 = vector.load %arg5[%c0_22, %c3, %c0_23, %c0_24] : memref<1x4x8x24xbf16, #tpu.memory_space<vmem>>, vector<1x1x8x24xbf16>
    %33 = vector.shape_cast %32 : vector<1x1x8x24xbf16> to vector<8x24xbf16>
    %34 = vector.shape_cast %31 : vector<8x24xbf16> to vector<1x1x8x24xbf16>
    tpu.vector_store %arg5[%c0_22, %c3, %c0_23, %c0_24], %34 {strides = array<i32>} : memref<1x4x8x24xbf16, #tpu.memory_space<vmem>>, vector<1x1x8x24xbf16>,
    return
  }
  func.func @transform_0(%arg0: i32, %arg1: i32) -> (i32, i32, i32) {
    %c0_i32 = arith.constant 0 : i32
    %c0_i32_0 = arith.constant 0 : i32
    return %arg0, %c0_i32, %arg1 : i32, i32, i32
  }
  func.func @transform_1(%arg0: i32, %arg1: i32) -> (i32, i32) {
    %c0_i32 = arith.constant 0 : i32
    %c0_i32_0 = arith.constant 0 : i32
    return %c0_i32, %arg1 : i32, i32
  }
  func.func @transform_2(%arg0: i32, %arg1: i32) -> (i32, i32) {
    %c0_i32 = arith.constant 0 : i32
    %c0_i32_0 = arith.constant 0 : i32
    return %c0_i32, %arg1 : i32, i32
  }
  func.func @transform_3(%arg0: i32, %arg1: i32) -> (i32, i32, i32, i32) {
    %c0_i32 = arith.constant 0 : i32
    %c0_i32_0 = arith.constant 0 : i32
    %c0_i32_1 = arith.constant 0 : i32
    return %arg0, %arg1, %c0_i32, %c0_i32_0 : i32, i32, i32, i32
  }
}

module attributes {stable_mosaic.version = 11 : i64} {
  func.func @_mm_epilogue_kernel(%arg0: i32, %arg1: i32, %arg2: i32, %arg3: memref<24x32xbf16, #tpu.memory_space<vmem>>, %arg4: memref<32x64xbf16, #tpu.memory_space<vmem>>, %arg5: memref<1x64xf32, #tpu.memory_space<vmem>>, %arg6: memref<24x64xbf16, #tpu.memory_space<vmem>>, %arg7: memref<24x64xf32, #tpu.memory_space<vmem>>) attributes {dimension_semantics = [#tpu.dimension_semantics<parallel>, #tpu.dimension_semantics<parallel>, #tpu.dimension_semantics<arbitrary>], iteration_bounds = array<i64: 1, 1, 1>, scalar_prefetch = 0 : i64, scratch_operands = 1 : i64, tpu.core_type = #tpu.core_type<tc>, window_params = [{transform_indices = @transform_0, window_bounds = array<i64: 24, 32>}, {transform_indices = @transform_1, window_bounds = array<i64: 32, 64>}, {transform_indices = @transform_2, window_bounds = array<i64: 1, 64>}, {transform_indices = @transform_3, window_bounds = array<i64: 24, 64>}]} {
    %c0_i32 = arith.constant 0 : i32
    %0 = arith.cmpi eq, %arg2, %c0_i32 : i32
    %1 = arith.extui %0 : i1 to i32
    %c0_i32_0 = arith.constant 0 : i32
    %2 = arith.cmpi ne, %1, %c0_i32_0 : i32
    scf.if %2 {
      %cst_10 = arith.constant 0.000000e+00 : f32
      %12 = vector.broadcast %cst_10 : f32 to vector<24x64xf32>
      %c0_11 = arith.constant 0 : index
      %c0_12 = arith.constant 0 : index
      %13 = vector.load %arg7[%c0_11, %c0_12] : memref<24x64xf32, #tpu.memory_space<vmem>>, vector<24x64xf32>
      tpu.vector_store %arg7[%c0_11, %c0_12], %12 {strides = array<i32>} : memref<24x64xf32, #tpu.memory_space<vmem>>, vector<24x64xf32>,
    } else {
    }
    %c0 = arith.constant 0 : index
    %c0_1 = arith.constant 0 : index
    %3 = vector.load %arg7[%c0, %c0_1] : memref<24x64xf32, #tpu.memory_space<vmem>>, vector<24x64xf32>
    %c0_2 = arith.constant 0 : index
    %c0_3 = arith.constant 0 : index
    %4 = vector.load %arg3[%c0_2, %c0_3] : memref<24x32xbf16, #tpu.memory_space<vmem>>, vector<24x32xbf16>
    %c0_4 = arith.constant 0 : index
    %c0_5 = arith.constant 0 : index
    %5 = vector.load %arg4[%c0_4, %c0_5] : memref<32x64xbf16, #tpu.memory_space<vmem>>, vector<32x64xbf16>
    %cst = arith.constant dense<0.000000e+00> : vector<24x64xf32>
    %6 = tpu.matmul %4, %5, %cst {dimension_numbers = #tpu.dot_dimension_numbers<[1], [0], [0], [1], [0, 0, 1, 1], [], []>} : vector<24x32xbf16>, vector<32x64xbf16>, vector<24x64xf32> -> vector<24x64xf32>
    %7 = arith.addf %3, %6 : vector<24x64xf32>
    %c0_6 = arith.constant 0 : index
    %c0_7 = arith.constant 0 : index
    %8 = vector.load %arg7[%c0_6, %c0_7] : memref<24x64xf32, #tpu.memory_space<vmem>>, vector<24x64xf32>
    tpu.vector_store %arg7[%c0_6, %c0_7], %7 {strides = array<i32>} : memref<24x64xf32, #tpu.memory_space<vmem>>, vector<24x64xf32>,
    %c0_i32_8 = arith.constant 0 : i32
    %9 = arith.cmpi eq, %arg2, %c0_i32_8 : i32
    %10 = arith.extui %9 : i1 to i32
    %c0_i32_9 = arith.constant 0 : i32
    %11 = arith.cmpi ne, %10, %c0_i32_9 : i32
    scf.if %11 {
      %c0_10 = arith.constant 0 : index
      %c0_11 = arith.constant 0 : index
      %12 = vector.load %arg7[%c0_10, %c0_11] : memref<24x64xf32, #tpu.memory_space<vmem>>, vector<24x64xf32>
      %c0_12 = arith.constant 0 : index
      %c0_13 = arith.constant 0 : index
      %13 = vector.load %arg5[%c0_12, %c0_13] : memref<1x64xf32, #tpu.memory_space<vmem>>, vector<1x64xf32>
      %14 = vector.broadcast %13 : vector<1x64xf32> to vector<24x64xf32>
      %15 = arith.addf %12, %14 : vector<24x64xf32>
      %16 = arith.mulf %15, %15 : vector<24x64xf32>
      %17 = arith.mulf %15, %16 : vector<24x64xf32>
      %cst_14 = arith.constant 4.471500e-02 : f32
      %18 = vector.broadcast %cst_14 : f32 to vector<24x64xf32>
      %19 = arith.mulf %18, %17 : vector<24x64xf32>
      %20 = arith.addf %15, %19 : vector<24x64xf32>
      %cst_15 = arith.constant 0.797884583 : f32
      %21 = vector.broadcast %cst_15 : f32 to vector<24x64xf32>
      %22 = arith.mulf %21, %20 : vector<24x64xf32>
      %23 = math.tanh %22 : vector<24x64xf32>
      %cst_16 = arith.constant 1.000000e+00 : f32
      %24 = vector.broadcast %cst_16 : f32 to vector<24x64xf32>
      %25 = arith.addf %24, %23 : vector<24x64xf32>
      %cst_17 = arith.constant 5.000000e-01 : f32
      %26 = vector.broadcast %cst_17 : f32 to vector<24x64xf32>
      %27 = arith.mulf %26, %25 : vector<24x64xf32>
      %28 = arith.mulf %15, %27 : vector<24x64xf32>
      %29 = arith.truncf %28 : vector<24x64xf32> to vector<24x64xbf16>
      %c0_18 = arith.constant 0 : index
      %c0_19 = arith.constant 0 : index
      %30 = vector.load %arg6[%c0_18, %c0_19] : memref<24x64xbf16, #tpu.memory_space<vmem>>, vector<24x64xbf16>
      tpu.vector_store %arg6[%c0_18, %c0_19], %29 {strides = array<i32>} : memref<24x64xbf16, #tpu.memory_space<vmem>>, vector<24x64xbf16>,
    } else {
    }
    return
  }
  func.func @transform_0(%arg0: i32, %arg1: i32, %arg2: i32) -> (i32, i32) {
    %c0_i32 = arith.constant 0 : i32
    return %arg0, %arg2 : i32, i32
  }
  func.func @transform_1(%arg0: i32, %arg1: i32, %arg2: i32) -> (i32, i32) {
    %c0_i32 = arith.constant 0 : i32
    return %arg2, %arg1 : i32, i32
  }
  func.func @transform_2(%arg0: i32, %arg1: i32, %arg2: i32) -> (i32, i32) {
    %c0_i32 = arith.constant 0 : i32
    %c0_i32_0 = arith.constant 0 : i32
    return %c0_i32, %arg1 : i32, i32
  }
  func.func @transform_3(%arg0: i32, %arg1: i32, %arg2: i32) -> (i32, i32) {
    %c0_i32 = arith.constant 0 : i32
    return %arg0, %arg1 : i32, i32
  }
}

module attributes {stable_mosaic.version = 11 : i64} {
  func.func @_mm_res_ln_kernel(%arg0: i32, %arg1: i32, %arg2: memref<24x32xbf16, #tpu.memory_space<vmem>>, %arg3: memref<32x32xbf16, #tpu.memory_space<vmem>>, %arg4: memref<24x32xf32, #tpu.memory_space<vmem>>, %arg5: memref<1x32xf32, #tpu.memory_space<vmem>>, %arg6: memref<1x32xf32, #tpu.memory_space<vmem>>, %arg7: memref<24x32xbf16, #tpu.memory_space<vmem>>, %arg8: memref<24x32xf32, #tpu.memory_space<vmem>>) attributes {dimension_semantics = [#tpu.dimension_semantics<parallel>, #tpu.dimension_semantics<arbitrary>], iteration_bounds = array<i64: 1, 1>, scalar_prefetch = 0 : i64, scratch_operands = 1 : i64, tpu.core_type = #tpu.core_type<tc>, window_params = [{transform_indices = @transform_0, window_bounds = array<i64: 24, 32>}, {transform_indices = @transform_1, window_bounds = array<i64: 32, 32>}, {transform_indices = @transform_2, window_bounds = array<i64: 24, 32>}, {pipeline_mode = #tpu.pipeline_mode<synchronous>, transform_indices = @transform_3, window_bounds = array<i64: 1, 32>}, {pipeline_mode = #tpu.pipeline_mode<synchronous>, transform_indices = @transform_4, window_bounds = array<i64: 1, 32>}, {transform_indices = @transform_5, window_bounds = array<i64: 24, 32>}]} {
    %c0_i32 = arith.constant 0 : i32
    %0 = arith.cmpi eq, %arg1, %c0_i32 : i32
    %1 = arith.extui %0 : i1 to i32
    %c0_i32_0 = arith.constant 0 : i32
    %2 = arith.cmpi ne, %1, %c0_i32_0 : i32
    scf.if %2 {
      %cst_10 = arith.constant 0.000000e+00 : f32
      %12 = vector.broadcast %cst_10 : f32 to vector<24x32xf32>
      %c0_11 = arith.constant 0 : index
      %c0_12 = arith.constant 0 : index
      %13 = vector.load %arg8[%c0_11, %c0_12] : memref<24x32xf32, #tpu.memory_space<vmem>>, vector<24x32xf32>
      tpu.vector_store %arg8[%c0_11, %c0_12], %12 {strides = array<i32>} : memref<24x32xf32, #tpu.memory_space<vmem>>, vector<24x32xf32>,
    } else {
    }
    %c0 = arith.constant 0 : index
    %c0_1 = arith.constant 0 : index
    %3 = vector.load %arg8[%c0, %c0_1] : memref<24x32xf32, #tpu.memory_space<vmem>>, vector<24x32xf32>
    %c0_2 = arith.constant 0 : index
    %c0_3 = arith.constant 0 : index
    %4 = vector.load %arg2[%c0_2, %c0_3] : memref<24x32xbf16, #tpu.memory_space<vmem>>, vector<24x32xbf16>
    %c0_4 = arith.constant 0 : index
    %c0_5 = arith.constant 0 : index
    %5 = vector.load %arg3[%c0_4, %c0_5] : memref<32x32xbf16, #tpu.memory_space<vmem>>, vector<32x32xbf16>
    %cst = arith.constant dense<0.000000e+00> : vector<24x32xf32>
    %6 = tpu.matmul %4, %5, %cst {dimension_numbers = #tpu.dot_dimension_numbers<[1], [0], [0], [1], [0, 0, 1, 1], [], []>} : vector<24x32xbf16>, vector<32x32xbf16>, vector<24x32xf32> -> vector<24x32xf32>
    %7 = arith.addf %3, %6 : vector<24x32xf32>
    %c0_6 = arith.constant 0 : index
    %c0_7 = arith.constant 0 : index
    %8 = vector.load %arg8[%c0_6, %c0_7] : memref<24x32xf32, #tpu.memory_space<vmem>>, vector<24x32xf32>
    tpu.vector_store %arg8[%c0_6, %c0_7], %7 {strides = array<i32>} : memref<24x32xf32, #tpu.memory_space<vmem>>, vector<24x32xf32>,
    %c0_i32_8 = arith.constant 0 : i32
    %9 = arith.cmpi eq, %arg1, %c0_i32_8 : i32
    %10 = arith.extui %9 : i1 to i32
    %c0_i32_9 = arith.constant 0 : i32
    %11 = arith.cmpi ne, %10, %c0_i32_9 : i32
    scf.if %11 {
      %c0_10 = arith.constant 0 : index
      %c0_11 = arith.constant 0 : index
      %12 = vector.load %arg8[%c0_10, %c0_11] : memref<24x32xf32, #tpu.memory_space<vmem>>, vector<24x32xf32>
      %c0_12 = arith.constant 0 : index
      %c0_13 = arith.constant 0 : index
      %13 = vector.load %arg4[%c0_12, %c0_13] : memref<24x32xf32, #tpu.memory_space<vmem>>, vector<24x32xf32>
      %14 = arith.addf %12, %13 : vector<24x32xf32>
      %cst_14 = arith.constant dense<0.000000e+00> : vector<24xf32>
      %15 = vector.multi_reduction <add>, %14, %cst_14 [1] : vector<24x32xf32> to vector<24xf32>
      %16 = vector.shape_cast %15 : vector<24xf32> to vector<24x1xf32>
      %cst_15 = arith.constant 3.200000e+01 : f32
      %17 = vector.broadcast %cst_15 : f32 to vector<24x1xf32>
      %18 = arith.divf %16, %17 : vector<24x1xf32>
      %19 = vector.broadcast %18 : vector<24x1xf32> to vector<24x32xf32>
      %20 = arith.subf %14, %19 : vector<24x32xf32>
      %21 = arith.mulf %20, %20 : vector<24x32xf32>
      %cst_16 = arith.constant dense<0.000000e+00> : vector<24xf32>
      %22 = vector.multi_reduction <add>, %21, %cst_16 [1] : vector<24x32xf32> to vector<24xf32>
      %23 = vector.shape_cast %22 : vector<24xf32> to vector<24x1xf32>
      %cst_17 = arith.constant 3.200000e+01 : f32
      %24 = vector.broadcast %cst_17 : f32 to vector<24x1xf32>
      %25 = arith.divf %23, %24 : vector<24x1xf32>
      %26 = vector.broadcast %18 : vector<24x1xf32> to vector<24x32xf32>
      %27 = arith.subf %14, %26 : vector<24x32xf32>
      %cst_18 = arith.constant 9.99999996E-13 : f32
      %28 = vector.broadcast %cst_18 : f32 to vector<24x1xf32>
      %29 = arith.addf %25, %28 : vector<24x1xf32>
      %30 = math.rsqrt %29 : vector<24x1xf32>
      %31 = vector.broadcast %30 : vector<24x1xf32> to vector<24x32xf32>
      %32 = arith.mulf %27, %31 : vector<24x32xf32>
      %c0_19 = arith.constant 0 : index
      %c0_20 = arith.constant 0 : index
      %33 = vector.load %arg5[%c0_19, %c0_20] : memref<1x32xf32, #tpu.memory_space<vmem>>, vector<1x32xf32>
      %34 = vector.broadcast %33 : vector<1x32xf32> to vector<24x32xf32>
      %35 = arith.mulf %32, %34 : vector<24x32xf32>
      %c0_21 = arith.constant 0 : index
      %c0_22 = arith.constant 0 : index
      %36 = vector.load %arg6[%c0_21, %c0_22] : memref<1x32xf32, #tpu.memory_space<vmem>>, vector<1x32xf32>
      %37 = vector.broadcast %36 : vector<1x32xf32> to vector<24x32xf32>
      %38 = arith.addf %35, %37 : vector<24x32xf32>
      %39 = arith.truncf %38 : vector<24x32xf32> to vector<24x32xbf16>
      %c0_23 = arith.constant 0 : index
      %c0_24 = arith.constant 0 : index
      %40 = vector.load %arg7[%c0_23, %c0_24] : memref<24x32xbf16, #tpu.memory_space<vmem>>, vector<24x32xbf16>
      tpu.vector_store %arg7[%c0_23, %c0_24], %39 {strides = array<i32>} : memref<24x32xbf16, #tpu.memory_space<vmem>>, vector<24x32xbf16>,
    } else {
    }
    return
  }
  func.func @transform_0(%arg0: i32, %arg1: i32) -> (i32, i32) {
    %c0_i32 = arith.constant 0 : i32
    return %arg0, %arg1 : i32, i32
  }
  func.func @transform_1(%arg0: i32, %arg1: i32) -> (i32, i32) {
    %c0_i32 = arith.constant 0 : i32
    %c0_i32_0 = arith.constant 0 : i32
    return %arg1, %c0_i32 : i32, i32
  }
  func.func @transform_2(%arg0: i32, %arg1: i32) -> (i32, i32) {
    %c0_i32 = arith.constant 0 : i32
    %c0_i32_0 = arith.constant 0 : i32
    return %arg0, %c0_i32 : i32, i32
  }
  func.func @transform_3(%arg0: i32, %arg1: i32) -> (i32, i32) {
    %c0_i32 = arith.constant 0 : i32
    %c0_i32_0 = arith.constant 0 : i32
    %c0_i32_1 = arith.constant 0 : i32
    return %c0_i32, %c0_i32_0 : i32, i32
  }
  func.func @transform_4(%arg0: i32, %arg1: i32) -> (i32, i32) {
    %c0_i32 = arith.constant 0 : i32
    %c0_i32_0 = arith.constant 0 : i32
    %c0_i32_1 = arith.constant 0 : i32
    return %c0_i32, %c0_i32_0 : i32, i32
  }
  func.func @transform_5(%arg0: i32, %arg1: i32) -> (i32, i32) {
    %c0_i32 = arith.constant 0 : i32
    %c0_i32_0 = arith.constant 0 : i32
    return %arg0, %c0_i32 : i32, i32
  }
}

module attributes {stable_mosaic.version = 11 : i64} {
  func.func @_attn_core_kernel(%arg0: i32, %arg1: i32, %arg2: memref<1x8x32xbf16, #tpu.memory_space<vmem>>, %arg3: memref<1x16x32xbf16, #tpu.memory_space<vmem>>, %arg4: memref<1x16x32xbf16, #tpu.memory_space<vmem>>, %arg5: memref<1x4x8x16xbf16, #tpu.memory_space<vmem>>, %arg6: memref<1x8x16xbf16, #tpu.memory_space<vmem>>, %arg7: memref<1x8x16xbf16, #tpu.memory_space<vmem>>, %arg8: memref<1x32xf32, #tpu.memory_space<vmem>>, %arg9: memref<1x32x8xbf16, #tpu.memory_space<vmem>>, %arg10: memref<1x1x8xf32, #tpu.memory_space<vmem>>, %arg11: memref<1x8x32xbf16, #tpu.memory_space<vmem>>) attributes {dimension_semantics = [#tpu.dimension_semantics<parallel>, #tpu.dimension_semantics<parallel>], iteration_bounds = array<i64: 2, 1>, scalar_prefetch = 0 : i64, scratch_operands = 0 : i64, tpu.core_type = #tpu.core_type<tc>, window_params = [{transform_indices = @transform_0, window_bounds = array<i64: 1, 8, 32>}, {transform_indices = @transform_1, window_bounds = array<i64: 1, 16, 32>}, {transform_indices = @transform_2, window_bounds = array<i64: 1, 16, 32>}, {transform_indices = @transform_3, window_bounds = array<i64: 1, 4, 8, 16>}, {transform_indices = @transform_4, window_bounds = array<i64: 1, 8, 16>}, {transform_indices = @transform_5, window_bounds = array<i64: 1, 8, 16>}, {transform_indices = @transform_6, window_bounds = array<i64: 1, 32>}, {transform_indices = @transform_7, window_bounds = array<i64: 1, 32, 8>}, {transform_indices = @transform_8, window_bounds = array<i64: 1, 1, 8>}, {transform_indices = @transform_9, window_bounds = array<i64: 1, 8, 32>}]} {
    %c0 = arith.constant 0 : index
    %c0_0 = arith.constant 0 : index
    %c0_1 = arith.constant 0 : index
    %0 = vector.load %arg2[%c0, %c0_0, %c0_1] : memref<1x8x32xbf16, #tpu.memory_space<vmem>>, vector<1x8x32xbf16>
    %1 = vector.shape_cast %0 : vector<1x8x32xbf16> to vector<8x32xbf16>
    %2 = arith.extf %1 : vector<8x32xbf16> to vector<8x32xf32>
    %c0_2 = arith.constant 0 : index
    %c0_3 = arith.constant 0 : index
    %3 = vector.load %arg8[%c0_2, %c0_3] : memref<1x32xf32, #tpu.memory_space<vmem>>, vector<1x32xf32>
    %4 = vector.broadcast %3 : vector<1x32xf32> to vector<8x32xf32>
    %5 = arith.addf %2, %4 : vector<8x32xf32>
    %6 = arith.truncf %5 : vector<8x32xf32> to vector<8x32xbf16>
    %c0_4 = arith.constant 0 : index
    %c0_5 = arith.constant 0 : index
    %c0_6 = arith.constant 0 : index
    %7 = vector.load %arg2[%c0_4, %c0_5, %c0_6] : memref<1x8x32xbf16, #tpu.memory_space<vmem>>, vector<1x8x32xbf16>
    %8 = vector.shape_cast %7 : vector<1x8x32xbf16> to vector<8x32xbf16>
    %c0_7 = arith.constant 0 : index
    %c0_8 = arith.constant 0 : index
    %c0_9 = arith.constant 0 : index
    %9 = vector.load %arg9[%c0_7, %c0_8, %c0_9] : memref<1x32x8xbf16, #tpu.memory_space<vmem>>, vector<1x32x8xbf16>
    %10 = vector.shape_cast %9 : vector<1x32x8xbf16> to vector<32x8xbf16>
    %cst = arith.constant dense<0.000000e+00> : vector<8x8xf32>
    %11 = tpu.matmul %8, %10, %cst {dimension_numbers = #tpu.dot_dimension_numbers<[1], [0], [0], [1], [0, 0, 1, 1], [], []>} : vector<8x32xbf16>, vector<32x8xbf16>, vector<8x8xf32> -> vector<8x8xf32>
    %c0_10 = arith.constant 0 : index
    %c0_11 = arith.constant 0 : index
    %c0_12 = arith.constant 0 : index
    %12 = vector.load %arg10[%c0_10, %c0_11, %c0_12] : memref<1x1x8xf32, #tpu.memory_space<vmem>>, vector<1x1x8xf32>
    %13 = vector.shape_cast %12 : vector<1x1x8xf32> to vector<1x8xf32>
    %14 = vector.broadcast %13 : vector<1x8xf32> to vector<8x8xf32>
    %15 = arith.addf %11, %14 : vector<8x8xf32>
    %c0_13 = arith.constant 0 : index
    %c0_14 = arith.constant 0 : index
    %c0_15 = arith.constant 0 : index
    %16 = vector.load %arg6[%c0_13, %c0_14, %c0_15] : memref<1x8x16xbf16, #tpu.memory_space<vmem>>, vector<1x8x16xbf16>
    %17 = vector.shape_cast %16 : vector<1x8x16xbf16> to vector<8x16xbf16>
    %18 = arith.extf %17 : vector<8x16xbf16> to vector<8x16xf32>
    %c0_16 = arith.constant 0 : index
    %c0_17 = arith.constant 0 : index
    %c0_18 = arith.constant 0 : index
    %19 = vector.load %arg7[%c0_16, %c0_17, %c0_18] : memref<1x8x16xbf16, #tpu.memory_space<vmem>>, vector<1x8x16xbf16>
    %20 = vector.shape_cast %19 : vector<1x8x16xbf16> to vector<8x16xbf16>
    %21 = arith.extf %20 : vector<8x16xbf16> to vector<8x16xf32>
    %22 = vector.extract_strided_slice %6 {offsets = [0, 0], sizes = [8, 8], strides = [1, 1]} : vector<8x32xbf16> to vector<8x8xbf16>
    %c0_19 = arith.constant 0 : index
    %c0_20 = arith.constant 0 : index
    %c0_21 = arith.constant 0 : index
    %23 = vector.load %arg3[%c0_19, %c0_20, %c0_21] : memref<1x16x32xbf16, #tpu.memory_space<vmem>>, vector<1x16x8xbf16>
    %24 = vector.shape_cast %23 : vector<1x16x8xbf16> to vector<16x8xbf16>
    %cst_22 = arith.constant dense<0.000000e+00> : vector<8x16xf32>
    %25 = tpu.matmul %22, %24, %cst_22 {dimension_numbers = #tpu.dot_dimension_numbers<[1], [1], [0], [0], [0, 0, 1, 0], [], []>} : vector<8x8xbf16>, vector<16x8xbf16>, vector<8x16xf32> -> vector<8x16xf32>
    %26 = vector.extract_strided_slice %15 {offsets = [0, 0], sizes = [8, 1], strides = [1, 1]} : vector<8x8xf32> to vector<8x1xf32>
    %27 = vector.extract_strided_slice %15 {offsets = [0, 1], sizes = [8, 1], strides = [1, 1]} : vector<8x8xf32> to vector<8x1xf32>
    %c0_23 = arith.constant 0 : index
    %c0_24 = arith.constant 0 : index
    %c0_25 = arith.constant 0 : index
    %c0_26 = arith.constant 0 : index
    %28 = vector.load %arg5[%c0_23, %c0_24, %c0_25, %c0_26] : memref<1x4x8x16xbf16, #tpu.memory_space<vmem>>, vector<1x1x8x16xbf16>
    %29 = vector.shape_cast %28 : vector<1x1x8x16xbf16> to vector<8x16xbf16>
    %30 = arith.extf %29 : vector<8x16xbf16> to vector<8x16xf32>
    %31 = arith.addf %25, %30 : vector<8x16xf32>
    %32 = arith.addf %31, %18 : vector<8x16xf32>
    %33 = vector.broadcast %27 : vector<8x1xf32> to vector<8x16xf32>
    %34 = arith.addf %32, %33 : vector<8x16xf32>
    %35 = arith.subf %26, %27 : vector<8x1xf32>
    %36 = vector.broadcast %35 : vector<8x1xf32> to vector<8x16xf32>
    %37 = arith.mulf %21, %36 : vector<8x16xf32>
    %38 = arith.addf %34, %37 : vector<8x16xf32>
    %cst_27 = arith.constant dense<0xFF800000> : vector<8xf32>
    %39 = vector.multi_reduction <maximumf>, %38, %cst_27 [1] : vector<8x16xf32> to vector<8xf32>
    %40 = vector.shape_cast %39 : vector<8xf32> to vector<8x1xf32>
    %41 = vector.broadcast %40 : vector<8x1xf32> to vector<8x16xf32>
    %42 = arith.subf %38, %41 : vector<8x16xf32>
    %43 = math.exp %42 : vector<8x16xf32>
    %cst_28 = arith.constant dense<0.000000e+00> : vector<8xf32>
    %44 = vector.multi_reduction <add>, %43, %cst_28 [1] : vector<8x16xf32> to vector<8xf32>
    %45 = vector.shape_cast %44 : vector<8xf32> to vector<8x1xf32>
    %46 = tpu.reciprocal %45 {approx = true} : vector<8x1xf32> -> vector<8x1xf32>
    %47 = vector.broadcast %46 : vector<8x1xf32> to vector<8x16xf32>
    %48 = arith.mulf %43, %47 : vector<8x16xf32>
    %49 = arith.truncf %48 : vector<8x16xf32> to vector<8x16xbf16>
    %c0_29 = arith.constant 0 : index
    %c0_30 = arith.constant 0 : index
    %c0_31 = arith.constant 0 : index
    %50 = vector.load %arg4[%c0_29, %c0_30, %c0_31] : memref<1x16x32xbf16, #tpu.memory_space<vmem>>, vector<1x16x8xbf16>
    %51 = vector.shape_cast %50 : vector<1x16x8xbf16> to vector<16x8xbf16>
    %cst_32 = arith.constant dense<0.000000e+00> : vector<8x8xf32>
    %52 = tpu.matmul %49, %51, %cst_32 {dimension_numbers = #tpu.dot_dimension_numbers<[1], [0], [0], [1], [0, 0, 1, 1], [], []>} : vector<8x16xbf16>, vector<16x8xbf16>, vector<8x8xf32> -> vector<8x8xf32>
    %53 = arith.truncf %52 : vector<8x8xf32> to vector<8x8xbf16>
    %54 = vector.extract_strided_slice %6 {offsets = [0, 8], sizes = [8, 8], strides = [1, 1]} : vector<8x32xbf16> to vector<8x8xbf16>
    %c0_33 = arith.constant 0 : index
    %c0_34 = arith.constant 0 : index
    %c8 = arith.constant 8 : index
    %55 = vector.load %arg3[%c0_33, %c0_34, %c8] : memref<1x16x32xbf16, #tpu.memory_space<vmem>>, vector<1x16x8xbf16>
    %56 = vector.shape_cast %55 : vector<1x16x8xbf16> to vector<16x8xbf16>
    %cst_35 = arith.constant dense<0.000000e+00> : vector<8x16xf32>
    %57 = tpu.matmul %54, %56, %cst_35 {dimension_numbers = #tpu.dot_dimension_numbers<[1], [1], [0], [0], [0, 0, 1, 0], [], []>} : vector<8x8xbf16>, vector<16x8xbf16>, vector<8x16xf32> -> vector<8x16xf32>
    %58 = vector.extract_strided_slice %15 {offsets = [0, 2], sizes = [8, 1], strides = [1, 1]} : vector<8x8xf32> to vector<8x1xf32>
    %59 = vector.extract_strided_slice %15 {offsets = [0, 3], sizes = [8, 1], strides = [1, 1]} : vector<8x8xf32> to vector<8x1xf32>
    %c0_36 = arith.constant 0 : index
    %c1 = arith.constant 1 : index
    %c0_37 = arith.constant 0 : index
    %c0_38 = arith.constant 0 : index
    %60 = vector.load %arg5[%c0_36, %c1, %c0_37, %c0_38] : memref<1x4x8x16xbf16, #tpu.memory_space<vmem>>, vector<1x1x8x16xbf16>
    %61 = vector.shape_cast %60 : vector<1x1x8x16xbf16> to vector<8x16xbf16>
    %62 = arith.extf %61 : vector<8x16xbf16> to vector<8x16xf32>
    %63 = arith.addf %57, %62 : vector<8x16xf32>
    %64 = arith.addf %63, %18 : vector<8x16xf32>
    %65 = vector.broadcast %59 : vector<8x1xf32> to vector<8x16xf32>
    %66 = arith.addf %64, %65 : vector<8x16xf32>
    %67 = arith.subf %58, %59 : vector<8x1xf32>
    %68 = vector.broadcast %67 : vector<8x1xf32> to vector<8x16xf32>
    %69 = arith.mulf %21, %68 : vector<8x16xf32>
    %70 = arith.addf %66, %69 : vector<8x16xf32>
    %cst_39 = arith.constant dense<0xFF800000> : vector<8xf32>
    %71 = vector.multi_reduction <maximumf>, %70, %cst_39 [1] : vector<8x16xf32> to vector<8xf32>
    %72 = vector.shape_cast %71 : vector<8xf32> to vector<8x1xf32>
    %73 = vector.broadcast %72 : vector<8x1xf32> to vector<8x16xf32>
    %74 = arith.subf %70, %73 : vector<8x16xf32>
    %75 = math.exp %74 : vector<8x16xf32>
    %cst_40 = arith.constant dense<0.000000e+00> : vector<8xf32>
    %76 = vector.multi_reduction <add>, %75, %cst_40 [1] : vector<8x16xf32> to vector<8xf32>
    %77 = vector.shape_cast %76 : vector<8xf32> to vector<8x1xf32>
    %78 = tpu.reciprocal %77 {approx = true} : vector<8x1xf32> -> vector<8x1xf32>
    %79 = vector.broadcast %78 : vector<8x1xf32> to vector<8x16xf32>
    %80 = arith.mulf %75, %79 : vector<8x16xf32>
    %81 = arith.truncf %80 : vector<8x16xf32> to vector<8x16xbf16>
    %c0_41 = arith.constant 0 : index
    %c0_42 = arith.constant 0 : index
    %c8_43 = arith.constant 8 : index
    %82 = vector.load %arg4[%c0_41, %c0_42, %c8_43] : memref<1x16x32xbf16, #tpu.memory_space<vmem>>, vector<1x16x8xbf16>
    %83 = vector.shape_cast %82 : vector<1x16x8xbf16> to vector<16x8xbf16>
    %cst_44 = arith.constant dense<0.000000e+00> : vector<8x8xf32>
    %84 = tpu.matmul %81, %83, %cst_44 {dimension_numbers = #tpu.dot_dimension_numbers<[1], [0], [0], [1], [0, 0, 1, 1], [], []>} : vector<8x16xbf16>, vector<16x8xbf16>, vector<8x8xf32> -> vector<8x8xf32>
    %85 = arith.truncf %84 : vector<8x8xf32> to vector<8x8xbf16>
    %86 = vector.extract_strided_slice %6 {offsets = [0, 16], sizes = [8, 8], strides = [1, 1]} : vector<8x32xbf16> to vector<8x8xbf16>
    %c0_45 = arith.constant 0 : index
    %c0_46 = arith.constant 0 : index
    %c16 = arith.constant 16 : index
    %87 = vector.load %arg3[%c0_45, %c0_46, %c16] : memref<1x16x32xbf16, #tpu.memory_space<vmem>>, vector<1x16x8xbf16>
    %88 = vector.shape_cast %87 : vector<1x16x8xbf16> to vector<16x8xbf16>
    %cst_47 = arith.constant dense<0.000000e+00> : vector<8x16xf32>
    %89 = tpu.matmul %86, %88, %cst_47 {dimension_numbers = #tpu.dot_dimension_numbers<[1], [1], [0], [0], [0, 0, 1, 0], [], []>} : vector<8x8xbf16>, vector<16x8xbf16>, vector<8x16xf32> -> vector<8x16xf32>
    %90 = vector.extract_strided_slice %15 {offsets = [0, 4], sizes = [8, 1], strides = [1, 1]} : vector<8x8xf32> to vector<8x1xf32>
    %91 = vector.extract_strided_slice %15 {offsets = [0, 5], sizes = [8, 1], strides = [1, 1]} : vector<8x8xf32> to vector<8x1xf32>
    %c0_48 = arith.constant 0 : index
    %c2 = arith.constant 2 : index
    %c0_49 = arith.constant 0 : index
    %c0_50 = arith.constant 0 : index
    %92 = vector.load %arg5[%c0_48, %c2, %c0_49, %c0_50] : memref<1x4x8x16xbf16, #tpu.memory_space<vmem>>, vector<1x1x8x16xbf16>
    %93 = vector.shape_cast %92 : vector<1x1x8x16xbf16> to vector<8x16xbf16>
    %94 = arith.extf %93 : vector<8x16xbf16> to vector<8x16xf32>
    %95 = arith.addf %89, %94 : vector<8x16xf32>
    %96 = arith.addf %95, %18 : vector<8x16xf32>
    %97 = vector.broadcast %91 : vector<8x1xf32> to vector<8x16xf32>
    %98 = arith.addf %96, %97 : vector<8x16xf32>
    %99 = arith.subf %90, %91 : vector<8x1xf32>
    %100 = vector.broadcast %99 : vector<8x1xf32> to vector<8x16xf32>
    %101 = arith.mulf %21, %100 : vector<8x16xf32>
    %102 = arith.addf %98, %101 : vector<8x16xf32>
    %cst_51 = arith.constant dense<0xFF800000> : vector<8xf32>
    %103 = vector.multi_reduction <maximumf>, %102, %cst_51 [1] : vector<8x16xf32> to vector<8xf32>
    %104 = vector.shape_cast %103 : vector<8xf32> to vector<8x1xf32>
    %105 = vector.broadcast %104 : vector<8x1xf32> to vector<8x16xf32>
    %106 = arith.subf %102, %105 : vector<8x16xf32>
    %107 = math.exp %106 : vector<8x16xf32>
    %cst_52 = arith.constant dense<0.000000e+00> : vector<8xf32>
    %108 = vector.multi_reduction <add>, %107, %cst_52 [1] : vector<8x16xf32> to vector<8xf32>
    %109 = vector.shape_cast %108 : vector<8xf32> to vector<8x1xf32>
    %110 = tpu.reciprocal %109 {approx = true} : vector<8x1xf32> -> vector<8x1xf32>
    %111 = vector.broadcast %110 : vector<8x1xf32> to vector<8x16xf32>
    %112 = arith.mulf %107, %111 : vector<8x16xf32>
    %113 = arith.truncf %112 : vector<8x16xf32> to vector<8x16xbf16>
    %c0_53 = arith.constant 0 : index
    %c0_54 = arith.constant 0 : index
    %c16_55 = arith.constant 16 : index
    %114 = vector.load %arg4[%c0_53, %c0_54, %c16_55] : memref<1x16x32xbf16, #tpu.memory_space<vmem>>, vector<1x16x8xbf16>
    %115 = vector.shape_cast %114 : vector<1x16x8xbf16> to vector<16x8xbf16>
    %cst_56 = arith.constant dense<0.000000e+00> : vector<8x8xf32>
    %116 = tpu.matmul %113, %115, %cst_56 {dimension_numbers = #tpu.dot_dimension_numbers<[1], [0], [0], [1], [0, 0, 1, 1], [], []>} : vector<8x16xbf16>, vector<16x8xbf16>, vector<8x8xf32> -> vector<8x8xf32>
    %117 = arith.truncf %116 : vector<8x8xf32> to vector<8x8xbf16>
    %118 = vector.extract_strided_slice %6 {offsets = [0, 24], sizes = [8, 8], strides = [1, 1]} : vector<8x32xbf16> to vector<8x8xbf16>
    %c0_57 = arith.constant 0 : index
    %c0_58 = arith.constant 0 : index
    %c24 = arith.constant 24 : index
    %119 = vector.load %arg3[%c0_57, %c0_58, %c24] : memref<1x16x32xbf16, #tpu.memory_space<vmem>>, vector<1x16x8xbf16>
    %120 = vector.shape_cast %119 : vector<1x16x8xbf16> to vector<16x8xbf16>
    %cst_59 = arith.constant dense<0.000000e+00> : vector<8x16xf32>
    %121 = tpu.matmul %118, %120, %cst_59 {dimension_numbers = #tpu.dot_dimension_numbers<[1], [1], [0], [0], [0, 0, 1, 0], [], []>} : vector<8x8xbf16>, vector<16x8xbf16>, vector<8x16xf32> -> vector<8x16xf32>
    %122 = vector.extract_strided_slice %15 {offsets = [0, 6], sizes = [8, 1], strides = [1, 1]} : vector<8x8xf32> to vector<8x1xf32>
    %123 = vector.extract_strided_slice %15 {offsets = [0, 7], sizes = [8, 1], strides = [1, 1]} : vector<8x8xf32> to vector<8x1xf32>
    %c0_60 = arith.constant 0 : index
    %c3 = arith.constant 3 : index
    %c0_61 = arith.constant 0 : index
    %c0_62 = arith.constant 0 : index
    %124 = vector.load %arg5[%c0_60, %c3, %c0_61, %c0_62] : memref<1x4x8x16xbf16, #tpu.memory_space<vmem>>, vector<1x1x8x16xbf16>
    %125 = vector.shape_cast %124 : vector<1x1x8x16xbf16> to vector<8x16xbf16>
    %126 = arith.extf %125 : vector<8x16xbf16> to vector<8x16xf32>
    %127 = arith.addf %121, %126 : vector<8x16xf32>
    %128 = arith.addf %127, %18 : vector<8x16xf32>
    %129 = vector.broadcast %123 : vector<8x1xf32> to vector<8x16xf32>
    %130 = arith.addf %128, %129 : vector<8x16xf32>
    %131 = arith.subf %122, %123 : vector<8x1xf32>
    %132 = vector.broadcast %131 : vector<8x1xf32> to vector<8x16xf32>
    %133 = arith.mulf %21, %132 : vector<8x16xf32>
    %134 = arith.addf %130, %133 : vector<8x16xf32>
    %cst_63 = arith.constant dense<0xFF800000> : vector<8xf32>
    %135 = vector.multi_reduction <maximumf>, %134, %cst_63 [1] : vector<8x16xf32> to vector<8xf32>
    %136 = vector.shape_cast %135 : vector<8xf32> to vector<8x1xf32>
    %137 = vector.broadcast %136 : vector<8x1xf32> to vector<8x16xf32>
    %138 = arith.subf %134, %137 : vector<8x16xf32>
    %139 = math.exp %138 : vector<8x16xf32>
    %cst_64 = arith.constant dense<0.000000e+00> : vector<8xf32>
    %140 = vector.multi_reduction <add>, %139, %cst_64 [1] : vector<8x16xf32> to vector<8xf32>
    %141 = vector.shape_cast %140 : vector<8xf32> to vector<8x1xf32>
    %142 = tpu.reciprocal %141 {approx = true} : vector<8x1xf32> -> vector<8x1xf32>
    %143 = vector.broadcast %142 : vector<8x1xf32> to vector<8x16xf32>
    %144 = arith.mulf %139, %143 : vector<8x16xf32>
    %145 = arith.truncf %144 : vector<8x16xf32> to vector<8x16xbf16>
    %c0_65 = arith.constant 0 : index
    %c0_66 = arith.constant 0 : index
    %c24_67 = arith.constant 24 : index
    %146 = vector.load %arg4[%c0_65, %c0_66, %c24_67] : memref<1x16x32xbf16, #tpu.memory_space<vmem>>, vector<1x16x8xbf16>
    %147 = vector.shape_cast %146 : vector<1x16x8xbf16> to vector<16x8xbf16>
    %cst_68 = arith.constant dense<0.000000e+00> : vector<8x8xf32>
    %148 = tpu.matmul %145, %147, %cst_68 {dimension_numbers = #tpu.dot_dimension_numbers<[1], [0], [0], [1], [0, 0, 1, 1], [], []>} : vector<8x16xbf16>, vector<16x8xbf16>, vector<8x8xf32> -> vector<8x8xf32>
    %149 = arith.truncf %148 : vector<8x8xf32> to vector<8x8xbf16>
    %150 = tpu.concatenate %53, %85, %117, %149 in 1 : vector<8x8xbf16>, vector<8x8xbf16>, vector<8x8xbf16>, vector<8x8xbf16> -> vector<8x32xbf16>
    %c0_69 = arith.constant 0 : index
    %c0_70 = arith.constant 0 : index
    %c0_71 = arith.constant 0 : index
    %151 = vector.load %arg11[%c0_69, %c0_70, %c0_71] : memref<1x8x32xbf16, #tpu.memory_space<vmem>>, vector<1x8x32xbf16>
    %152 = vector.shape_cast %151 : vector<1x8x32xbf16> to vector<8x32xbf16>
    %153 = vector.shape_cast %150 : vector<8x32xbf16> to vector<1x8x32xbf16>
    tpu.vector_store %arg11[%c0_69, %c0_70, %c0_71], %153 {strides = array<i32>} : memref<1x8x32xbf16, #tpu.memory_space<vmem>>, vector<1x8x32xbf16>,
    return
  }
  func.func @transform_0(%arg0: i32, %arg1: i32) -> (i32, i32, i32) {
    %c0_i32 = arith.constant 0 : i32
    %c0_i32_0 = arith.constant 0 : i32
    return %arg0, %c0_i32, %arg1 : i32, i32, i32
  }
  func.func @transform_1(%arg0: i32, %arg1: i32) -> (i32, i32, i32) {
    %c0_i32 = arith.constant 0 : i32
    %c0_i32_0 = arith.constant 0 : i32
    return %arg0, %c0_i32, %arg1 : i32, i32, i32
  }
  func.func @transform_2(%arg0: i32, %arg1: i32) -> (i32, i32, i32) {
    %c0_i32 = arith.constant 0 : i32
    %c0_i32_0 = arith.constant 0 : i32
    return %arg0, %c0_i32, %arg1 : i32, i32, i32
  }
  func.func @transform_3(%arg0: i32, %arg1: i32) -> (i32, i32, i32, i32) {
    %c0_i32 = arith.constant 0 : i32
    %c0_i32_0 = arith.constant 0 : i32
    %c0_i32_1 = arith.constant 0 : i32
    return %arg0, %arg1, %c0_i32, %c0_i32_0 : i32, i32, i32, i32
  }
  func.func @transform_4(%arg0: i32, %arg1: i32) -> (i32, i32, i32) {
    %c0_i32 = arith.constant 0 : i32
    %c0_i32_0 = arith.constant 0 : i32
    %c0_i32_1 = arith.constant 0 : i32
    return %arg0, %c0_i32, %c0_i32_0 : i32, i32, i32
  }
  func.func @transform_5(%arg0: i32, %arg1: i32) -> (i32, i32, i32) {
    %c0_i32 = arith.constant 0 : i32
    %c0_i32_0 = arith.constant 0 : i32
    %c0_i32_1 = arith.constant 0 : i32
    return %arg0, %c0_i32, %c0_i32_0 : i32, i32, i32
  }
  func.func @transform_6(%arg0: i32, %arg1: i32) -> (i32, i32) {
    %c0_i32 = arith.constant 0 : i32
    %c0_i32_0 = arith.constant 0 : i32
    return %c0_i32, %arg1 : i32, i32
  }
  func.func @transform_7(%arg0: i32, %arg1: i32) -> (i32, i32, i32) {
    %c0_i32 = arith.constant 0 : i32
    %c0_i32_0 = arith.constant 0 : i32
    %c0_i32_1 = arith.constant 0 : i32
    return %arg1, %c0_i32, %c0_i32_0 : i32, i32, i32
  }
  func.func @transform_8(%arg0: i32, %arg1: i32) -> (i32, i32, i32) {
    %c0_i32 = arith.constant 0 : i32
    %c0_i32_0 = arith.constant 0 : i32
    %c0_i32_1 = arith.constant 0 : i32
    return %arg1, %c0_i32, %c0_i32_0 : i32, i32, i32
  }
  func.func @transform_9(%arg0: i32, %arg1: i32) -> (i32, i32, i32) {
    %c0_i32 = arith.constant 0 : i32
    %c0_i32_0 = arith.constant 0 : i32
    return %arg0, %c0_i32, %arg1 : i32, i32, i32
  }
}

module attributes {stable_mosaic.version = 11 : i64} {
  func.func @_mm_res_ln_kernel(%arg0: i32, %arg1: i32, %arg2: memref<24x64xbf16, #tpu.memory_space<vmem>>, %arg3: memref<64x32xbf16, #tpu.memory_space<vmem>>, %arg4: memref<1x32xf32, #tpu.memory_space<vmem>>, %arg5: memref<24x32xbf16, #tpu.memory_space<vmem>>, %arg6: memref<1x32xf32, #tpu.memory_space<vmem>>, %arg7: memref<1x32xf32, #tpu.memory_space<vmem>>, %arg8: memref<24x32xf32, #tpu.memory_space<vmem>>, %arg9: memref<24x32xf32, #tpu.memory_space<vmem>>) attributes {dimension_semantics = [#tpu.dimension_semantics<parallel>, #tpu.dimension_semantics<arbitrary>], iteration_bounds = array<i64: 1, 1>, scalar_prefetch = 0 : i64, scratch_operands = 1 : i64, tpu.core_type = #tpu.core_type<tc>, window_params = [{transform_indices = @transform_0, window_bounds = array<i64: 24, 64>}, {transform_indices = @transform_1, window_bounds = array<i64: 64, 32>}, {pipeline_mode = #tpu.pipeline_mode<synchronous>, transform_indices = @transform_2, window_bounds = array<i64: 1, 32>}, {transform_indices = @transform_3, window_bounds = array<i64: 24, 32>}, {pipeline_mode = #tpu.pipeline_mode<synchronous>, transform_indices = @transform_4, window_bounds = array<i64: 1, 32>}, {pipeline_mode = #tpu.pipeline_mode<synchronous>, transform_indices = @transform_5, window_bounds = array<i64: 1, 32>}, {transform_indices = @transform_6, window_bounds = array<i64: 24, 32>}]} {
    %c0_i32 = arith.constant 0 : i32
    %0 = arith.cmpi eq, %arg1, %c0_i32 : i32
    %1 = arith.extui %0 : i1 to i32
    %c0_i32_0 = arith.constant 0 : i32
    %2 = arith.cmpi ne, %1, %c0_i32_0 : i32
    scf.if %2 {
      %cst_10 = arith.constant 0.000000e+00 : f32
      %12 = vector.broadcast %cst_10 : f32 to vector<24x32xf32>
      %c0_11 = arith.constant 0 : index
      %c0_12 = arith.constant 0 : index
      %13 = vector.load %arg9[%c0_11, %c0_12] : memref<24x32xf32, #tpu.memory_space<vmem>>, vector<24x32xf32>
      tpu.vector_store %arg9[%c0_11, %c0_12], %12 {strides = array<i32>} : memref<24x32xf32, #tpu.memory_space<vmem>>, vector<24x32xf32>,
    } else {
    }
    %c0 = arith.constant 0 : index
    %c0_1 = arith.constant 0 : index
    %3 = vector.load %arg9[%c0, %c0_1] : memref<24x32xf32, #tpu.memory_space<vmem>>, vector<24x32xf32>
    %c0_2 = arith.constant 0 : index
    %c0_3 = arith.constant 0 : index
    %4 = vector.load %arg2[%c0_2, %c0_3] : memref<24x64xbf16, #tpu.memory_space<vmem>>, vector<24x64xbf16>
    %c0_4 = arith.constant 0 : index
    %c0_5 = arith.constant 0 : index
    %5 = vector.load %arg3[%c0_4, %c0_5] : memref<64x32xbf16, #tpu.memory_space<vmem>>, vector<64x32xbf16>
    %cst = arith.constant dense<0.000000e+00> : vector<24x32xf32>
    %6 = tpu.matmul %4, %5, %cst {dimension_numbers = #tpu.dot_dimension_numbers<[1], [0], [0], [1], [0, 0, 1, 1], [], []>} : vector<24x64xbf16>, vector<64x32xbf16>, vector<24x32xf32> -> vector<24x32xf32>
    %7 = arith.addf %3, %6 : vector<24x32xf32>
    %c0_6 = arith.constant 0 : index
    %c0_7 = arith.constant 0 : index
    %8 = vector.load %arg9[%c0_6, %c0_7] : memref<24x32xf32, #tpu.memory_space<vmem>>, vector<24x32xf32>
    tpu.vector_store %arg9[%c0_6, %c0_7], %7 {strides = array<i32>} : memref<24x32xf32, #tpu.memory_space<vmem>>, vector<24x32xf32>,
    %c0_i32_8 = arith.constant 0 : i32
    %9 = arith.cmpi eq, %arg1, %c0_i32_8 : i32
    %10 = arith.extui %9 : i1 to i32
    %c0_i32_9 = arith.constant 0 : i32
    %11 = arith.cmpi ne, %10, %c0_i32_9 : i32
    scf.if %11 {
      %c0_10 = arith.constant 0 : index
      %c0_11 = arith.constant 0 : index
      %12 = vector.load %arg9[%c0_10, %c0_11] : memref<24x32xf32, #tpu.memory_space<vmem>>, vector<24x32xf32>
      %c0_12 = arith.constant 0 : index
      %c0_13 = arith.constant 0 : index
      %13 = vector.load %arg5[%c0_12, %c0_13] : memref<24x32xbf16, #tpu.memory_space<vmem>>, vector<24x32xbf16>
      %14 = arith.extf %13 : vector<24x32xbf16> to vector<24x32xf32>
      %15 = arith.addf %12, %14 : vector<24x32xf32>
      %c0_14 = arith.constant 0 : index
      %c0_15 = arith.constant 0 : index
      %16 = vector.load %arg4[%c0_14, %c0_15] : memref<1x32xf32, #tpu.memory_space<vmem>>, vector<1x32xf32>
      %17 = vector.broadcast %16 : vector<1x32xf32> to vector<24x32xf32>
      %18 = arith.addf %15, %17 : vector<24x32xf32>
      %cst_16 = arith.constant dense<0.000000e+00> : vector<24xf32>
      %19 = vector.multi_reduction <add>, %18, %cst_16 [1] : vector<24x32xf32> to vector<24xf32>
      %20 = vector.shape_cast %19 : vector<24xf32> to vector<24x1xf32>
      %cst_17 = arith.constant 3.200000e+01 : f32
      %21 = vector.broadcast %cst_17 : f32 to vector<24x1xf32>
      %22 = arith.divf %20, %21 : vector<24x1xf32>
      %23 = vector.broadcast %22 : vector<24x1xf32> to vector<24x32xf32>
      %24 = arith.subf %18, %23 : vector<24x32xf32>
      %25 = arith.mulf %24, %24 : vector<24x32xf32>
      %cst_18 = arith.constant dense<0.000000e+00> : vector<24xf32>
      %26 = vector.multi_reduction <add>, %25, %cst_18 [1] : vector<24x32xf32> to vector<24xf32>
      %27 = vector.shape_cast %26 : vector<24xf32> to vector<24x1xf32>
      %cst_19 = arith.constant 3.200000e+01 : f32
      %28 = vector.broadcast %cst_19 : f32 to vector<24x1xf32>
      %29 = arith.divf %27, %28 : vector<24x1xf32>
      %30 = vector.broadcast %22 : vector<24x1xf32> to vector<24x32xf32>
      %31 = arith.subf %18, %30 : vector<24x32xf32>
      %cst_20 = arith.constant 9.99999996E-13 : f32
      %32 = vector.broadcast %cst_20 : f32 to vector<24x1xf32>
      %33 = arith.addf %29, %32 : vector<24x1xf32>
      %34 = math.rsqrt %33 : vector<24x1xf32>
      %35 = vector.broadcast %34 : vector<24x1xf32> to vector<24x32xf32>
      %36 = arith.mulf %31, %35 : vector<24x32xf32>
      %c0_21 = arith.constant 0 : index
      %c0_22 = arith.constant 0 : index
      %37 = vector.load %arg6[%c0_21, %c0_22] : memref<1x32xf32, #tpu.memory_space<vmem>>, vector<1x32xf32>
      %38 = vector.broadcast %37 : vector<1x32xf32> to vector<24x32xf32>
      %39 = arith.mulf %36, %38 : vector<24x32xf32>
      %c0_23 = arith.constant 0 : index
      %c0_24 = arith.constant 0 : index
      %40 = vector.load %arg7[%c0_23, %c0_24] : memref<1x32xf32, #tpu.memory_space<vmem>>, vector<1x32xf32>
      %41 = vector.broadcast %40 : vector<1x32xf32> to vector<24x32xf32>
      %42 = arith.addf %39, %41 : vector<24x32xf32>
      %c0_25 = arith.constant 0 : index
      %c0_26 = arith.constant 0 : index
      %43 = vector.load %arg8[%c0_25, %c0_26] : memref<24x32xf32, #tpu.memory_space<vmem>>, vector<24x32xf32>
      tpu.vector_store %arg8[%c0_25, %c0_26], %42 {strides = array<i32>} : memref<24x32xf32, #tpu.memory_space<vmem>>, vector<24x32xf32>,
    } else {
    }
    return
  }
  func.func @transform_0(%arg0: i32, %arg1: i32) -> (i32, i32) {
    %c0_i32 = arith.constant 0 : i32
    return %arg0, %arg1 : i32, i32
  }
  func.func @transform_1(%arg0: i32, %arg1: i32) -> (i32, i32) {
    %c0_i32 = arith.constant 0 : i32
    %c0_i32_0 = arith.constant 0 : i32
    return %arg1, %c0_i32 : i32, i32
  }
  func.func @transform_2(%arg0: i32, %arg1: i32) -> (i32, i32) {
    %c0_i32 = arith.constant 0 : i32
    %c0_i32_0 = arith.constant 0 : i32
    %c0_i32_1 = arith.constant 0 : i32
    return %c0_i32, %c0_i32_0 : i32, i32
  }
  func.func @transform_3(%arg0: i32, %arg1: i32) -> (i32, i32) {
    %c0_i32 = arith.constant 0 : i32
    %c0_i32_0 = arith.constant 0 : i32
    return %arg0, %c0_i32 : i32, i32
  }
  func.func @transform_4(%arg0: i32, %arg1: i32) -> (i32, i32) {
    %c0_i32 = arith.constant 0 : i32
    %c0_i32_0 = arith.constant 0 : i32
    %c0_i32_1 = arith.constant 0 : i32
    return %c0_i32, %c0_i32_0 : i32, i32
  }
  func.func @transform_5(%arg0: i32, %arg1: i32) -> (i32, i32) {
    %c0_i32 = arith.constant 0 : i32
    %c0_i32_0 = arith.constant 0 : i32
    %c0_i32_1 = arith.constant 0 : i32
    return %c0_i32, %c0_i32_0 : i32, i32
  }
  func.func @transform_6(%arg0: i32, %arg1: i32) -> (i32, i32) {
    %c0_i32 = arith.constant 0 : i32
    %c0_i32_0 = arith.constant 0 : i32
    return %arg0, %c0_i32 : i32, i32
  }
}

</mosaic_0001>

<llo_original>
// kernel: transformer_xl_layer.10
$region0: #{transformer_xl_layer.10}
  #allocation0 [shape = 'u32[]', space=smem, size = 0x4, offset = 0x4, fixed_abs, tag = 'smem constant byte address 0x4 - core index']
  #allocation1 [shape = 'u32[72,128]{1,0:T(1,128)}', space=vmem, size = 0x9000, scoped, tag = 'internal scratch']
  #allocation2 [shape = 'f32[24,32]{1,0:T(8,128)}', space=vmem, size = 0x3000, scoped, tag = 'scratch operand']
  %s0 = inlined_call_operand.vmem [shape: bf16[24,32], index: 0, kind: input, shape index: {}]
  %s1 = inlined_call_operand.vmem [shape: bf16[32,32], index: 1, kind: input, shape index: {}]
  %s2 = inlined_call_operand.vmem [shape: bf16[24,32], index: 2, kind: output, shape index: {}]
  %s3 = sld [smem:[#allocation0]]
  $region26: #{transformer_xl_layer.10} parent=0
    _
  %s5 = ssub.s32 1, %s3
  %s6 = scalar_select 0, %s5, %s3
  // Predicated region
  $region2: #{transformer_xl_layer.10} parent=0 // pred_check
    _
  $region3: #{transformer_xl_layer.10} parent=0 // pred_check_branch
    %8 = sbr.rel (0) target = $region5
  $region4: #{transformer_xl_layer.10} parent=0 // pred_region
    _
  $region5: #{transformer_xl_layer.10} parent=0 // pred_fallthru
    _
  // Predicated region
  $region6: #{transformer_xl_layer.10} parent=0 // pred_check
    _
  $region7: #{transformer_xl_layer.10} parent=0 // pred_check_branch
    %10 = sbr.rel (0) target = $region9
  $region8: #{transformer_xl_layer.10} parent=0 // pred_region
    _
  $region9: #{transformer_xl_layer.10} parent=0 // pred_fallthru
    _
  %p12 = scmp.eq.s32.totalorder 0, 0
  // Predicated region
  $region10: #{transformer_xl_layer.10} parent=0 // pred_check
    %p13 = pneg %p12
  $region11: #{transformer_xl_layer.10} parent=0 // pred_check_branch
    %15 = sbr.rel (%p13) target = $region13
  $region12: #{transformer_xl_layer.10} parent=0 // pred_region
    %vm16 = vcmask 261120
    %17 = vst.msk [vmem:[#allocation2] sm:$0xff] %vm16, 0.0
    %18 = vst.msk [vmem:[#allocation2 + $0x8] sm:$0xff] %vm16, 0.0
    %19 = vst.msk [vmem:[#allocation2 + $0x10] sm:$0xff] %vm16, 0.0
  $region13: #{transformer_xl_layer.10} parent=0 // pred_fallthru
    _
  %v20 = vld [vmem:[#allocation2] sm:$0xff]
  %v21 = vld [vmem:[#allocation2 + $0x8] sm:$0xff]
  %v22 = vld [vmem:[#allocation2 + $0x10] sm:$0xff]
  %v23 = vld [vmem:[%s0] sm:$0xf]
  %v24 = vld [vmem:[%s0 + $0x4] sm:$0xf]
  %v25 = vld [vmem:[%s0 + $0x8] sm:$0xf]
  %v26 = vld [vmem:[%s1] sm:$0xf]
  %v27 = vld [vmem:[%s1 + $0x4] sm:$0xf]
  %v28 = vld [vmem:[%s1 + $0x8] sm:$0xf]
  %v29 = vld [vmem:[%s1 + $0xc] sm:$0xf]
  %v33 = vunpack.c.l.b16 %v23
  %v34 = vunpack.c.l.b16 %v24
  %v35 = vunpack.c.l.b16 %v25
  %v36 = vpack.c.b16 %v34, %v33
  %v37 = vpack.c.b16 %v35, %v35
  %v42 = vunpack.c.l.b16 %v26
  %v43 = vunpack.c.l.b16 %v27
  %v44 = vunpack.c.l.b16 %v28
  %v45 = vunpack.c.l.b16 %v29
  %v46 = vpack.c.b16 %v43, %v42
  %v47 = vpack.c.b16 %v45, %v44
  %vm50 = vcmask 261120
  %v52 = vsel %vm50, %v36, 0
  %v55 = vsel %vm50, %v37, 0
  %57 = vmatpush.bf16.msra.mxu0 0
  %58 = vmatpush.bf16.msra.mxu0 0
  %59 = vmatpush.bf16.msra.mxu0 0
  %60 = vmatpush.bf16.msra.mxu0 0
  %61 = vmatpush.bf16.msra.mxu0 0
  %62 = vmatpush.bf16.msra.mxu0 0
  %63 = vmatpush.bf16.msra.mxu0 %v47
  %64 = vmatpush.bf16.msra.mxu0 %v46
  %65 = vmatmul.bf16.gmra.mxu0 %v52
  %v66 = vpop.f32.mrf.mxu0
  %v67 = vadd.f32 0.0, %v66
  %v68 = vpop.f32.mrf.mxu0
  %v69 = vadd.f32 0.0, %v68
  %70 = vmatmul.bf16.gmra.mxu0 %v55
  %v71 = vpop.f32.mrf.mxu0
  %v72 = vadd.f32 0.0, %v71
  %v73 = vpop.f32.mrf.mxu0
  %74 = vdwg.mxu0
  %v75 = vadd.f32 %v20, %v67
  %v76 = vadd.f32 %v21, %v69
  %v77 = vadd.f32 %v22, %v72
  %78 = vst.msk [vmem:[#allocation2] sm:$0xff] %vm50, %v75
  %79 = vst.msk [vmem:[#allocation2 + $0x8] sm:$0xff] %vm50, %v76
  %80 = vst.msk [vmem:[#allocation2 + $0x10] sm:$0xff] %vm50, %v77
  // Predicated region
  $region14: #{transformer_xl_layer.10} parent=0 // pred_check
    %p81 = pneg %p12
  $region15: #{transformer_xl_layer.10} parent=0 // pred_check_branch
    %83 = sbr.rel (%p81) target = $region17
  $region16: #{transformer_xl_layer.10} parent=0 // pred_region
    %v84 = vld [vmem:[#allocation2] sm:$0xff]
    %v85 = vld [vmem:[#allocation2 + $0x8] sm:$0xff]
    %v86 = vld [vmem:[#allocation2 + $0x10] sm:$0xff]
    %v87 = vpack.c.bf16 %v84, %v84
    %v88 = vpack.c.bf16 %v85, %v85
    %v89 = vpack.c.bf16 %v86, %v86
    %vm90 = vcmask 257024
    %91 = vst.msk [vmem:[%s2] sm:$0xf] %vm90, %v87
    %92 = vst.msk [vmem:[%s2 + $0x4] sm:$0xf] %vm90, %v88
    %93 = vst.msk [vmem:[%s2 + $0x8] sm:$0xf] %vm90, %v89
  $region17: #{transformer_xl_layer.10} parent=0 // pred_fallthru
    _
  // Predicated region
  $region18: #{transformer_xl_layer.10} parent=0 // pred_check
    _
  $region19: #{transformer_xl_layer.10} parent=0 // pred_check_branch
    %95 = sbr.rel (0) target = $region21
  $region20: #{transformer_xl_layer.10} parent=0 // pred_region
    _
  $region21: #{transformer_xl_layer.10} parent=0 // pred_fallthru
    _
  // Predicated region
  $region22: #{transformer_xl_layer.10} parent=0 // pred_check
    _
  $region23: #{transformer_xl_layer.10} parent=0 // pred_check_branch
    %97 = sbr.rel (0) target = $region25
  $region24: #{transformer_xl_layer.10} parent=0 // pred_region
    _
  $region25: #{transformer_xl_layer.10} parent=0 // pred_fallthru
    _

// kernel: transformer_xl_layer.11
$region0: #{transformer_xl_layer.11}
  #allocation0 [shape = 'u32[]', space=smem, size = 0x4, offset = 0x4, fixed_abs, tag = 'smem constant byte address 0x4 - core index']
  #allocation1 [shape = 'u32[72,128]{1,0:T(1,128)}', space=vmem, size = 0x9000, scoped, tag = 'internal scratch']
  #allocation2 [shape = 'f32[32,64]{1,0:T(8,128)}', space=vmem, size = 0x4000, scoped, tag = 'scratch operand']
  %s0 = inlined_call_operand.vmem [shape: bf16[32,32], index: 0, kind: input, shape index: {}]
  %s1 = inlined_call_operand.vmem [shape: bf16[32,64], index: 1, kind: input, shape index: {}]
  %s2 = inlined_call_operand.vmem [shape: bf16[32,64], index: 2, kind: output, shape index: {}]
  %s3 = sld [smem:[#allocation0]]
  $region26: #{transformer_xl_layer.11} parent=0
    _
  %s5 = ssub.s32 1, %s3
  %s6 = scalar_select 0, %s5, %s3
  // Predicated region
  $region2: #{transformer_xl_layer.11} parent=0 // pred_check
    _
  $region3: #{transformer_xl_layer.11} parent=0 // pred_check_branch
    %8 = sbr.rel (0) target = $region5
  $region4: #{transformer_xl_layer.11} parent=0 // pred_region
    _
  $region5: #{transformer_xl_layer.11} parent=0 // pred_fallthru
    _
  // Predicated region
  $region6: #{transformer_xl_layer.11} parent=0 // pred_check
    _
  $region7: #{transformer_xl_layer.11} parent=0 // pred_check_branch
    %10 = sbr.rel (0) target = $region9
  $region8: #{transformer_xl_layer.11} parent=0 // pred_region
    _
  $region9: #{transformer_xl_layer.11} parent=0 // pred_fallthru
    _
  %p12 = scmp.eq.s32.totalorder 0, 0
  // Predicated region
  $region10: #{transformer_xl_layer.11} parent=0 // pred_check
    %p13 = pneg %p12
  $region11: #{transformer_xl_layer.11} parent=0 // pred_check_branch
    %15 = sbr.rel (%p13) target = $region13
  $region12: #{transformer_xl_layer.11} parent=0 // pred_region
    %vm16 = vcmask 523264
    %17 = vst.msk [vmem:[#allocation2] sm:$0xff] %vm16, 0.0
    %18 = vst.msk [vmem:[#allocation2 + $0x8] sm:$0xff] %vm16, 0.0
    %19 = vst.msk [vmem:[#allocation2 + $0x10] sm:$0xff] %vm16, 0.0
    %20 = vst.msk [vmem:[#allocation2 + $0x18] sm:$0xff] %vm16, 0.0
  $region13: #{transformer_xl_layer.11} parent=0 // pred_fallthru
    _
  %v21 = vld [vmem:[#allocation2] sm:$0xff]
  %v22 = vld [vmem:[#allocation2 + $0x8] sm:$0xff]
  %v23 = vld [vmem:[#allocation2 + $0x10] sm:$0xff]
  %v24 = vld [vmem:[#allocation2 + $0x18] sm:$0xff]
  %v25 = vld [vmem:[%s0] sm:$0xf]
  %v26 = vld [vmem:[%s0 + $0x4] sm:$0xf]
  %v27 = vld [vmem:[%s0 + $0x8] sm:$0xf]
  %v28 = vld [vmem:[%s0 + $0xc] sm:$0xf]
  %v29 = vld [vmem:[%s1] sm:$0xf]
  %v30 = vld [vmem:[%s1 + $0x4] sm:$0xf]
  %v31 = vld [vmem:[%s1 + $0x8] sm:$0xf]
  %v32 = vld [vmem:[%s1 + $0xc] sm:$0xf]
  %v37 = vunpack.c.l.b16 %v25
  %v38 = vunpack.c.l.b16 %v26
  %v39 = vunpack.c.l.b16 %v27
  %v40 = vunpack.c.l.b16 %v28
  %v41 = vpack.c.b16 %v38, %v37
  %v42 = vpack.c.b16 %v40, %v39
  %v47 = vunpack.c.l.b16 %v29
  %v48 = vunpack.c.l.b16 %v30
  %v49 = vunpack.c.l.b16 %v31
  %v50 = vunpack.c.l.b16 %v32
  %v51 = vpack.c.b16 %v48, %v47
  %v52 = vpack.c.b16 %v50, %v49
  %vm55 = vcmask 261120
  %v57 = vsel %vm55, %v41, 0
  %v60 = vsel %vm55, %v42, 0
  %62 = vmatpush.bf16.msra.mxu0 0
  %63 = vmatpush.bf16.msra.mxu0 0
  %64 = vmatpush.bf16.msra.mxu0 0
  %65 = vmatpush.bf16.msra.mxu0 0
  %66 = vmatpush.bf16.msra.mxu0 0
  %67 = vmatpush.bf16.msra.mxu0 0
  %68 = vmatpush.bf16.msra.mxu0 %v52
  %69 = vmatpush.bf16.msra.mxu0 %v51
  %70 = vmatmul.bf16.gmra.mxu0 %v57
  %v71 = vpop.f32.mrf.mxu0
  %v72 = vadd.f32 0.0, %v71
  %v73 = vpop.f32.mrf.mxu0
  %v74 = vadd.f32 0.0, %v73
  %75 = vmatmul.bf16.gmra.mxu0 %v60
  %v76 = vpop.f32.mrf.mxu0
  %v77 = vadd.f32 0.0, %v76
  %v78 = vpop.f32.mrf.mxu0
  %v79 = vadd.f32 0.0, %v78
  %80 = vdwg.mxu0
  %v81 = vadd.f32 %v21, %v72
  %v82 = vadd.f32 %v22, %v74
  %v83 = vadd.f32 %v23, %v77
  %v84 = vadd.f32 %v24, %v79
  %vm85 = vcmask 523264
  %86 = vst.msk [vmem:[#allocation2] sm:$0xff] %vm85, %v81
  %87 = vst.msk [vmem:[#allocation2 + $0x8] sm:$0xff] %vm85, %v82
  %88 = vst.msk [vmem:[#allocation2 + $0x10] sm:$0xff] %vm85, %v83
  %89 = vst.msk [vmem:[#allocation2 + $0x18] sm:$0xff] %vm85, %v84
  // Predicated region
  $region14: #{transformer_xl_layer.11} parent=0 // pred_check
    %p90 = pneg %p12
  $region15: #{transformer_xl_layer.11} parent=0 // pred_check_branch
    %92 = sbr.rel (%p90) target = $region17
  $region16: #{transformer_xl_layer.11} parent=0 // pred_region
    %v93 = vld [vmem:[#allocation2] sm:$0xff]
    %v94 = vld [vmem:[#allocation2 + $0x8] sm:$0xff]
    %v95 = vld [vmem:[#allocation2 + $0x10] sm:$0xff]
    %v96 = vld [vmem:[#allocation2 + $0x18] sm:$0xff]
    %v97 = vpack.c.bf16 %v93, %v93
    %v98 = vpack.c.bf16 %v94, %v94
    %v99 = vpack.c.bf16 %v95, %v95
    %v100 = vpack.c.bf16 %v96, %v96
    %vm101 = vcmask 519168
    %102 = vst.msk [vmem:[%s2] sm:$0xf] %vm101, %v97
    %103 = vst.msk [vmem:[%s2 + $0x4] sm:$0xf] %vm101, %v98
    %104 = vst.msk [vmem:[%s2 + $0x8] sm:$0xf] %vm101, %v99
    %105 = vst.msk [vmem:[%s2 + $0xc] sm:$0xf] %vm101, %v100
  $region17: #{transformer_xl_layer.11} parent=0 // pred_fallthru
    _
  // Predicated region
  $region18: #{transformer_xl_layer.11} parent=0 // pred_check
    _
  $region19: #{transformer_xl_layer.11} parent=0 // pred_check_branch
    %107 = sbr.rel (0) target = $region21
  $region20: #{transformer_xl_layer.11} parent=0 // pred_region
    _
  $region21: #{transformer_xl_layer.11} parent=0 // pred_fallthru
    _
  // Predicated region
  $region22: #{transformer_xl_layer.11} parent=0 // pred_check
    _
  $region23: #{transformer_xl_layer.11} parent=0 // pred_check_branch
    %109 = sbr.rel (0) target = $region25
  $region24: #{transformer_xl_layer.11} parent=0 // pred_region
    _
  $region25: #{transformer_xl_layer.11} parent=0 // pred_fallthru
    _

// kernel: transformer_xl_layer.15
$region0: #{transformer_xl_layer.15}
  #allocation0 [shape = 'u32[]', space=smem, size = 0x4, offset = 0x4, fixed_abs, tag = 'smem constant byte address 0x4 - core index']
  #allocation1 [shape = 'u32[72,128]{1,0:T(1,128)}', space=vmem, size = 0x9000, scoped, tag = 'internal scratch']
  %s0 = inlined_call_operand.vmem [shape: bf16[2,8,32], index: 0, kind: input, shape index: {}]
  %s1 = inlined_call_operand.vmem [shape: f32[1,32], index: 1, kind: input, shape index: {}]
  %s2 = inlined_call_operand.vmem [shape: bf16[24,32], index: 2, kind: input, shape index: {}]
  %s3 = inlined_call_operand.vmem [shape: bf16[2,4,8,24], index: 3, kind: output, shape index: {}]
  %s4 = sld [smem:[#allocation0]]
  $region45: #{transformer_xl_layer.15} parent=0
    _
  %s6 = ssub.s32 1, %s4
  %s7 = scalar_select 0, %s6, %s4
  loop: start=0, step=1, limit=4
  $region2: #{transformer_xl_layer.15} parent=0 // loop_pre_header
    _
  $region3: #{transformer_xl_layer.15} parent=0 // loop_header
    %s9 = sphi 0, %s13
    %p10 = scmp.ge.s32.totalorder %s9, 4
    %s16 = sphi 0, %s28
    %s17 = sphi 0, %s24
    %s18 = sphi 0, %s16
    %s19 = sphi 0, %s17
    %s20 = sphi 0, %s18
    %s21 = sphi 0, %s19
    %s33 = sphi 0, %s35
    %s36 = sphi 0, %s33
    %s37 = sphi 0, %s36
    %s53 = sphi 0, %s37
    %s59 = sphi 0, %s61
    %s62 = sphi 0, %s59
    %s63 = sphi 0, %s62
    %s79 = sphi 0, %s63
    %s85 = sphi 0, %s87
    %s88 = sphi 0, %s85
    %s89 = sphi 0, %s88
    %s105 = sphi 0, %s89
    %s113 = sphi 0, %s115
    %s116 = sphi 0, %s113
    %s117 = sphi 0, %s116
    %s133 = sphi 0, %s117
  $region4: #{transformer_xl_layer.15} parent=0 // loop_header_branch
    %12 = sbr.rel (%p10) target = $region8
  $region5: #{transformer_xl_layer.15} parent=0 // loop_body
    %s14 = ssub.s32 %s9, 1
    %s15 = ssub.s32 %s9, 2
    %s22 = sadd.s32 1, %s17
    %p23 = scmp.ge.s32.totalorder %s22, 1
    %s24 = scalar_select %p23, 0, %s22
    %s25 = sadd.s32 1, %s16
    %s26 = scalar_select %p23, %s25, %s16
    %p27 = scmp.ge.s32.totalorder %s26, 2
    %s28 = scalar_select %p27, 0, %s26
    %s29 = ssub.s32 %s16, %s28
    %s30 = ssub.s32 %s17, %s24
    %s31 = sor.u32 %s29, %s30
    %p32 = scmp.eq.s32.totalorder %s31, 0
    %s34 = sadd.s32 %s33, 1
    %s35 = scalar_select %p32, %s33, %s34
    %p38 = pneg %p32
    %p39 = scmp.eq.s32.totalorder %s9, 1
    %p40 = por %p38, %p39
    %p41 = scmp.ne.s32.totalorder %s33, %s36
    %p42 = scmp.eq.s32.totalorder %s9, 0
    %p43 = por %p41, %p42
    %p44 = scmp.ne.s32.totalorder %s33, %s36
    %p45 = scmp.eq.s32.totalorder %s14, 1
    %p46 = por %p44, %p45
    %p47 = scmp.ne.s32.totalorder %s36, %s37
    %p48 = scmp.eq.s32.totalorder %s14, 0
    %p49 = por %p47, %p48
    %p50 = scmp.ne.s32.totalorder %s36, %s37
    %p51 = scmp.eq.s32.totalorder %s15, 1
    %p52 = por %p50, %p51
    %p54 = scmp.ne.s32.totalorder %s37, %s53
    %p55 = scmp.eq.s32.totalorder %s15, 0
    %p56 = por %p54, %p55
    %s57 = ssub.s32 %s17, %s24
    %p58 = scmp.eq.s32.totalorder %s57, 0
    %s60 = sadd.s32 %s59, 1
    %s61 = scalar_select %p58, %s59, %s60
    %p64 = pneg %p58
    %p65 = scmp.eq.s32.totalorder %s9, 1
    %p66 = por %p64, %p65
    %p67 = scmp.ne.s32.totalorder %s59, %s62
    %p68 = scmp.eq.s32.totalorder %s9, 0
    %p69 = por %p67, %p68
    %p70 = scmp.ne.s32.totalorder %s59, %s62
    %p71 = scmp.eq.s32.totalorder %s14, 1
    %p72 = por %p70, %p71
    %p73 = scmp.ne.s32.totalorder %s62, %s63
    %p74 = scmp.eq.s32.totalorder %s14, 0
    %p75 = por %p73, %p74
    %p76 = scmp.ne.s32.totalorder %s62, %s63
    %p77 = scmp.eq.s32.totalorder %s15, 1
    %p78 = por %p76, %p77
    %p80 = scmp.ne.s32.totalorder %s63, %s79
    %p81 = scmp.eq.s32.totalorder %s15, 0
    %p82 = por %p80, %p81
    %s83 = ssub.s32 %s17, %s24
    %p84 = scmp.eq.s32.totalorder %s83, 0
    %s86 = sadd.s32 %s85, 1
    %s87 = scalar_select %p84, %s85, %s86
    %p90 = pneg %p84
    %p91 = scmp.eq.s32.totalorder %s9, 1
    %p92 = por %p90, %p91
    %p93 = scmp.ne.s32.totalorder %s85, %s88
    %p94 = scmp.eq.s32.totalorder %s9, 0
    %p95 = por %p93, %p94
    %p96 = scmp.ne.s32.totalorder %s85, %s88
    %p97 = scmp.eq.s32.totalorder %s14, 1
    %p98 = por %p96, %p97
    %p99 = scmp.ne.s32.totalorder %s88, %s89
    %p100 = scmp.eq.s32.totalorder %s14, 0
    %p101 = por %p99, %p100
    %p102 = scmp.ne.s32.totalorder %s88, %s89
    %p103 = scmp.eq.s32.totalorder %s15, 1
    %p104 = por %p102, %p103
    %p106 = scmp.ne.s32.totalorder %s89, %s105
    %p107 = scmp.eq.s32.totalorder %s15, 0
    %p108 = por %p106, %p107
    %s109 = ssub.s32 %s16, %s28
    %s110 = ssub.s32 %s17, %s24
    %s111 = sor.u32 %s109, %s110
    %p112 = scmp.eq.s32.totalorder %s111, 0
    %s114 = sadd.s32 %s113, 1
    %s115 = scalar_select %p112, %s113, %s114
    %p118 = pneg %p112
    %p119 = scmp.eq.s32.totalorder %s9, 1
    %p120 = por %p118, %p119
    %p121 = scmp.ne.s32.totalorder %s113, %s116
    %p122 = scmp.eq.s32.totalorder %s9, 0
    %p123 = por %p121, %p122
    %p124 = scmp.ne.s32.totalorder %s113, %s116
    %p125 = scmp.eq.s32.totalorder %s14, 1
    %p126 = por %p124, %p125
    %p127 = scmp.ne.s32.totalorder %s116, %s117
    %p128 = scmp.eq.s32.totalorder %s14, 0
    %p129 = por %p127, %p128
    %p130 = scmp.ne.s32.totalorder %s116, %s117
    %p131 = scmp.eq.s32.totalorder %s15, 1
    %p132 = por %p130, %p131
    %p134 = scmp.ne.s32.totalorder %s117, %s133
    %p135 = scmp.eq.s32.totalorder %s15, 0
    %p136 = por %p134, %p135
    %p137 = scmp.le.s32.totalorder 1, %s9
    %p138 = scmp.lt.s32.totalorder %s9, 3
    %p139 = pnand %p137, %p138
    %p140 = pneg %p139
    // Predicated region
    $region9: #{transformer_xl_layer.15} parent=5 // pred_check
      _
    $region10: #{transformer_xl_layer.15} parent=5 // pred_check_branch
      %142 = sbr.rel (%p139) target = $region12
    $region11: #{transformer_xl_layer.15} parent=5 // pred_region
      %s143 = ssub.s32 %s9, 1
      // Predicated region
      $region13: #{transformer_xl_layer.15} parent=11 // pred_check
        %p144 = pneg %p75
      $region14: #{transformer_xl_layer.15} parent=11 // pred_check_branch
        %146 = sbr.rel (%p144) target = $region16
      $region15: #{transformer_xl_layer.15} parent=11 // pred_region
        %p147 = scmp.lt.s32.totalorder %s19, 0
        %s148 = scalar_select %p147, %s19, 0
        %s149 = scalar_lea.vmem %s1, %s148
      $region16: #{transformer_xl_layer.15} parent=11 // pred_fallthru
        _
      // Predicated region
      $region17: #{transformer_xl_layer.15} parent=11 // pred_check
        %p150 = pneg %p101
      $region18: #{transformer_xl_layer.15} parent=11 // pred_check_branch
        %152 = sbr.rel (%p150) target = $region20
      $region19: #{transformer_xl_layer.15} parent=11 // pred_region
        %p153 = scmp.lt.s32.totalorder %s19, 0
        %s154 = scalar_select %p153, %s19, 0
        %s155 = smul.addr %s154, 4
        %s156 = scalar_lea.vmem %s2, %s155
      $region20: #{transformer_xl_layer.15} parent=11 // pred_fallthru
        _
    $region12: #{transformer_xl_layer.15} parent=5 // pred_fallthru
      _
    %p157 = scmp.lt.s32.totalorder %s9, 2
    // Predicated region
    $region21: #{transformer_xl_layer.15} parent=5 // pred_check
      %p158 = pneg %p157
    $region22: #{transformer_xl_layer.15} parent=5 // pred_check_branch
      %160 = sbr.rel (%p158) target = $region24
    $region23: #{transformer_xl_layer.15} parent=5 // pred_region
      // Predicated region
      $region25: #{transformer_xl_layer.15} parent=23 // pred_check
        %p161 = pneg %p43
      $region26: #{transformer_xl_layer.15} parent=23 // pred_check_branch
        %163 = sbr.rel (%p161) target = $region28
      $region27: #{transformer_xl_layer.15} parent=23 // pred_region
        %p164 = scmp.lt.s32.totalorder %s16, 1
        %s165 = scalar_select %p164, %s16, 1
        %p166 = scmp.lt.s32.totalorder %s17, 0
        %s167 = scalar_select %p166, %s17, 0
        %s168 = sadd.s32 %s167, %s165
        %s169 = smul.addr %s168, 4
        %s170 = scalar_lea.vmem %s0, %s169
      $region28: #{transformer_xl_layer.15} parent=23 // pred_fallthru
        _
    $region24: #{transformer_xl_layer.15} parent=5 // pred_fallthru
      _
    %p171 = scmp.le.s32.totalorder 1, %s9
    %p172 = scmp.lt.s32.totalorder %s9, 3
    %p173 = pnand %p171, %p172
    %p174 = pneg %p173
    // Predicated region
    $region29: #{transformer_xl_layer.15} parent=5 // pred_check
      _
    $region30: #{transformer_xl_layer.15} parent=5 // pred_check_branch
      %176 = sbr.rel (%p173) target = $region32
    $region31: #{transformer_xl_layer.15} parent=5 // pred_region
      %s177 = ssub.s32 %s9, 1
      %p178 = scmp.lt.s32.totalorder %s18, 1
      %s179 = scalar_select %p178, %s18, 1
      %p180 = scmp.lt.s32.totalorder %s19, 0
      %s181 = scalar_select %p180, %s19, 0
      %s182 = sadd.s32 %s181, %s179
      %s183 = smul.addr %s182, 4
      %s184 = scalar_lea.vmem %s0, %s183
      %p185 = pneg %p49
      %p186 = pneg %p46
      %p187 = scmp.lt.s32.totalorder %s19, 0
      %s188 = scalar_select %p187, %s19, 0
      %s189 = scalar_lea.vmem %s1, %s188
      %p190 = pneg %p75
      %p191 = pneg %p72
      %p192 = scmp.lt.s32.totalorder %s19, 0
      %s193 = scalar_select %p192, %s19, 0
      %s194 = smul.addr %s193, 4
      %s195 = scalar_lea.vmem %s2, %s194
      %p196 = pneg %p101
      %p197 = pneg %p98
      %p198 = pneg %p129
      %p199 = pneg %p126
      %s200 = smul.u32 4, %s19
      %p201 = scmp.lt.s32.totalorder %s18, 1
      %s202 = scalar_select %p201, %s18, 1
      %p203 = scmp.lt.s32.totalorder %s200, 3
      %s204 = scalar_select %p203, %s200, 3
      %s205 = smul.addr %s202, 4
      %s206 = sadd.s32 %s204, %s205
      %s207 = smul.addr %s206, 4
      %s208 = scalar_lea.vmem %s3, %s207
      %p209 = scmp.lt.s32.totalorder %s18, 1
      %s210 = scalar_select %p209, %s18, 1
      %p211 = scmp.lt.s32.totalorder %s19, 0
      %s212 = scalar_select %p211, %s19, 0
      %s213 = sadd.s32 %s212, %s210
      %s214 = smul.addr %s213, 4
      %s215 = scalar_lea.vmem %s0, %s214
      %p216 = scmp.lt.s32.totalorder %s19, 0
      %s217 = scalar_select %p216, %s19, 0
      %s218 = scalar_lea.vmem %s1, %s217
      %p219 = scmp.lt.s32.totalorder %s19, 0
      %s220 = scalar_select %p219, %s19, 0
      %s221 = smul.addr %s220, 4
      %s222 = scalar_lea.vmem %s2, %s221
      %s223 = smul.u32 4, %s19
      %p224 = scmp.lt.s32.totalorder %s18, 1
      %s225 = scalar_select %p224, %s18, 1
      %p226 = scmp.lt.s32.totalorder %s223, 3
      %s227 = scalar_select %p226, %s223, 3
      %s228 = smul.addr %s225, 4
      %s229 = sadd.s32 %s227, %s228
      %s230 = smul.addr %s229, 4
      %s231 = scalar_lea.vmem %s3, %s230
      %s232 = smul.u32 4, %s19
      %v234 = vld [vmem:[%s215] sm:$0xf]
      %v235 = vunpack.c.l.bf16 %v234
      %v236 = vld [vmem:[%s218] sm:$0x1]
      %v238 = vperm.slane %v236, 0
      %v240 = vadd.f32 %v235, %v238
      %v241 = vpack.c.bf16 %v240, %v240
      %v242 = vld [vmem:[%s222] sm:$0xf]
      %v243 = vld [vmem:[%s222 + $0x4] sm:$0xf]
      %v244 = vld [vmem:[%s222 + $0x8] sm:$0xf]
      %v248 = vunpack.c.l.b16 %v242
      %v249 = vunpack.c.l.b16 %v243
      %v250 = vunpack.c.l.b16 %v244
      %v251 = vpack.c.b16 %v249, %v248
      %v252 = vpack.c.b16 %v250, %v250
      %vm253 = vcmask 64512
      %v255 = vsel %vm253, %v241, 0
      %v258 = vsel %vm253, %v251, 0
      %v261 = vsel %vm253, %v252, 0
      %263 = vmatpush.bf16.xpose.msra.mxu0 0
      %264 = vmatpush.bf16.xpose.msra.mxu0 0
      %265 = vmatpush.bf16.xpose.msra.mxu0 0
      %266 = vmatpush.bf16.xpose.msra.mxu0 0
      %267 = vmatpush.bf16.xpose.msra.mxu0 0
      %268 = vmatpush.bf16.xpose.msra.mxu0 0
      %269 = vmatpush.bf16.xpose.msra.mxu0 %v261
      %270 = vmatpush.bf16.xpose.msra.mxu0 %v258
      %271 = vmatmul.bf16.gmra.mxu0 %v255
      %v272 = vpop.f32.mrf.mxu0
      %v273 = vadd.f32 0.0, %v272
      %v274 = vpop.f32.mrf.mxu0
      %275 = vdwg.mxu0
      %v276 = vpack.c.bf16 %v273, %v273
      %vm277 = vcmask 191488
      %278 = vst.msk [vmem:[%s231] sm:$0xf] %vm277, %v276
      %v279 = vld [vmem:[%s222] sm:$0xf]
      %v280 = vld [vmem:[%s222 + $0x4] sm:$0xf]
      %v281 = vld [vmem:[%s222 + $0x8] sm:$0xf]
      %v283 = vunpack.c.l.b16 %v241
      %v284 = vpack.c.b16 %v283, %v283
      %285 = vrot.lane.b32.xlu0 %v284, 120
      %v286 = vpop.permute.xlu0 %285
      %v290 = vunpack.c.l.b16 %v279
      %v291 = vunpack.c.l.b16 %v280
      %v292 = vunpack.c.l.b16 %v281
      %v293 = vpack.c.b16 %v291, %v290
      %v294 = vpack.c.b16 %v292, %v292
      %295 = vrot.lane.b32.xlu0 %v293, 120
      %v296 = vpop.permute.xlu0 %295
      %297 = vrot.lane.b32.xlu0 %v294, 120
      %v298 = vpop.permute.xlu0 %297
      %v300 = vsel %vm253, %v286, 0
      %v303 = vsel %vm253, %v296, 0
      %v306 = vsel %vm253, %v298, 0
      %308 = vmatpush.bf16.xpose.msra.mxu0 0
      %309 = vmatpush.bf16.xpose.msra.mxu0 0
      %310 = vmatpush.bf16.xpose.msra.mxu0 0
      %311 = vmatpush.bf16.xpose.msra.mxu0 0
      %312 = vmatpush.bf16.xpose.msra.mxu0 0
      %313 = vmatpush.bf16.xpose.msra.mxu0 0
      %314 = vmatpush.bf16.xpose.msra.mxu0 %v306
      %315 = vmatpush.bf16.xpose.msra.mxu0 %v303
      %316 = vmatmul.bf16.gmra.mxu0 %v300
      %v317 = vpop.f32.mrf.mxu0
      %v318 = vadd.f32 0.0, %v317
      %v319 = vpop.f32.mrf.mxu0
      %320 = vdwg.mxu0
      %v321 = vpack.c.bf16 %v318, %v318
      %s322 = scalar_lea.vmem %s231, 4
      %323 = vst.msk [vmem:[%s322] sm:$0xf] %vm277, %v321
      %v324 = vld [vmem:[%s222] sm:$0xf]
      %v325 = vld [vmem:[%s222 + $0x4] sm:$0xf]
      %v326 = vld [vmem:[%s222 + $0x8] sm:$0xf]
      %327 = vrot.lane.b32.xlu0 %v284, 112
      %v328 = vpop.permute.xlu0 %327
      %v332 = vunpack.c.l.b16 %v324
      %v333 = vunpack.c.l.b16 %v325
      %v334 = vunpack.c.l.b16 %v326
      %v335 = vpack.c.b16 %v333, %v332
      %v336 = vpack.c.b16 %v334, %v334
      %337 = vrot.lane.b32.xlu0 %v335, 112
      %v338 = vpop.permute.xlu0 %337
      %339 = vrot.lane.b32.xlu0 %v336, 112
      %v340 = vpop.permute.xlu0 %339
      %v342 = vsel %vm253, %v328, 0
      %v345 = vsel %vm253, %v338, 0
      %v348 = vsel %vm253, %v340, 0
      %350 = vmatpush.bf16.xpose.msra.mxu0 0
      %351 = vmatpush.bf16.xpose.msra.mxu0 0
      %352 = vmatpush.bf16.xpose.msra.mxu0 0
      %353 = vmatpush.bf16.xpose.msra.mxu0 0
      %354 = vmatpush.bf16.xpose.msra.mxu0 0
      %355 = vmatpush.bf16.xpose.msra.mxu0 0
      %356 = vmatpush.bf16.xpose.msra.mxu0 %v348
      %357 = vmatpush.bf16.xpose.msra.mxu0 %v345
      %358 = vmatmul.bf16.gmra.mxu0 %v342
      %v359 = vpop.f32.mrf.mxu0
      %v360 = vadd.f32 0.0, %v359
      %v361 = vpop.f32.mrf.mxu0
      %362 = vdwg.mxu0
      %v363 = vpack.c.bf16 %v360, %v360
      %s364 = scalar_lea.vmem %s231, 8
      %365 = vst.msk [vmem:[%s364] sm:$0xf] %vm277, %v363
      %v366 = vld [vmem:[%s222] sm:$0xf]
      %v367 = vld [vmem:[%s222 + $0x4] sm:$0xf]
      %v368 = vld [vmem:[%s222 + $0x8] sm:$0xf]
      %369 = vrot.lane.b32.xlu0 %v284, 104
      %v370 = vpop.permute.xlu0 %369
      %v374 = vunpack.c.l.b16 %v366
      %v375 = vunpack.c.l.b16 %v367
      %v376 = vunpack.c.l.b16 %v368
      %v377 = vpack.c.b16 %v375, %v374
      %v378 = vpack.c.b16 %v376, %v376
      %379 = vrot.lane.b32.xlu0 %v377, 104
      %v380 = vpop.permute.xlu0 %379
      %381 = vrot.lane.b32.xlu0 %v378, 104
      %v382 = vpop.permute.xlu0 %381
      %v384 = vsel %vm253, %v370, 0
      %v387 = vsel %vm253, %v380, 0
      %v390 = vsel %vm253, %v382, 0
      %392 = vmatpush.bf16.xpose.msra.mxu0 0
      %393 = vmatpush.bf16.xpose.msra.mxu0 0
      %394 = vmatpush.bf16.xpose.msra.mxu0 0
      %395 = vmatpush.bf16.xpose.msra.mxu0 0
      %396 = vmatpush.bf16.xpose.msra.mxu0 0
      %397 = vmatpush.bf16.xpose.msra.mxu0 0
      %398 = vmatpush.bf16.xpose.msra.mxu0 %v390
      %399 = vmatpush.bf16.xpose.msra.mxu0 %v387
      %400 = vmatmul.bf16.gmra.mxu0 %v384
      %v401 = vpop.f32.mrf.mxu0
      %v402 = vadd.f32 0.0, %v401
      %v403 = vpop.f32.mrf.mxu0
      %404 = vdwg.mxu0
      %v405 = vpack.c.bf16 %v402, %v402
      %s406 = scalar_lea.vmem %s231, 12
      %407 = vst.msk [vmem:[%s406] sm:$0xf] %vm277, %v405
      %s408 = smul.u32 4, %s19
      %p409 = scmp.lt.s32.totalorder %s18, 1
      %s410 = scalar_select %p409, %s18, 1
      %p411 = scmp.lt.s32.totalorder %s408, 3
      %s412 = scalar_select %p411, %s408, 3
      %s413 = smul.addr %s410, 4
      %s414 = sadd.s32 %s412, %s413
      %s415 = smul.addr %s414, 4
      %s416 = scalar_lea.vmem %s3, %s415
      // Predicated region
      $region33: #{transformer_xl_layer.15} parent=31 // pred_check
        %p417 = pneg %p126
      $region34: #{transformer_xl_layer.15} parent=31 // pred_check_branch
        %419 = sbr.rel (%p417) target = $region36
      $region35: #{transformer_xl_layer.15} parent=31 // pred_region
        %s420 = smul.u32 4, %s19
      $region36: #{transformer_xl_layer.15} parent=31 // pred_fallthru
        _
    $region32: #{transformer_xl_layer.15} parent=5 // pred_fallthru
      _
    %p421 = scmp.le.s32.totalorder 2, %s9
    // Predicated region
    $region37: #{transformer_xl_layer.15} parent=5 // pred_check
      %p422 = pneg %p421
    $region38: #{transformer_xl_layer.15} parent=5 // pred_check_branch
      %424 = sbr.rel (%p422) target = $region40
    $region39: #{transformer_xl_layer.15} parent=5 // pred_region
      %s425 = ssub.s32 %s9, 2
      // Predicated region
      $region41: #{transformer_xl_layer.15} parent=39 // pred_check
        %p426 = pneg %p132
      $region42: #{transformer_xl_layer.15} parent=39 // pred_check_branch
        %428 = sbr.rel (%p426) target = $region44
      $region43: #{transformer_xl_layer.15} parent=39 // pred_region
        %s429 = smul.u32 4, %s21
        %p430 = scmp.lt.s32.totalorder %s20, 1
        %s431 = scalar_select %p430, %s20, 1
        %p432 = scmp.lt.s32.totalorder %s429, 3
        %s433 = scalar_select %p432, %s429, 3
        %s434 = smul.addr %s431, 4
        %s435 = sadd.s32 %s433, %s434
        %s436 = smul.addr %s435, 4
        %s437 = scalar_lea.vmem %s3, %s436
      $region44: #{transformer_xl_layer.15} parent=39 // pred_fallthru
        _
    $region40: #{transformer_xl_layer.15} parent=5 // pred_fallthru
      _
  $region6: #{transformer_xl_layer.15} parent=0 // loop_footer
    %s13 = sadd.s32 1, %s9
  $region7: #{transformer_xl_layer.15} parent=0 // loop_footer_branch
    %8 = sbr.rel target = $region3
  $region8: #{transformer_xl_layer.15} parent=0 // loop_exit
    _

// kernel: transformer_xl_layer.18
$region0: #{transformer_xl_layer.18}
  #allocation0 [shape = 'u32[]', space=smem, size = 0x4, offset = 0x4, fixed_abs, tag = 'smem constant byte address 0x4 - core index']
  #allocation1 [shape = 'u32[72,128]{1,0:T(1,128)}', space=vmem, size = 0x9000, scoped, tag = 'internal scratch']
  #allocation2 [shape = 'f32[24,64]{1,0:T(8,128)}', space=vmem, size = 0x3000, scoped, tag = 'scratch operand']
  %s0 = inlined_call_operand.vmem [shape: bf16[24,32], index: 0, kind: input, shape index: {}]
  %s1 = inlined_call_operand.vmem [shape: bf16[32,64], index: 1, kind: input, shape index: {}]
  %s2 = inlined_call_operand.vmem [shape: f32[1,64], index: 2, kind: input, shape index: {}]
  %s3 = inlined_call_operand.vmem [shape: bf16[24,64], index: 3, kind: output, shape index: {}]
  %s4 = sld [smem:[#allocation0]]
  $region30: #{transformer_xl_layer.18} parent=0
    _
  %s6 = ssub.s32 1, %s4
  %s7 = scalar_select 0, %s6, %s4
  // Predicated region
  $region2: #{transformer_xl_layer.18} parent=0 // pred_check
    _
  $region3: #{transformer_xl_layer.18} parent=0 // pred_check_branch
    %9 = sbr.rel (0) target = $region5
  $region4: #{transformer_xl_layer.18} parent=0 // pred_region
    _
  $region5: #{transformer_xl_layer.18} parent=0 // pred_fallthru
    _
  // Predicated region
  $region6: #{transformer_xl_layer.18} parent=0 // pred_check
    _
  $region7: #{transformer_xl_layer.18} parent=0 // pred_check_branch
    %11 = sbr.rel (0) target = $region9
  $region8: #{transformer_xl_layer.18} parent=0 // pred_region
    _
  $region9: #{transformer_xl_layer.18} parent=0 // pred_fallthru
    _
  // Predicated region
  $region10: #{transformer_xl_layer.18} parent=0 // pred_check
    _
  $region11: #{transformer_xl_layer.18} parent=0 // pred_check_branch
    %13 = sbr.rel (0) target = $region13
  $region12: #{transformer_xl_layer.18} parent=0 // pred_region
    _
  $region13: #{transformer_xl_layer.18} parent=0 // pred_fallthru
    _
  %p15 = scmp.eq.s32.totalorder 0, 0
  // Predicated region
  $region14: #{transformer_xl_layer.18} parent=0 // pred_check
    %p16 = pneg %p15
  $region15: #{transformer_xl_layer.18} parent=0 // pred_check_branch
    %18 = sbr.rel (%p16) target = $region17
  $region16: #{transformer_xl_layer.18} parent=0 // pred_region
    %vm19 = vcmask 523264
    %20 = vst.msk [vmem:[#allocation2] sm:$0xff] %vm19, 0.0
    %21 = vst.msk [vmem:[#allocation2 + $0x8] sm:$0xff] %vm19, 0.0
    %22 = vst.msk [vmem:[#allocation2 + $0x10] sm:$0xff] %vm19, 0.0
  $region17: #{transformer_xl_layer.18} parent=0 // pred_fallthru
    _
  %v23 = vld [vmem:[#allocation2] sm:$0xff]
  %v24 = vld [vmem:[#allocation2 + $0x8] sm:$0xff]
  %v25 = vld [vmem:[#allocation2 + $0x10] sm:$0xff]
  %v26 = vld [vmem:[%s0] sm:$0xf]
  %v27 = vld [vmem:[%s0 + $0x4] sm:$0xf]
  %v28 = vld [vmem:[%s0 + $0x8] sm:$0xf]
  %v29 = vld [vmem:[%s1] sm:$0xf]
  %v30 = vld [vmem:[%s1 + $0x4] sm:$0xf]
  %v31 = vld [vmem:[%s1 + $0x8] sm:$0xf]
  %v32 = vld [vmem:[%s1 + $0xc] sm:$0xf]
  %v36 = vunpack.c.l.b16 %v26
  %v37 = vunpack.c.l.b16 %v27
  %v38 = vunpack.c.l.b16 %v28
  %v39 = vpack.c.b16 %v37, %v36
  %v40 = vpack.c.b16 %v38, %v38
  %v45 = vunpack.c.l.b16 %v29
  %v46 = vunpack.c.l.b16 %v30
  %v47 = vunpack.c.l.b16 %v31
  %v48 = vunpack.c.l.b16 %v32
  %v49 = vpack.c.b16 %v46, %v45
  %v50 = vpack.c.b16 %v48, %v47
  %vm53 = vcmask 261120
  %v55 = vsel %vm53, %v39, 0
  %v58 = vsel %vm53, %v40, 0
  %60 = vmatpush.bf16.msra.mxu0 0
  %61 = vmatpush.bf16.msra.mxu0 0
  %62 = vmatpush.bf16.msra.mxu0 0
  %63 = vmatpush.bf16.msra.mxu0 0
  %64 = vmatpush.bf16.msra.mxu0 0
  %65 = vmatpush.bf16.msra.mxu0 0
  %66 = vmatpush.bf16.msra.mxu0 %v50
  %67 = vmatpush.bf16.msra.mxu0 %v49
  %68 = vmatmul.bf16.gmra.mxu0 %v55
  %v69 = vpop.f32.mrf.mxu0
  %v70 = vadd.f32 0.0, %v69
  %v71 = vpop.f32.mrf.mxu0
  %v72 = vadd.f32 0.0, %v71
  %73 = vmatmul.bf16.gmra.mxu0 %v58
  %v74 = vpop.f32.mrf.mxu0
  %v75 = vadd.f32 0.0, %v74
  %v76 = vpop.f32.mrf.mxu0
  %77 = vdwg.mxu0
  %v78 = vadd.f32 %v23, %v70
  %v79 = vadd.f32 %v24, %v72
  %v80 = vadd.f32 %v25, %v75
  %vm81 = vcmask 523264
  %82 = vst.msk [vmem:[#allocation2] sm:$0xff] %vm81, %v78
  %83 = vst.msk [vmem:[#allocation2 + $0x8] sm:$0xff] %vm81, %v79
  %84 = vst.msk [vmem:[#allocation2 + $0x10] sm:$0xff] %vm81, %v80
  // Predicated region
  $region18: #{transformer_xl_layer.18} parent=0 // pred_check
    %p85 = pneg %p15
  $region19: #{transformer_xl_layer.18} parent=0 // pred_check_branch
    %87 = sbr.rel (%p85) target = $region21
  $region20: #{transformer_xl_layer.18} parent=0 // pred_region
    %v88 = vld [vmem:[#allocation2] sm:$0xff]
    %v89 = vld [vmem:[#allocation2 + $0x8] sm:$0xff]
    %v90 = vld [vmem:[#allocation2 + $0x10] sm:$0xff]
    %v91 = vld [vmem:[%s2] sm:$0x1]
    %v93 = vperm.slane %v91, 0
    %v95 = vadd.f32 %v88, %v93
    %v96 = vadd.f32 %v89, %v93
    %v97 = vadd.f32 %v90, %v93
    %v98 = vmul.f32 %v95, %v95
    %v99 = vmul.f32 %v96, %v96
    %v100 = vmul.f32 %v97, %v97
    %v101 = vmul.f32 %v95, %v98
    %v102 = vmul.f32 %v96, %v99
    %v103 = vmul.f32 %v97, %v100
    %v104 = vmul.f32 %v101, 0.044715
    %v105 = vmul.f32 %v102, 0.044715
    %v106 = vmul.f32 %v103, 0.044715
    %v107 = vadd.f32 %v95, %v104
    %v108 = vadd.f32 %v96, %v105
    %v109 = vadd.f32 %v97, %v106
    %v110 = vmul.f32 %v107, 0.7978846
    %v111 = vmul.f32 %v108, 0.7978846
    %v112 = vmul.f32 %v109, 0.7978846
    %v113 = vtanh.pop %v110
    %v114 = vtanh.pop %v111
    %v115 = vtanh.pop %v112
    %v116 = vadd.f32 %v113, 1.0
    %v117 = vadd.f32 %v114, 1.0
    %v118 = vadd.f32 %v115, 1.0
    %v119 = vmul.f32 %v116, 0.5
    %v120 = vmul.f32 %v117, 0.5
    %v121 = vmul.f32 %v118, 0.5
    %v122 = vmul.f32 %v95, %v119
    %v123 = vmul.f32 %v96, %v120
    %v124 = vmul.f32 %v97, %v121
    %v125 = vpack.c.bf16 %v122, %v122
    %v126 = vpack.c.bf16 %v123, %v123
    %v127 = vpack.c.bf16 %v124, %v124
    %vm128 = vcmask 519168
    %129 = vst.msk [vmem:[%s3] sm:$0xf] %vm128, %v125
    %130 = vst.msk [vmem:[%s3 + $0x4] sm:$0xf] %vm128, %v126
    %131 = vst.msk [vmem:[%s3 + $0x8] sm:$0xf] %vm128, %v127
  $region21: #{transformer_xl_layer.18} parent=0 // pred_fallthru
    _
  // Predicated region
  $region22: #{transformer_xl_layer.18} parent=0 // pred_check
    _
  $region23: #{transformer_xl_layer.18} parent=0 // pred_check_branch
    %133 = sbr.rel (0) target = $region25
  $region24: #{transformer_xl_layer.18} parent=0 // pred_region
    _
  $region25: #{transformer_xl_layer.18} parent=0 // pred_fallthru
    _
  // Predicated region
  $region26: #{transformer_xl_layer.18} parent=0 // pred_check
    _
  $region27: #{transformer_xl_layer.18} parent=0 // pred_check_branch
    %135 = sbr.rel (0) target = $region29
  $region28: #{transformer_xl_layer.18} parent=0 // pred_region
    _
  $region29: #{transformer_xl_layer.18} parent=0 // pred_fallthru
    _

// kernel: transformer_xl_layer.17
$region0: #{transformer_xl_layer.17}
  #allocation0 [shape = 'u32[]', space=smem, size = 0x4, offset = 0x4, fixed_abs, tag = 'smem constant byte address 0x4 - core index']
  #allocation1 [shape = 'u32[72,128]{1,0:T(1,128)}', space=vmem, size = 0x9000, scoped, tag = 'internal scratch']
  #allocation2 [shape = 'f32[24,32]{1,0:T(8,128)}', space=vmem, size = 0x3000, scoped, tag = 'scratch operand']
  %s0 = inlined_call_operand.vmem [shape: bf16[24,32], index: 0, kind: input, shape index: {}]
  %s1 = inlined_call_operand.vmem [shape: bf16[32,32], index: 1, kind: input, shape index: {}]
  %s2 = inlined_call_operand.vmem [shape: f32[24,32], index: 2, kind: input, shape index: {}]
  %s3 = inlined_call_operand.vmem [shape: f32[1,32], index: 3, kind: input, shape index: {}]
  %s4 = inlined_call_operand.vmem [shape: f32[1,32], index: 4, kind: input, shape index: {}]
  %s5 = inlined_call_operand.vmem [shape: bf16[24,32], index: 5, kind: output, shape index: {}]
  %s6 = sld [smem:[#allocation0]]
  $region38: #{transformer_xl_layer.17} parent=0
    _
  %s8 = ssub.s32 1, %s6
  %s9 = scalar_select 0, %s8, %s6
  // Predicated region
  $region2: #{transformer_xl_layer.17} parent=0 // pred_check
    _
  $region3: #{transformer_xl_layer.17} parent=0 // pred_check_branch
    %11 = sbr.rel (0) target = $region5
  $region4: #{transformer_xl_layer.17} parent=0 // pred_region
    _
  $region5: #{transformer_xl_layer.17} parent=0 // pred_fallthru
    _
  // Predicated region
  $region6: #{transformer_xl_layer.17} parent=0 // pred_check
    _
  $region7: #{transformer_xl_layer.17} parent=0 // pred_check_branch
    %13 = sbr.rel (0) target = $region9
  $region8: #{transformer_xl_layer.17} parent=0 // pred_region
    _
  $region9: #{transformer_xl_layer.17} parent=0 // pred_fallthru
    _
  // Predicated region
  $region10: #{transformer_xl_layer.17} parent=0 // pred_check
    _
  $region11: #{transformer_xl_layer.17} parent=0 // pred_check_branch
    %15 = sbr.rel (0) target = $region13
  $region12: #{transformer_xl_layer.17} parent=0 // pred_region
    _
  $region13: #{transformer_xl_layer.17} parent=0 // pred_fallthru
    _
  // Predicated region
  $region14: #{transformer_xl_layer.17} parent=0 // pred_check
    _
  $region15: #{transformer_xl_layer.17} parent=0 // pred_check_branch
    %17 = sbr.rel (0) target = $region17
  $region16: #{transformer_xl_layer.17} parent=0 // pred_region
    _
  $region17: #{transformer_xl_layer.17} parent=0 // pred_fallthru
    _
  // Predicated region
  $region18: #{transformer_xl_layer.17} parent=0 // pred_check
    _
  $region19: #{transformer_xl_layer.17} parent=0 // pred_check_branch
    %19 = sbr.rel (0) target = $region21
  $region20: #{transformer_xl_layer.17} parent=0 // pred_region
    _
  $region21: #{transformer_xl_layer.17} parent=0 // pred_fallthru
    _
  %p21 = scmp.eq.s32.totalorder 0, 0
  // Predicated region
  $region22: #{transformer_xl_layer.17} parent=0 // pred_check
    %p22 = pneg %p21
  $region23: #{transformer_xl_layer.17} parent=0 // pred_check_branch
    %24 = sbr.rel (%p22) target = $region25
  $region24: #{transformer_xl_layer.17} parent=0 // pred_region
    %vm25 = vcmask 261120
    %26 = vst.msk [vmem:[#allocation2] sm:$0xff] %vm25, 0.0
    %27 = vst.msk [vmem:[#allocation2 + $0x8] sm:$0xff] %vm25, 0.0
    %28 = vst.msk [vmem:[#allocation2 + $0x10] sm:$0xff] %vm25, 0.0
  $region25: #{transformer_xl_layer.17} parent=0 // pred_fallthru
    _
  %v29 = vld [vmem:[#allocation2] sm:$0xff]
  %v30 = vld [vmem:[#allocation2 + $0x8] sm:$0xff]
  %v31 = vld [vmem:[#allocation2 + $0x10] sm:$0xff]
  %v32 = vld [vmem:[%s0] sm:$0xf]
  %v33 = vld [vmem:[%s0 + $0x4] sm:$0xf]
  %v34 = vld [vmem:[%s0 + $0x8] sm:$0xf]
  %v35 = vld [vmem:[%s1] sm:$0xf]
  %v36 = vld [vmem:[%s1 + $0x4] sm:$0xf]
  %v37 = vld [vmem:[%s1 + $0x8] sm:$0xf]
  %v38 = vld [vmem:[%s1 + $0xc] sm:$0xf]
  %v42 = vunpack.c.l.b16 %v32
  %v43 = vunpack.c.l.b16 %v33
  %v44 = vunpack.c.l.b16 %v34
  %v45 = vpack.c.b16 %v43, %v42
  %v46 = vpack.c.b16 %v44, %v44
  %v51 = vunpack.c.l.b16 %v35
  %v52 = vunpack.c.l.b16 %v36
  %v53 = vunpack.c.l.b16 %v37
  %v54 = vunpack.c.l.b16 %v38
  %v55 = vpack.c.b16 %v52, %v51
  %v56 = vpack.c.b16 %v54, %v53
  %vm59 = vcmask 261120
  %v61 = vsel %vm59, %v45, 0
  %v64 = vsel %vm59, %v46, 0
  %66 = vmatpush.bf16.msra.mxu0 0
  %67 = vmatpush.bf16.msra.mxu0 0
  %68 = vmatpush.bf16.msra.mxu0 0
  %69 = vmatpush.bf16.msra.mxu0 0
  %70 = vmatpush.bf16.msra.mxu0 0
  %71 = vmatpush.bf16.msra.mxu0 0
  %72 = vmatpush.bf16.msra.mxu0 %v56
  %73 = vmatpush.bf16.msra.mxu0 %v55
  %74 = vmatmul.bf16.gmra.mxu0 %v61
  %v75 = vpop.f32.mrf.mxu0
  %v76 = vadd.f32 0.0, %v75
  %v77 = vpop.f32.mrf.mxu0
  %v78 = vadd.f32 0.0, %v77
  %79 = vmatmul.bf16.gmra.mxu0 %v64
  %v80 = vpop.f32.mrf.mxu0
  %v81 = vadd.f32 0.0, %v80
  %v82 = vpop.f32.mrf.mxu0
  %83 = vdwg.mxu0
  %v84 = vadd.f32 %v29, %v76
  %v85 = vadd.f32 %v30, %v78
  %v86 = vadd.f32 %v31, %v81
  %87 = vst.msk [vmem:[#allocation2] sm:$0xff] %vm59, %v84
  %88 = vst.msk [vmem:[#allocation2 + $0x8] sm:$0xff] %vm59, %v85
  %89 = vst.msk [vmem:[#allocation2 + $0x10] sm:$0xff] %vm59, %v86
  // Predicated region
  $region26: #{transformer_xl_layer.17} parent=0 // pred_check
    %p90 = pneg %p21
  $region27: #{transformer_xl_layer.17} parent=0 // pred_check_branch
    %92 = sbr.rel (%p90) target = $region29
  $region28: #{transformer_xl_layer.17} parent=0 // pred_region
    %v93 = vld [vmem:[#allocation2] sm:$0xff]
    %v94 = vld [vmem:[#allocation2 + $0x8] sm:$0xff]
    %v95 = vld [vmem:[#allocation2 + $0x10] sm:$0xff]
    %v96 = vld [vmem:[%s2] sm:$0xff]
    %v97 = vld [vmem:[%s2 + $0x8] sm:$0xff]
    %v98 = vld [vmem:[%s2 + $0x10] sm:$0xff]
    %v99 = vadd.f32 %v93, %v96
    %v100 = vadd.f32 %v94, %v97
    %v101 = vadd.f32 %v95, %v98
    %v102 = vsel %vm59, %v99, 0.0
    %103 = vadd.xlane.f32.xlu0 %v102
    %v104 = vpop.xlane.xlu0 %103
    %v105 = vsel %vm59, %v100, 0.0
    %106 = vadd.xlane.f32.xlu0 %v105
    %v107 = vpop.xlane.xlu0 %106
    %v108 = vsel %vm59, %v101, 0.0
    %109 = vadd.xlane.f32.xlu0 %v108
    %v110 = vpop.xlane.xlu0 %109
    %v111 = vrcp.pop 32.0
    %v112 = vmul.f32 32.0, %v111
    %v113 = vsub.f32 1.0, %v112
    %v114 = vmul.f32 %v111, %v113
    %v115 = vadd.f32 %v111, %v114
    %vm116 = vweird.f32 %v111
    %v117 = vsel %vm116, %v111, %v115
    %v118 = vmul.f32 %v104, %v117
    %v119 = vmul.f32 %v107, %v117
    %v120 = vmul.f32 %v110, %v117
    %v121 = vsub.f32 %v99, %v118
    %v122 = vsub.f32 %v100, %v119
    %v123 = vsub.f32 %v101, %v120
    %v124 = vmul.f32 %v121, %v121
    %v125 = vmul.f32 %v122, %v122
    %v126 = vmul.f32 %v123, %v123
    %v127 = vsel %vm59, %v124, 0.0
    %128 = vadd.xlane.f32.xlu0 %v127
    %v129 = vpop.xlane.xlu0 %128
    %v130 = vsel %vm59, %v125, 0.0
    %131 = vadd.xlane.f32.xlu0 %v130
    %v132 = vpop.xlane.xlu0 %131
    %v133 = vsel %vm59, %v126, 0.0
    %134 = vadd.xlane.f32.xlu0 %v133
    %v135 = vpop.xlane.xlu0 %134
    %v136 = vmul.f32 %v129, %v117
    %v137 = vmul.f32 %v132, %v117
    %v138 = vmul.f32 %v135, %v117
    %v139 = vadd.f32 %v136, 1e-12
    %v140 = vadd.f32 %v137, 1e-12
    %v141 = vadd.f32 %v138, 1e-12
    %v142 = vrsqrt.pop %v139
    %v143 = vmul.f32 %v142, %v139
    %v144 = vmul.f32 %v143, %v142
    %v145 = vmul.f32 0.5, %v144
    %v146 = vsub.f32 1.5, %v145
    %v147 = vmul.f32 %v142, %v146
    %vm148 = vweird.f32 %v139
    %vm149 = vweird.f32 %v142
    %vm150 = vmor %vm148, %vm149
    %v151 = vsel %vm150, %v142, %v147
    %v152 = vrsqrt.pop %v140
    %v153 = vmul.f32 %v152, %v140
    %v154 = vmul.f32 %v153, %v152
    %v155 = vmul.f32 0.5, %v154
    %v156 = vsub.f32 1.5, %v155
    %v157 = vmul.f32 %v152, %v156
    %vm158 = vweird.f32 %v140
    %vm159 = vweird.f32 %v152
    %vm160 = vmor %vm158, %vm159
    %v161 = vsel %vm160, %v152, %v157
    %v162 = vrsqrt.pop %v141
    %v163 = vmul.f32 %v162, %v141
    %v164 = vmul.f32 %v163, %v162
    %v165 = vmul.f32 0.5, %v164
    %v166 = vsub.f32 1.5, %v165
    %v167 = vmul.f32 %v162, %v166
    %vm168 = vweird.f32 %v141
    %vm169 = vweird.f32 %v162
    %vm170 = vmor %vm168, %vm169
    %v171 = vsel %vm170, %v162, %v167
    %v172 = vmul.f32 %v121, %v151
    %v173 = vmul.f32 %v122, %v161
    %v174 = vmul.f32 %v123, %v171
    %v175 = vld [vmem:[%s3] sm:$0x1]
    %v177 = vperm.slane %v175, 0
    %v179 = vmul.f32 %v172, %v177
    %v180 = vmul.f32 %v173, %v177
    %v181 = vmul.f32 %v174, %v177
    %v182 = vld [vmem:[%s4] sm:$0x1]
    %v184 = vperm.slane %v182, 0
    %v186 = vadd.f32 %v179, %v184
    %v187 = vadd.f32 %v180, %v184
    %v188 = vadd.f32 %v181, %v184
    %v189 = vpack.c.bf16 %v186, %v186
    %v190 = vpack.c.bf16 %v187, %v187
    %v191 = vpack.c.bf16 %v188, %v188
    %vm192 = vcmask 257024
    %193 = vst.msk [vmem:[%s5] sm:$0xf] %vm192, %v189
    %194 = vst.msk [vmem:[%s5 + $0x4] sm:$0xf] %vm192, %v190
    %195 = vst.msk [vmem:[%s5 + $0x8] sm:$0xf] %vm192, %v191
  $region29: #{transformer_xl_layer.17} parent=0 // pred_fallthru
    _
  // Predicated region
  $region30: #{transformer_xl_layer.17} parent=0 // pred_check
    _
  $region31: #{transformer_xl_layer.17} parent=0 // pred_check_branch
    %197 = sbr.rel (0) target = $region33
  $region32: #{transformer_xl_layer.17} parent=0 // pred_region
    _
  $region33: #{transformer_xl_layer.17} parent=0 // pred_fallthru
    _
  // Predicated region
  $region34: #{transformer_xl_layer.17} parent=0 // pred_check
    _
  $region35: #{transformer_xl_layer.17} parent=0 // pred_check_branch
    %199 = sbr.rel (0) target = $region37
  $region36: #{transformer_xl_layer.17} parent=0 // pred_region
    _
  $region37: #{transformer_xl_layer.17} parent=0 // pred_fallthru
    _

// kernel: transformer_xl_layer.16
$region0: #{transformer_xl_layer.16}
  #allocation0 [shape = 'u32[]', space=smem, size = 0x4, offset = 0x4, fixed_abs, tag = 'smem constant byte address 0x4 - core index']
  #allocation1 [shape = 'u32[72,128]{1,0:T(1,128)}', space=vmem, size = 0x9000, scoped, tag = 'internal scratch']
  %s0 = inlined_call_operand.vmem [shape: bf16[2,8,32], index: 0, kind: input, shape index: {}]
  %s1 = inlined_call_operand.vmem [shape: bf16[2,16,32], index: 1, kind: input, shape index: {}]
  %s2 = inlined_call_operand.vmem [shape: bf16[2,16,32], index: 2, kind: input, shape index: {}]
  %s3 = inlined_call_operand.vmem [shape: bf16[2,4,8,16], index: 3, kind: input, shape index: {}]
  %s4 = inlined_call_operand.vmem [shape: bf16[2,8,16], index: 4, kind: input, shape index: {}]
  %s5 = inlined_call_operand.vmem [shape: bf16[2,8,16], index: 5, kind: input, shape index: {}]
  %s6 = inlined_call_operand.vmem [shape: f32[1,32], index: 6, kind: input, shape index: {}]
  %s7 = inlined_call_operand.vmem [shape: bf16[1,32,8], index: 7, kind: input, shape index: {}]
  %s8 = inlined_call_operand.vmem [shape: f32[1,1,8], index: 8, kind: input, shape index: {}]
  %s9 = inlined_call_operand.vmem [shape: bf16[2,8,32], index: 9, kind: output, shape index: {}]
  %s10 = sld [smem:[#allocation0]]
  $region69: #{transformer_xl_layer.16} parent=0
    _
  %s12 = ssub.s32 1, %s10
  %s13 = scalar_select 0, %s12, %s10
  loop: start=0, step=1, limit=4
  $region2: #{transformer_xl_layer.16} parent=0 // loop_pre_header
    _
  $region3: #{transformer_xl_layer.16} parent=0 // loop_header
    %s15 = sphi 0, %s19
    %p16 = scmp.ge.s32.totalorder %s15, 4
    %s22 = sphi 0, %s34
    %s23 = sphi 0, %s30
    %s24 = sphi 0, %s22
    %s25 = sphi 0, %s23
    %s26 = sphi 0, %s24
    %s27 = sphi 0, %s25
    %s39 = sphi 0, %s41
    %s42 = sphi 0, %s39
    %s43 = sphi 0, %s42
    %s59 = sphi 0, %s43
    %s67 = sphi 0, %s69
    %s70 = sphi 0, %s67
    %s71 = sphi 0, %s70
    %s87 = sphi 0, %s71
    %s95 = sphi 0, %s97
    %s98 = sphi 0, %s95
    %s99 = sphi 0, %s98
    %s115 = sphi 0, %s99
    %s123 = sphi 0, %s125
    %s126 = sphi 0, %s123
    %s127 = sphi 0, %s126
    %s143 = sphi 0, %s127
    %s149 = sphi 0, %s151
    %s152 = sphi 0, %s149
    %s153 = sphi 0, %s152
    %s169 = sphi 0, %s153
    %s175 = sphi 0, %s177
    %s178 = sphi 0, %s175
    %s179 = sphi 0, %s178
    %s195 = sphi 0, %s179
    %s201 = sphi 0, %s203
    %s204 = sphi 0, %s201
    %s205 = sphi 0, %s204
    %s221 = sphi 0, %s205
    %s227 = sphi 0, %s229
    %s230 = sphi 0, %s227
    %s231 = sphi 0, %s230
    %s247 = sphi 0, %s231
    %s253 = sphi 0, %s255
    %s256 = sphi 0, %s253
    %s257 = sphi 0, %s256
    %s273 = sphi 0, %s257
    %s281 = sphi 0, %s283
    %s284 = sphi 0, %s281
    %s285 = sphi 0, %s284
    %s301 = sphi 0, %s285
  $region4: #{transformer_xl_layer.16} parent=0 // loop_header_branch
    %18 = sbr.rel (%p16) target = $region8
  $region5: #{transformer_xl_layer.16} parent=0 // loop_body
    %s20 = ssub.s32 %s15, 1
    %s21 = ssub.s32 %s15, 2
    %s28 = sadd.s32 1, %s23
    %p29 = scmp.ge.s32.totalorder %s28, 1
    %s30 = scalar_select %p29, 0, %s28
    %s31 = sadd.s32 1, %s22
    %s32 = scalar_select %p29, %s31, %s22
    %p33 = scmp.ge.s32.totalorder %s32, 2
    %s34 = scalar_select %p33, 0, %s32
    %s35 = ssub.s32 %s22, %s34
    %s36 = ssub.s32 %s23, %s30
    %s37 = sor.u32 %s35, %s36
    %p38 = scmp.eq.s32.totalorder %s37, 0
    %s40 = sadd.s32 %s39, 1
    %s41 = scalar_select %p38, %s39, %s40
    %p44 = pneg %p38
    %p45 = scmp.eq.s32.totalorder %s15, 1
    %p46 = por %p44, %p45
    %p47 = scmp.ne.s32.totalorder %s39, %s42
    %p48 = scmp.eq.s32.totalorder %s15, 0
    %p49 = por %p47, %p48
    %p50 = scmp.ne.s32.totalorder %s39, %s42
    %p51 = scmp.eq.s32.totalorder %s20, 1
    %p52 = por %p50, %p51
    %p53 = scmp.ne.s32.totalorder %s42, %s43
    %p54 = scmp.eq.s32.totalorder %s20, 0
    %p55 = por %p53, %p54
    %p56 = scmp.ne.s32.totalorder %s42, %s43
    %p57 = scmp.eq.s32.totalorder %s21, 1
    %p58 = por %p56, %p57
    %p60 = scmp.ne.s32.totalorder %s43, %s59
    %p61 = scmp.eq.s32.totalorder %s21, 0
    %p62 = por %p60, %p61
    %s63 = ssub.s32 %s22, %s34
    %s64 = ssub.s32 %s23, %s30
    %s65 = sor.u32 %s63, %s64
    %p66 = scmp.eq.s32.totalorder %s65, 0
    %s68 = sadd.s32 %s67, 1
    %s69 = scalar_select %p66, %s67, %s68
    %p72 = pneg %p66
    %p73 = scmp.eq.s32.totalorder %s15, 1
    %p74 = por %p72, %p73
    %p75 = scmp.ne.s32.totalorder %s67, %s70
    %p76 = scmp.eq.s32.totalorder %s15, 0
    %p77 = por %p75, %p76
    %p78 = scmp.ne.s32.totalorder %s67, %s70
    %p79 = scmp.eq.s32.totalorder %s20, 1
    %p80 = por %p78, %p79
    %p81 = scmp.ne.s32.totalorder %s70, %s71
    %p82 = scmp.eq.s32.totalorder %s20, 0
    %p83 = por %p81, %p82
    %p84 = scmp.ne.s32.totalorder %s70, %s71
    %p85 = scmp.eq.s32.totalorder %s21, 1
    %p86 = por %p84, %p85
    %p88 = scmp.ne.s32.totalorder %s71, %s87
    %p89 = scmp.eq.s32.totalorder %s21, 0
    %p90 = por %p88, %p89
    %s91 = ssub.s32 %s22, %s34
    %s92 = ssub.s32 %s23, %s30
    %s93 = sor.u32 %s91, %s92
    %p94 = scmp.eq.s32.totalorder %s93, 0
    %s96 = sadd.s32 %s95, 1
    %s97 = scalar_select %p94, %s95, %s96
    %p100 = pneg %p94
    %p101 = scmp.eq.s32.totalorder %s15, 1
    %p102 = por %p100, %p101
    %p103 = scmp.ne.s32.totalorder %s95, %s98
    %p104 = scmp.eq.s32.totalorder %s15, 0
    %p105 = por %p103, %p104
    %p106 = scmp.ne.s32.totalorder %s95, %s98
    %p107 = scmp.eq.s32.totalorder %s20, 1
    %p108 = por %p106, %p107
    %p109 = scmp.ne.s32.totalorder %s98, %s99
    %p110 = scmp.eq.s32.totalorder %s20, 0
    %p111 = por %p109, %p110
    %p112 = scmp.ne.s32.totalorder %s98, %s99
    %p113 = scmp.eq.s32.totalorder %s21, 1
    %p114 = por %p112, %p113
    %p116 = scmp.ne.s32.totalorder %s99, %s115
    %p117 = scmp.eq.s32.totalorder %s21, 0
    %p118 = por %p116, %p117
    %s119 = ssub.s32 %s22, %s34
    %s120 = ssub.s32 %s23, %s30
    %s121 = sor.u32 %s119, %s120
    %p122 = scmp.eq.s32.totalorder %s121, 0
    %s124 = sadd.s32 %s123, 1
    %s125 = scalar_select %p122, %s123, %s124
    %p128 = pneg %p122
    %p129 = scmp.eq.s32.totalorder %s15, 1
    %p130 = por %p128, %p129
    %p131 = scmp.ne.s32.totalorder %s123, %s126
    %p132 = scmp.eq.s32.totalorder %s15, 0
    %p133 = por %p131, %p132
    %p134 = scmp.ne.s32.totalorder %s123, %s126
    %p135 = scmp.eq.s32.totalorder %s20, 1
    %p136 = por %p134, %p135
    %p137 = scmp.ne.s32.totalorder %s126, %s127
    %p138 = scmp.eq.s32.totalorder %s20, 0
    %p139 = por %p137, %p138
    %p140 = scmp.ne.s32.totalorder %s126, %s127
    %p141 = scmp.eq.s32.totalorder %s21, 1
    %p142 = por %p140, %p141
    %p144 = scmp.ne.s32.totalorder %s127, %s143
    %p145 = scmp.eq.s32.totalorder %s21, 0
    %p146 = por %p144, %p145
    %s147 = ssub.s32 %s22, %s34
    %p148 = scmp.eq.s32.totalorder %s147, 0
    %s150 = sadd.s32 %s149, 1
    %s151 = scalar_select %p148, %s149, %s150
    %p154 = pneg %p148
    %p155 = scmp.eq.s32.totalorder %s15, 1
    %p156 = por %p154, %p155
    %p157 = scmp.ne.s32.totalorder %s149, %s152
    %p158 = scmp.eq.s32.totalorder %s15, 0
    %p159 = por %p157, %p158
    %p160 = scmp.ne.s32.totalorder %s149, %s152
    %p161 = scmp.eq.s32.totalorder %s20, 1
    %p162 = por %p160, %p161
    %p163 = scmp.ne.s32.totalorder %s152, %s153
    %p164 = scmp.eq.s32.totalorder %s20, 0
    %p165 = por %p163, %p164
    %p166 = scmp.ne.s32.totalorder %s152, %s153
    %p167 = scmp.eq.s32.totalorder %s21, 1
    %p168 = por %p166, %p167
    %p170 = scmp.ne.s32.totalorder %s153, %s169
    %p171 = scmp.eq.s32.totalorder %s21, 0
    %p172 = por %p170, %p171
    %s173 = ssub.s32 %s22, %s34
    %p174 = scmp.eq.s32.totalorder %s173, 0
    %s176 = sadd.s32 %s175, 1
    %s177 = scalar_select %p174, %s175, %s176
    %p180 = pneg %p174
    %p181 = scmp.eq.s32.totalorder %s15, 1
    %p182 = por %p180, %p181
    %p183 = scmp.ne.s32.totalorder %s175, %s178
    %p184 = scmp.eq.s32.totalorder %s15, 0
    %p185 = por %p183, %p184
    %p186 = scmp.ne.s32.totalorder %s175, %s178
    %p187 = scmp.eq.s32.totalorder %s20, 1
    %p188 = por %p186, %p187
    %p189 = scmp.ne.s32.totalorder %s178, %s179
    %p190 = scmp.eq.s32.totalorder %s20, 0
    %p191 = por %p189, %p190
    %p192 = scmp.ne.s32.totalorder %s178, %s179
    %p193 = scmp.eq.s32.totalorder %s21, 1
    %p194 = por %p192, %p193
    %p196 = scmp.ne.s32.totalorder %s179, %s195
    %p197 = scmp.eq.s32.totalorder %s21, 0
    %p198 = por %p196, %p197
    %s199 = ssub.s32 %s23, %s30
    %p200 = scmp.eq.s32.totalorder %s199, 0
    %s202 = sadd.s32 %s201, 1
    %s203 = scalar_select %p200, %s201, %s202
    %p206 = pneg %p200
    %p207 = scmp.eq.s32.totalorder %s15, 1
    %p208 = por %p206, %p207
    %p209 = scmp.ne.s32.totalorder %s201, %s204
    %p210 = scmp.eq.s32.totalorder %s15, 0
    %p211 = por %p209, %p210
    %p212 = scmp.ne.s32.totalorder %s201, %s204
    %p213 = scmp.eq.s32.totalorder %s20, 1
    %p214 = por %p212, %p213
    %p215 = scmp.ne.s32.totalorder %s204, %s205
    %p216 = scmp.eq.s32.totalorder %s20, 0
    %p217 = por %p215, %p216
    %p218 = scmp.ne.s32.totalorder %s204, %s205
    %p219 = scmp.eq.s32.totalorder %s21, 1
    %p220 = por %p218, %p219
    %p222 = scmp.ne.s32.totalorder %s205, %s221
    %p223 = scmp.eq.s32.totalorder %s21, 0
    %p224 = por %p222, %p223
    %s225 = ssub.s32 %s23, %s30
    %p226 = scmp.eq.s32.totalorder %s225, 0
    %s228 = sadd.s32 %s227, 1
    %s229 = scalar_select %p226, %s227, %s228
    %p232 = pneg %p226
    %p233 = scmp.eq.s32.totalorder %s15, 1
    %p234 = por %p232, %p233
    %p235 = scmp.ne.s32.totalorder %s227, %s230
    %p236 = scmp.eq.s32.totalorder %s15, 0
    %p237 = por %p235, %p236
    %p238 = scmp.ne.s32.totalorder %s227, %s230
    %p239 = scmp.eq.s32.totalorder %s20, 1
    %p240 = por %p238, %p239
    %p241 = scmp.ne.s32.totalorder %s230, %s231
    %p242 = scmp.eq.s32.totalorder %s20, 0
    %p243 = por %p241, %p242
    %p244 = scmp.ne.s32.totalorder %s230, %s231
    %p245 = scmp.eq.s32.totalorder %s21, 1
    %p246 = por %p244, %p245
    %p248 = scmp.ne.s32.totalorder %s231, %s247
    %p249 = scmp.eq.s32.totalorder %s21, 0
    %p250 = por %p248, %p249
    %s251 = ssub.s32 %s23, %s30
    %p252 = scmp.eq.s32.totalorder %s251, 0
    %s254 = sadd.s32 %s253, 1
    %s255 = scalar_select %p252, %s253, %s254
    %p258 = pneg %p252
    %p259 = scmp.eq.s32.totalorder %s15, 1
    %p260 = por %p258, %p259
    %p261 = scmp.ne.s32.totalorder %s253, %s256
    %p262 = scmp.eq.s32.totalorder %s15, 0
    %p263 = por %p261, %p262
    %p264 = scmp.ne.s32.totalorder %s253, %s256
    %p265 = scmp.eq.s32.totalorder %s20, 1
    %p266 = por %p264, %p265
    %p267 = scmp.ne.s32.totalorder %s256, %s257
    %p268 = scmp.eq.s32.totalorder %s20, 0
    %p269 = por %p267, %p268
    %p270 = scmp.ne.s32.totalorder %s256, %s257
    %p271 = scmp.eq.s32.totalorder %s21, 1
    %p272 = por %p270, %p271
    %p274 = scmp.ne.s32.totalorder %s257, %s273
    %p275 = scmp.eq.s32.totalorder %s21, 0
    %p276 = por %p274, %p275
    %s277 = ssub.s32 %s22, %s34
    %s278 = ssub.s32 %s23, %s30
    %s279 = sor.u32 %s277, %s278
    %p280 = scmp.eq.s32.totalorder %s279, 0
    %s282 = sadd.s32 %s281, 1
    %s283 = scalar_select %p280, %s281, %s282
    %p286 = pneg %p280
    %p287 = scmp.eq.s32.totalorder %s15, 1
    %p288 = por %p286, %p287
    %p289 = scmp.ne.s32.totalorder %s281, %s284
    %p290 = scmp.eq.s32.totalorder %s15, 0
    %p291 = por %p289, %p290
    %p292 = scmp.ne.s32.totalorder %s281, %s284
    %p293 = scmp.eq.s32.totalorder %s20, 1
    %p294 = por %p292, %p293
    %p295 = scmp.ne.s32.totalorder %s284, %s285
    %p296 = scmp.eq.s32.totalorder %s20, 0
    %p297 = por %p295, %p296
    %p298 = scmp.ne.s32.totalorder %s284, %s285
    %p299 = scmp.eq.s32.totalorder %s21, 1
    %p300 = por %p298, %p299
    %p302 = scmp.ne.s32.totalorder %s285, %s301
    %p303 = scmp.eq.s32.totalorder %s21, 0
    %p304 = por %p302, %p303
    %p305 = scmp.le.s32.totalorder 1, %s15
    %p306 = scmp.lt.s32.totalorder %s15, 3
    %p307 = pnand %p305, %p306
    %p308 = pneg %p307
    // Predicated region
    $region9: #{transformer_xl_layer.16} parent=5 // pred_check
      _
    $region10: #{transformer_xl_layer.16} parent=5 // pred_check_branch
      %310 = sbr.rel (%p307) target = $region12
    $region11: #{transformer_xl_layer.16} parent=5 // pred_region
      %s311 = ssub.s32 %s15, 1
      // Predicated region
      $region13: #{transformer_xl_layer.16} parent=11 // pred_check
        %p312 = pneg %p217
      $region14: #{transformer_xl_layer.16} parent=11 // pred_check_branch
        %314 = sbr.rel (%p312) target = $region16
      $region15: #{transformer_xl_layer.16} parent=11 // pred_region
        %p315 = scmp.lt.s32.totalorder %s25, 0
        %s316 = scalar_select %p315, %s25, 0
        %s317 = scalar_lea.vmem %s6, %s316
      $region16: #{transformer_xl_layer.16} parent=11 // pred_fallthru
        _
      // Predicated region
      $region17: #{transformer_xl_layer.16} parent=11 // pred_check
        %p318 = pneg %p243
      $region18: #{transformer_xl_layer.16} parent=11 // pred_check_branch
        %320 = sbr.rel (%p318) target = $region20
      $region19: #{transformer_xl_layer.16} parent=11 // pred_region
        %p321 = scmp.lt.s32.totalorder %s25, 0
        %s322 = scalar_select %p321, %s25, 0
        %s323 = smul.addr %s322, 4
        %s324 = smul.addr %s323, 4
        %s325 = scalar_lea.vmem %s7, %s324
      $region20: #{transformer_xl_layer.16} parent=11 // pred_fallthru
        _
      // Predicated region
      $region21: #{transformer_xl_layer.16} parent=11 // pred_check
        %p326 = pneg %p269
      $region22: #{transformer_xl_layer.16} parent=11 // pred_check_branch
        %328 = sbr.rel (%p326) target = $region24
      $region23: #{transformer_xl_layer.16} parent=11 // pred_region
        %p329 = scmp.lt.s32.totalorder %s25, 0
        %s330 = scalar_select %p329, %s25, 0
        %s331 = scalar_lea.vmem %s8, %s330
      $region24: #{transformer_xl_layer.16} parent=11 // pred_fallthru
        _
    $region12: #{transformer_xl_layer.16} parent=5 // pred_fallthru
      _
    %p332 = scmp.lt.s32.totalorder %s15, 2
    // Predicated region
    $region25: #{transformer_xl_layer.16} parent=5 // pred_check
      %p333 = pneg %p332
    $region26: #{transformer_xl_layer.16} parent=5 // pred_check_branch
      %335 = sbr.rel (%p333) target = $region28
    $region27: #{transformer_xl_layer.16} parent=5 // pred_region
      // Predicated region
      $region29: #{transformer_xl_layer.16} parent=27 // pred_check
        %p336 = pneg %p49
      $region30: #{transformer_xl_layer.16} parent=27 // pred_check_branch
        %338 = sbr.rel (%p336) target = $region32
      $region31: #{transformer_xl_layer.16} parent=27 // pred_region
        %p339 = scmp.lt.s32.totalorder %s22, 1
        %s340 = scalar_select %p339, %s22, 1
        %p341 = scmp.lt.s32.totalorder %s23, 0
        %s342 = scalar_select %p341, %s23, 0
        %s343 = sadd.s32 %s342, %s340
        %s344 = smul.addr %s343, 4
        %s345 = scalar_lea.vmem %s0, %s344
      $region32: #{transformer_xl_layer.16} parent=27 // pred_fallthru
        _
      // Predicated region
      $region33: #{transformer_xl_layer.16} parent=27 // pred_check
        %p346 = pneg %p77
      $region34: #{transformer_xl_layer.16} parent=27 // pred_check_branch
        %348 = sbr.rel (%p346) target = $region36
      $region35: #{transformer_xl_layer.16} parent=27 // pred_region
        %p349 = scmp.lt.s32.totalorder %s22, 1
        %s350 = scalar_select %p349, %s22, 1
        %p351 = scmp.lt.s32.totalorder %s23, 0
        %s352 = scalar_select %p351, %s23, 0
        %s353 = smul.addr %s350, 2
        %s354 = sadd.s32 %s352, %s353
        %s355 = smul.addr %s354, 4
        %s356 = scalar_lea.vmem %s1, %s355
      $region36: #{transformer_xl_layer.16} parent=27 // pred_fallthru
        _
      // Predicated region
      $region37: #{transformer_xl_layer.16} parent=27 // pred_check
        %p357 = pneg %p105
      $region38: #{transformer_xl_layer.16} parent=27 // pred_check_branch
        %359 = sbr.rel (%p357) target = $region40
      $region39: #{transformer_xl_layer.16} parent=27 // pred_region
        %p360 = scmp.lt.s32.totalorder %s22, 1
        %s361 = scalar_select %p360, %s22, 1
        %p362 = scmp.lt.s32.totalorder %s23, 0
        %s363 = scalar_select %p362, %s23, 0
        %s364 = smul.addr %s361, 2
        %s365 = sadd.s32 %s363, %s364
        %s366 = smul.addr %s365, 4
        %s367 = scalar_lea.vmem %s2, %s366
      $region40: #{transformer_xl_layer.16} parent=27 // pred_fallthru
        _
      // Predicated region
      $region41: #{transformer_xl_layer.16} parent=27 // pred_check
        %p368 = pneg %p133
      $region42: #{transformer_xl_layer.16} parent=27 // pred_check_branch
        %370 = sbr.rel (%p368) target = $region44
      $region43: #{transformer_xl_layer.16} parent=27 // pred_region
        %s371 = smul.u32 4, %s23
        %p372 = scmp.lt.s32.totalorder %s22, 1
        %s373 = scalar_select %p372, %s22, 1
        %p374 = scmp.lt.s32.totalorder %s371, 3
        %s375 = scalar_select %p374, %s371, 3
        %s376 = smul.addr %s373, 4
        %s377 = sadd.s32 %s375, %s376
        %s378 = smul.addr %s377, 4
        %s379 = scalar_lea.vmem %s3, %s378
        %s380 = smul.u32 4, %s23
      $region44: #{transformer_xl_layer.16} parent=27 // pred_fallthru
        _
      // Predicated region
      $region45: #{transformer_xl_layer.16} parent=27 // pred_check
        %p381 = pneg %p159
      $region46: #{transformer_xl_layer.16} parent=27 // pred_check_branch
        %383 = sbr.rel (%p381) target = $region48
      $region47: #{transformer_xl_layer.16} parent=27 // pred_region
        %p384 = scmp.lt.s32.totalorder %s22, 1
        %s385 = scalar_select %p384, %s22, 1
        %s386 = smul.addr %s385, 4
        %s387 = scalar_lea.vmem %s4, %s386
      $region48: #{transformer_xl_layer.16} parent=27 // pred_fallthru
        _
      // Predicated region
      $region49: #{transformer_xl_layer.16} parent=27 // pred_check
        %p388 = pneg %p185
      $region50: #{transformer_xl_layer.16} parent=27 // pred_check_branch
        %390 = sbr.rel (%p388) target = $region52
      $region51: #{transformer_xl_layer.16} parent=27 // pred_region
        %p391 = scmp.lt.s32.totalorder %s22, 1
        %s392 = scalar_select %p391, %s22, 1
        %s393 = smul.addr %s392, 4
        %s394 = scalar_lea.vmem %s5, %s393
      $region52: #{transformer_xl_layer.16} parent=27 // pred_fallthru
        _
    $region28: #{transformer_xl_layer.16} parent=5 // pred_fallthru
      _
    %p395 = scmp.le.s32.totalorder 1, %s15
    %p396 = scmp.lt.s32.totalorder %s15, 3
    %p397 = pnand %p395, %p396
    %p398 = pneg %p397
    // Predicated region
    $region53: #{transformer_xl_layer.16} parent=5 // pred_check
      _
    $region54: #{transformer_xl_layer.16} parent=5 // pred_check_branch
      %400 = sbr.rel (%p397) target = $region56
    $region55: #{transformer_xl_layer.16} parent=5 // pred_region
      %s401 = ssub.s32 %s15, 1
      %p402 = scmp.lt.s32.totalorder %s24, 1
      %s403 = scalar_select %p402, %s24, 1
      %p404 = scmp.lt.s32.totalorder %s25, 0
      %s405 = scalar_select %p404, %s25, 0
      %s406 = sadd.s32 %s405, %s403
      %s407 = smul.addr %s406, 4
      %s408 = scalar_lea.vmem %s0, %s407
      %p409 = pneg %p55
      %p410 = pneg %p52
      %p411 = scmp.lt.s32.totalorder %s24, 1
      %s412 = scalar_select %p411, %s24, 1
      %p413 = scmp.lt.s32.totalorder %s25, 0
      %s414 = scalar_select %p413, %s25, 0
      %s415 = smul.addr %s412, 2
      %s416 = sadd.s32 %s414, %s415
      %s417 = smul.addr %s416, 4
      %s418 = scalar_lea.vmem %s1, %s417
      %p419 = pneg %p83
      %p420 = pneg %p80
      %p421 = scmp.lt.s32.totalorder %s24, 1
      %s422 = scalar_select %p421, %s24, 1
      %p423 = scmp.lt.s32.totalorder %s25, 0
      %s424 = scalar_select %p423, %s25, 0
      %s425 = smul.addr %s422, 2
      %s426 = sadd.s32 %s424, %s425
      %s427 = smul.addr %s426, 4
      %s428 = scalar_lea.vmem %s2, %s427
      %p429 = pneg %p111
      %p430 = pneg %p108
      %s431 = smul.u32 4, %s25
      %p432 = scmp.lt.s32.totalorder %s24, 1
      %s433 = scalar_select %p432, %s24, 1
      %p434 = scmp.lt.s32.totalorder %s431, 3
      %s435 = scalar_select %p434, %s431, 3
      %s436 = smul.addr %s433, 4
      %s437 = sadd.s32 %s435, %s436
      %s438 = smul.addr %s437, 4
      %s439 = scalar_lea.vmem %s3, %s438
      %p440 = pneg %p139
      %p441 = pneg %p136
      %p442 = scmp.lt.s32.totalorder %s24, 1
      %s443 = scalar_select %p442, %s24, 1
      %s444 = smul.addr %s443, 4
      %s445 = scalar_lea.vmem %s4, %s444
      %p446 = pneg %p165
      %p447 = pneg %p162
      %p448 = scmp.lt.s32.totalorder %s24, 1
      %s449 = scalar_select %p448, %s24, 1
      %s450 = smul.addr %s449, 4
      %s451 = scalar_lea.vmem %s5, %s450
      %p452 = pneg %p191
      %p453 = pneg %p188
      %p454 = scmp.lt.s32.totalorder %s25, 0
      %s455 = scalar_select %p454, %s25, 0
      %s456 = scalar_lea.vmem %s6, %s455
      %p457 = pneg %p217
      %p458 = pneg %p214
      %p459 = scmp.lt.s32.totalorder %s25, 0
      %s460 = scalar_select %p459, %s25, 0
      %s461 = smul.addr %s460, 4
      %s462 = smul.addr %s461, 4
      %s463 = scalar_lea.vmem %s7, %s462
      %p464 = pneg %p243
      %p465 = pneg %p240
      %p466 = scmp.lt.s32.totalorder %s25, 0
      %s467 = scalar_select %p466, %s25, 0
      %s468 = scalar_lea.vmem %s8, %s467
      %p469 = pneg %p269
      %p470 = pneg %p266
      %p471 = pneg %p297
      %p472 = pneg %p294
      %p473 = scmp.lt.s32.totalorder %s24, 1
      %s474 = scalar_select %p473, %s24, 1
      %p475 = scmp.lt.s32.totalorder %s25, 0
      %s476 = scalar_select %p475, %s25, 0
      %s477 = sadd.s32 %s476, %s474
      %s478 = smul.addr %s477, 4
      %s479 = scalar_lea.vmem %s9, %s478
      %p480 = scmp.lt.s32.totalorder %s24, 1
      %s481 = scalar_select %p480, %s24, 1
      %p482 = scmp.lt.s32.totalorder %s25, 0
      %s483 = scalar_select %p482, %s25, 0
      %s484 = sadd.s32 %s483, %s481
      %s485 = smul.addr %s484, 4
      %s486 = scalar_lea.vmem %s0, %s485
      %p487 = scmp.lt.s32.totalorder %s24, 1
      %s488 = scalar_select %p487, %s24, 1
      %p489 = scmp.lt.s32.totalorder %s25, 0
      %s490 = scalar_select %p489, %s25, 0
      %s491 = smul.addr %s488, 2
      %s492 = sadd.s32 %s490, %s491
      %s493 = smul.addr %s492, 4
      %s494 = scalar_lea.vmem %s1, %s493
      %p495 = scmp.lt.s32.totalorder %s24, 1
      %s496 = scalar_select %p495, %s24, 1
      %p497 = scmp.lt.s32.totalorder %s25, 0
      %s498 = scalar_select %p497, %s25, 0
      %s499 = smul.addr %s496, 2
      %s500 = sadd.s32 %s498, %s499
      %s501 = smul.addr %s500, 4
      %s502 = scalar_lea.vmem %s2, %s501
      %s503 = smul.u32 4, %s25
      %p504 = scmp.lt.s32.totalorder %s24, 1
      %s505 = scalar_select %p504, %s24, 1
      %p506 = scmp.lt.s32.totalorder %s503, 3
      %s507 = scalar_select %p506, %s503, 3
      %s508 = smul.addr %s505, 4
      %s509 = sadd.s32 %s507, %s508
      %s510 = smul.addr %s509, 4
      %s511 = scalar_lea.vmem %s3, %s510
      %s512 = smul.u32 4, %s25
      %p513 = scmp.lt.s32.totalorder %s24, 1
      %s514 = scalar_select %p513, %s24, 1
      %s515 = smul.addr %s514, 4
      %s516 = scalar_lea.vmem %s4, %s515
      %p517 = scmp.lt.s32.totalorder %s24, 1
      %s518 = scalar_select %p517, %s24, 1
      %s519 = smul.addr %s518, 4
      %s520 = scalar_lea.vmem %s5, %s519
      %p521 = scmp.lt.s32.totalorder %s25, 0
      %s522 = scalar_select %p521, %s25, 0
      %s523 = scalar_lea.vmem %s6, %s522
      %p524 = scmp.lt.s32.totalorder %s25, 0
      %s525 = scalar_select %p524, %s25, 0
      %s526 = smul.addr %s525, 4
      %s527 = smul.addr %s526, 4
      %s528 = scalar_lea.vmem %s7, %s527
      %p529 = scmp.lt.s32.totalorder %s25, 0
      %s530 = scalar_select %p529, %s25, 0
      %s531 = scalar_lea.vmem %s8, %s530
      %p532 = scmp.lt.s32.totalorder %s24, 1
      %s533 = scalar_select %p532, %s24, 1
      %p534 = scmp.lt.s32.totalorder %s25, 0
      %s535 = scalar_select %p534, %s25, 0
      %s536 = sadd.s32 %s535, %s533
      %s537 = smul.addr %s536, 4
      %s538 = scalar_lea.vmem %s9, %s537
      %v540 = vld [vmem:[%s486] sm:$0xf]
      %v541 = vunpack.c.l.bf16 %v540
      %v542 = vld [vmem:[%s523] sm:$0x1]
      %v544 = vperm.slane %v542, 0
      %v546 = vadd.f32 %v541, %v544
      %v547 = vpack.c.bf16 %v546, %v546
      %v548 = vld [vmem:[%s528] sm:$0xf]
      %v549 = vld [vmem:[%s528 + $0x4] sm:$0xf]
      %v550 = vld [vmem:[%s528 + $0x8] sm:$0xf]
      %v551 = vld [vmem:[%s528 + $0xc] sm:$0xf]
      %v552 = vld [vmem:[%s531] sm:$0x1]
      %v554 = vperm.slane %v552, 0
      %v560 = vunpack.c.l.b16 %v548
      %v561 = vunpack.c.l.b16 %v549
      %v562 = vunpack.c.l.b16 %v550
      %v563 = vunpack.c.l.b16 %v551
      %v564 = vpack.c.b16 %v561, %v560
      %v565 = vpack.c.b16 %v563, %v562
      %vm568 = vcmask 261120
      %v570 = vsel %vm568, %v540, 0
      %572 = vmatpush.bf16.msra.mxu0 0
      %573 = vmatpush.bf16.msra.mxu0 0
      %574 = vmatpush.bf16.msra.mxu0 0
      %575 = vmatpush.bf16.msra.mxu0 0
      %576 = vmatpush.bf16.msra.mxu0 0
      %577 = vmatpush.bf16.msra.mxu0 0
      %578 = vmatpush.bf16.msra.mxu0 %v565
      %579 = vmatpush.bf16.msra.mxu0 %v564
      %580 = vmatmul.bf16.gmra.mxu0 %v570
      %v581 = vpop.f32.mrf.mxu0
      %v582 = vadd.f32 %v554, %v581
      %v583 = vpop.f32.mrf.mxu0
      %584 = vdwg.mxu0
      %v585 = vld [vmem:[%s516] sm:$0xf]
      %v586 = vunpack.c.l.bf16 %v585
      %v587 = vld [vmem:[%s520] sm:$0xf]
      %v588 = vunpack.c.l.bf16 %v587
      %v589 = vld [vmem:[%s494] sm:$0xf]
      %v590 = vld [vmem:[%s494 + $0x4] sm:$0xf]
      %v591 = vld [vmem:[%s511] sm:$0xf]
      %v592 = vunpack.c.l.bf16 %v591
      %v595 = vunpack.c.l.b16 %v589
      %v596 = vunpack.c.l.b16 %v590
      %v597 = vpack.c.b16 %v596, %v595
      %vm598 = vcmask 64512
      %v600 = vsel %vm598, %v547, 0
      %v603 = vsel %vm598, %v597, 0
      %605 = vmatpush.bf16.xpose.msra.mxu0 0
      %606 = vmatpush.bf16.xpose.msra.mxu0 0
      %607 = vmatpush.bf16.xpose.msra.mxu0 0
      %608 = vmatpush.bf16.xpose.msra.mxu0 0
      %609 = vmatpush.bf16.xpose.msra.mxu0 0
      %610 = vmatpush.bf16.xpose.msra.mxu0 0
      %611 = vmatpush.bf16.xpose.msra.mxu0 0
      %612 = vmatpush.bf16.xpose.msra.mxu0 %v603
      %613 = vmatmul.bf16.gmra.mxu0 %v600
      %v614 = vpop.f32.mrf.mxu0
      %v615 = vadd.f32 %v592, %v614
      %v616 = vpop.f32.mrf.mxu0
      %617 = vdwg.mxu0
      %v618 = vadd.f32 %v615, %v586
      %620 = vset.pattern.permute.xlu0 1
      %621 = vperm.xlu0 %620, %v582
      %v622 = vpop.permute.xlu0 %621
      %v624 = vadd.f32 %v618, %v622
      %625 = vrot.lane.b32.xlu0 %v582, 127
      %v626 = vpop.permute.xlu0 %625
      %v628 = vsub.f32 %v582, %v626
      %630 = vset.pattern.permute.xlu0 0
      %631 = vperm.xlu0 %630, %v628
      %v632 = vpop.permute.xlu0 %631
      %v634 = vmul.f32 %v588, %v632
      %v635 = vadd.f32 %v624, %v634
      %vm636 = vcmask 130048
      %v637 = vsel %vm636, %v635, -inf
      %638 = vmax.xlane.f32.xlu0 %v637
      %v639 = vpop.xlane.xlu0 %638
      %v640 = vsub.f32 %v635, %v639
      %v641 = vmul.f32 %v640, 1.442695
      %v642 = vpow.pop %v641
      %v643 = vsel %vm636, %v642, 0.0
      %644 = vadd.xlane.f32.xlu0 %v643
      %v645 = vpop.xlane.xlu0 %644
      %v646 = vrcp.pop %v645
      %v647 = vmul.f32 %v642, %v646
      %v648 = vpack.c.bf16 %v647, %v647
      %v649 = vld [vmem:[%s502] sm:$0xf]
      %v650 = vld [vmem:[%s502 + $0x4] sm:$0xf]
      %v653 = vunpack.c.l.b16 %v649
      %v654 = vunpack.c.l.b16 %v650
      %v655 = vpack.c.b16 %v654, %v653
      %v658 = vsel %vm636, %v648, 0
      %660 = vmatpush.bf16.msra.mxu0 0
      %661 = vmatpush.bf16.msra.mxu0 0
      %662 = vmatpush.bf16.msra.mxu0 0
      %663 = vmatpush.bf16.msra.mxu0 0
      %664 = vmatpush.bf16.msra.mxu0 0
      %665 = vmatpush.bf16.msra.mxu0 0
      %666 = vmatpush.bf16.msra.mxu0 0
      %667 = vmatpush.bf16.msra.mxu0 %v655
      %668 = vmatmul.bf16.gmra.mxu0 %v658
      %v669 = vpop.f32.mrf.mxu0
      %v670 = vadd.f32 0.0, %v669
      %v671 = vpop.f32.mrf.mxu0
      %672 = vdwg.mxu0
      %v673 = vpack.c.bf16 %v670, %v670
      %s674 = scalar_lea.vmem %s511, 4
      %v675 = vld [vmem:[%s674] sm:$0xf]
      %v676 = vunpack.c.l.bf16 %v675
      %v678 = vunpack.c.l.b16 %v547
      %v679 = vpack.c.b16 %v678, %v678
      %680 = vrot.lane.b32.xlu0 %v679, 120
      %v681 = vpop.permute.xlu0 %680
      %682 = vrot.lane.b32.xlu0 %v597, 120
      %v683 = vpop.permute.xlu0 %682
      %v685 = vsel %vm598, %v681, 0
      %v688 = vsel %vm598, %v683, 0
      %690 = vmatpush.bf16.xpose.msra.mxu0 0
      %691 = vmatpush.bf16.xpose.msra.mxu0 0
      %692 = vmatpush.bf16.xpose.msra.mxu0 0
      %693 = vmatpush.bf16.xpose.msra.mxu0 0
      %694 = vmatpush.bf16.xpose.msra.mxu0 0
      %695 = vmatpush.bf16.xpose.msra.mxu0 0
      %696 = vmatpush.bf16.xpose.msra.mxu0 0
      %697 = vmatpush.bf16.xpose.msra.mxu0 %v688
      %698 = vmatmul.bf16.gmra.mxu0 %v685
      %v699 = vpop.f32.mrf.mxu0
      %v700 = vadd.f32 %v676, %v699
      %v701 = vpop.f32.mrf.mxu0
      %702 = vdwg.mxu0
      %v703 = vadd.f32 %v700, %v586
      %704 = vset.pattern.permute.xlu0 3
      %705 = vperm.xlu0 %704, %v582
      %v706 = vpop.permute.xlu0 %705
      %v708 = vadd.f32 %v703, %v706
      %709 = vset.pattern.permute.xlu0 2
      %710 = vperm.xlu0 %709, %v628
      %v711 = vpop.permute.xlu0 %710
      %v713 = vmul.f32 %v588, %v711
      %v714 = vadd.f32 %v708, %v713
      %v715 = vsel %vm636, %v714, -inf
      %716 = vmax.xlane.f32.xlu0 %v715
      %v717 = vpop.xlane.xlu0 %716
      %v718 = vsub.f32 %v714, %v717
      %v719 = vmul.f32 %v718, 1.442695
      %v720 = vpow.pop %v719
      %v721 = vsel %vm636, %v720, 0.0
      %722 = vadd.xlane.f32.xlu0 %v721
      %v723 = vpop.xlane.xlu0 %722
      %v724 = vrcp.pop %v723
      %v725 = vmul.f32 %v720, %v724
      %v726 = vpack.c.bf16 %v725, %v725
      %727 = vrot.lane.b32.xlu0 %v655, 120
      %v728 = vpop.permute.xlu0 %727
      %v731 = vsel %vm636, %v726, 0
      %733 = vmatpush.bf16.msra.mxu0 0
      %734 = vmatpush.bf16.msra.mxu0 0
      %735 = vmatpush.bf16.msra.mxu0 0
      %736 = vmatpush.bf16.msra.mxu0 0
      %737 = vmatpush.bf16.msra.mxu0 0
      %738 = vmatpush.bf16.msra.mxu0 0
      %739 = vmatpush.bf16.msra.mxu0 0
      %740 = vmatpush.bf16.msra.mxu0 %v728
      %741 = vmatmul.bf16.gmra.mxu0 %v731
      %v742 = vpop.f32.mrf.mxu0
      %v743 = vadd.f32 0.0, %v742
      %v744 = vpop.f32.mrf.mxu0
      %745 = vdwg.mxu0
      %v746 = vpack.c.bf16 %v743, %v743
      %s747 = scalar_lea.vmem %s511, 8
      %v748 = vld [vmem:[%s747] sm:$0xf]
      %v749 = vunpack.c.l.bf16 %v748
      %750 = vrot.lane.b32.xlu0 %v679, 112
      %v751 = vpop.permute.xlu0 %750
      %752 = vrot.lane.b32.xlu0 %v597, 112
      %v753 = vpop.permute.xlu0 %752
      %v755 = vsel %vm598, %v751, 0
      %v758 = vsel %vm598, %v753, 0
      %760 = vmatpush.bf16.xpose.msra.mxu0 0
      %761 = vmatpush.bf16.xpose.msra.mxu0 0
      %762 = vmatpush.bf16.xpose.msra.mxu0 0
      %763 = vmatpush.bf16.xpose.msra.mxu0 0
      %764 = vmatpush.bf16.xpose.msra.mxu0 0
      %765 = vmatpush.bf16.xpose.msra.mxu0 0
      %766 = vmatpush.bf16.xpose.msra.mxu0 0
      %767 = vmatpush.bf16.xpose.msra.mxu0 %v758
      %768 = vmatmul.bf16.gmra.mxu0 %v755
      %v769 = vpop.f32.mrf.mxu0
      %v770 = vadd.f32 %v749, %v769
      %v771 = vpop.f32.mrf.mxu0
      %772 = vdwg.mxu0
      %v773 = vadd.f32 %v770, %v586
      %774 = vset.pattern.permute.xlu0 5
      %775 = vperm.xlu0 %774, %v582
      %v776 = vpop.permute.xlu0 %775
      %v778 = vadd.f32 %v773, %v776
      %779 = vset.pattern.permute.xlu0 4
      %780 = vperm.xlu0 %779, %v628
      %v781 = vpop.permute.xlu0 %780
      %v783 = vmul.f32 %v588, %v781
      %v784 = vadd.f32 %v778, %v783
      %v785 = vsel %vm636, %v784, -inf
      %786 = vmax.xlane.f32.xlu0 %v785
      %v787 = vpop.xlane.xlu0 %786
      %v788 = vsub.f32 %v784, %v787
      %v789 = vmul.f32 %v788, 1.442695
      %v790 = vpow.pop %v789
      %v791 = vsel %vm636, %v790, 0.0
      %792 = vadd.xlane.f32.xlu0 %v791
      %v793 = vpop.xlane.xlu0 %792
      %v794 = vrcp.pop %v793
      %v795 = vmul.f32 %v790, %v794
      %v796 = vpack.c.bf16 %v795, %v795
      %797 = vrot.lane.b32.xlu0 %v655, 112
      %v798 = vpop.permute.xlu0 %797
      %v801 = vsel %vm636, %v796, 0
      %803 = vmatpush.bf16.msra.mxu0 0
      %804 = vmatpush.bf16.msra.mxu0 0
      %805 = vmatpush.bf16.msra.mxu0 0
      %806 = vmatpush.bf16.msra.mxu0 0
      %807 = vmatpush.bf16.msra.mxu0 0
      %808 = vmatpush.bf16.msra.mxu0 0
      %809 = vmatpush.bf16.msra.mxu0 0
      %810 = vmatpush.bf16.msra.mxu0 %v798
      %811 = vmatmul.bf16.gmra.mxu0 %v801
      %v812 = vpop.f32.mrf.mxu0
      %v813 = vadd.f32 0.0, %v812
      %v814 = vpop.f32.mrf.mxu0
      %815 = vdwg.mxu0
      %v816 = vpack.c.bf16 %v813, %v813
      %s817 = scalar_lea.vmem %s511, 12
      %v818 = vld [vmem:[%s817] sm:$0xf]
      %v819 = vunpack.c.l.bf16 %v818
      %820 = vrot.lane.b32.xlu0 %v679, 104
      %v821 = vpop.permute.xlu0 %820
      %822 = vrot.lane.b32.xlu0 %v597, 104
      %v823 = vpop.permute.xlu0 %822
      %v825 = vsel %vm598, %v821, 0
      %v828 = vsel %vm598, %v823, 0
      %830 = vmatpush.bf16.xpose.msra.mxu0 0
      %831 = vmatpush.bf16.xpose.msra.mxu0 0
      %832 = vmatpush.bf16.xpose.msra.mxu0 0
      %833 = vmatpush.bf16.xpose.msra.mxu0 0
      %834 = vmatpush.bf16.xpose.msra.mxu0 0
      %835 = vmatpush.bf16.xpose.msra.mxu0 0
      %836 = vmatpush.bf16.xpose.msra.mxu0 0
      %837 = vmatpush.bf16.xpose.msra.mxu0 %v828
      %838 = vmatmul.bf16.gmra.mxu0 %v825
      %v839 = vpop.f32.mrf.mxu0
      %v840 = vadd.f32 %v819, %v839
      %v841 = vpop.f32.mrf.mxu0
      %842 = vdwg.mxu0
      %v843 = vadd.f32 %v840, %v586
      %844 = vset.pattern.permute.xlu0 7
      %845 = vperm.xlu0 %844, %v582
      %v846 = vpop.permute.xlu0 %845
      %v848 = vadd.f32 %v843, %v846
      %849 = vset.pattern.permute.xlu0 6
      %850 = vperm.xlu0 %849, %v628
      %v851 = vpop.permute.xlu0 %850
      %v853 = vmul.f32 %v588, %v851
      %v854 = vadd.f32 %v848, %v853
      %v855 = vsel %vm636, %v854, -inf
      %856 = vmax.xlane.f32.xlu0 %v855
      %v857 = vpop.xlane.xlu0 %856
      %v858 = vsub.f32 %v854, %v857
      %v859 = vmul.f32 %v858, 1.442695
      %v860 = vpow.pop %v859
      %v861 = vsel %vm636, %v860, 0.0
      %862 = vadd.xlane.f32.xlu0 %v861
      %v863 = vpop.xlane.xlu0 %862
      %v864 = vrcp.pop %v863
      %v865 = vmul.f32 %v860, %v864
      %v866 = vpack.c.bf16 %v865, %v865
      %867 = vrot.lane.b32.xlu0 %v655, 104
      %v868 = vpop.permute.xlu0 %867
      %v871 = vsel %vm636, %v866, 0
      %873 = vmatpush.bf16.msra.mxu0 0
      %874 = vmatpush.bf16.msra.mxu0 0
      %875 = vmatpush.bf16.msra.mxu0 0
      %876 = vmatpush.bf16.msra.mxu0 0
      %877 = vmatpush.bf16.msra.mxu0 0
      %878 = vmatpush.bf16.msra.mxu0 0
      %879 = vmatpush.bf16.msra.mxu0 0
      %880 = vmatpush.bf16.msra.mxu0 %v868
      %881 = vmatmul.bf16.gmra.mxu0 %v871
      %v882 = vpop.f32.mrf.mxu0
      %v883 = vadd.f32 0.0, %v882
      %v884 = vpop.f32.mrf.mxu0
      %885 = vdwg.mxu0
      %v886 = vpack.c.bf16 %v883, %v883
      %v888 = vunpack.c.l.b16 %v746
      %v889 = vpack.c.b16 %v888, %v888
      %890 = vrot.lane.b32.xlu0 %v889, 8
      %v891 = vpop.permute.xlu0 %890
      %v893 = vunpack.c.l.b16 %v816
      %v894 = vpack.c.b16 %v893, %v893
      %895 = vrot.lane.b32.xlu0 %v894, 16
      %v896 = vpop.permute.xlu0 %895
      %v898 = vunpack.c.l.b16 %v886
      %v899 = vpack.c.b16 %v898, %v898
      %900 = vrot.lane.b32.xlu0 %v899, 24
      %v901 = vpop.permute.xlu0 %900
      %v904 = vsel %vm598, %v673, %v891
      %v906 = vsel %vm636, %v904, %v896
      %vm907 = vcmask 195584
      %v909 = vsel %vm907, %v906, %v901
      %vm911 = vcmask 257024
      %912 = vst.msk [vmem:[%s538] sm:$0xf] %vm911, %v909
      %p913 = scmp.lt.s32.totalorder %s24, 1
      %s914 = scalar_select %p913, %s24, 1
      %p915 = scmp.lt.s32.totalorder %s25, 0
      %s916 = scalar_select %p915, %s25, 0
      %s917 = sadd.s32 %s916, %s914
      %s918 = smul.addr %s917, 4
      %s919 = scalar_lea.vmem %s9, %s918
      // Predicated region
      $region57: #{transformer_xl_layer.16} parent=55 // pred_check
        %p920 = pneg %p294
      $region58: #{transformer_xl_layer.16} parent=55 // pred_check_branch
        %922 = sbr.rel (%p920) target = $region60
      $region59: #{transformer_xl_layer.16} parent=55 // pred_region
        _
      $region60: #{transformer_xl_layer.16} parent=55 // pred_fallthru
        _
    $region56: #{transformer_xl_layer.16} parent=5 // pred_fallthru
      _
    %p923 = scmp.le.s32.totalorder 2, %s15
    // Predicated region
    $region61: #{transformer_xl_layer.16} parent=5 // pred_check
      %p924 = pneg %p923
    $region62: #{transformer_xl_layer.16} parent=5 // pred_check_branch
      %926 = sbr.rel (%p924) target = $region64
    $region63: #{transformer_xl_layer.16} parent=5 // pred_region
      %s927 = ssub.s32 %s15, 2
      // Predicated region
      $region65: #{transformer_xl_layer.16} parent=63 // pred_check
        %p928 = pneg %p300
      $region66: #{transformer_xl_layer.16} parent=63 // pred_check_branch
        %930 = sbr.rel (%p928) target = $region68
      $region67: #{transformer_xl_layer.16} parent=63 // pred_region
        %p931 = scmp.lt.s32.totalorder %s26, 1
        %s932 = scalar_select %p931, %s26, 1
        %p933 = scmp.lt.s32.totalorder %s27, 0
        %s934 = scalar_select %p933, %s27, 0
        %s935 = sadd.s32 %s934, %s932
        %s936 = smul.addr %s935, 4
        %s937 = scalar_lea.vmem %s9, %s936
      $region68: #{transformer_xl_layer.16} parent=63 // pred_fallthru
        _
    $region64: #{transformer_xl_layer.16} parent=5 // pred_fallthru
      _
  $region6: #{transformer_xl_layer.16} parent=0 // loop_footer
    %s19 = sadd.s32 1, %s15
  $region7: #{transformer_xl_layer.16} parent=0 // loop_footer_branch
    %14 = sbr.rel target = $region3
  $region8: #{transformer_xl_layer.16} parent=0 // loop_exit
    _

// kernel: transformer_xl_layer.19
$region0: #{transformer_xl_layer.19}
  #allocation0 [shape = 'u32[]', space=smem, size = 0x4, offset = 0x4, fixed_abs, tag = 'smem constant byte address 0x4 - core index']
  #allocation1 [shape = 'u32[72,128]{1,0:T(1,128)}', space=vmem, size = 0x9000, scoped, tag = 'internal scratch']
  #allocation2 [shape = 'f32[24,32]{1,0:T(8,128)}', space=vmem, size = 0x3000, scoped, tag = 'scratch operand']
  %s0 = inlined_call_operand.vmem [shape: bf16[24,64], index: 0, kind: input, shape index: {}]
  %s1 = inlined_call_operand.vmem [shape: bf16[64,32], index: 1, kind: input, shape index: {}]
  %s2 = inlined_call_operand.vmem [shape: f32[1,32], index: 2, kind: input, shape index: {}]
  %s3 = inlined_call_operand.vmem [shape: bf16[24,32], index: 3, kind: input, shape index: {}]
  %s4 = inlined_call_operand.vmem [shape: f32[1,32], index: 4, kind: input, shape index: {}]
  %s5 = inlined_call_operand.vmem [shape: f32[1,32], index: 5, kind: input, shape index: {}]
  %s6 = inlined_call_operand.vmem [shape: f32[24,32], index: 6, kind: output, shape index: {}]
  %s7 = sld [smem:[#allocation0]]
  $region42: #{transformer_xl_layer.19} parent=0
    _
  %s9 = ssub.s32 1, %s7
  %s10 = scalar_select 0, %s9, %s7
  // Predicated region
  $region2: #{transformer_xl_layer.19} parent=0 // pred_check
    _
  $region3: #{transformer_xl_layer.19} parent=0 // pred_check_branch
    %12 = sbr.rel (0) target = $region5
  $region4: #{transformer_xl_layer.19} parent=0 // pred_region
    _
  $region5: #{transformer_xl_layer.19} parent=0 // pred_fallthru
    _
  // Predicated region
  $region6: #{transformer_xl_layer.19} parent=0 // pred_check
    _
  $region7: #{transformer_xl_layer.19} parent=0 // pred_check_branch
    %14 = sbr.rel (0) target = $region9
  $region8: #{transformer_xl_layer.19} parent=0 // pred_region
    _
  $region9: #{transformer_xl_layer.19} parent=0 // pred_fallthru
    _
  // Predicated region
  $region10: #{transformer_xl_layer.19} parent=0 // pred_check
    _
  $region11: #{transformer_xl_layer.19} parent=0 // pred_check_branch
    %16 = sbr.rel (0) target = $region13
  $region12: #{transformer_xl_layer.19} parent=0 // pred_region
    _
  $region13: #{transformer_xl_layer.19} parent=0 // pred_fallthru
    _
  // Predicated region
  $region14: #{transformer_xl_layer.19} parent=0 // pred_check
    _
  $region15: #{transformer_xl_layer.19} parent=0 // pred_check_branch
    %18 = sbr.rel (0) target = $region17
  $region16: #{transformer_xl_layer.19} parent=0 // pred_region
    _
  $region17: #{transformer_xl_layer.19} parent=0 // pred_fallthru
    _
  // Predicated region
  $region18: #{transformer_xl_layer.19} parent=0 // pred_check
    _
  $region19: #{transformer_xl_layer.19} parent=0 // pred_check_branch
    %20 = sbr.rel (0) target = $region21
  $region20: #{transformer_xl_layer.19} parent=0 // pred_region
    _
  $region21: #{transformer_xl_layer.19} parent=0 // pred_fallthru
    _
  // Predicated region
  $region22: #{transformer_xl_layer.19} parent=0 // pred_check
    _
  $region23: #{transformer_xl_layer.19} parent=0 // pred_check_branch
    %22 = sbr.rel (0) target = $region25
  $region24: #{transformer_xl_layer.19} parent=0 // pred_region
    _
  $region25: #{transformer_xl_layer.19} parent=0 // pred_fallthru
    _
  %p24 = scmp.eq.s32.totalorder 0, 0
  // Predicated region
  $region26: #{transformer_xl_layer.19} parent=0 // pred_check
    %p25 = pneg %p24
  $region27: #{transformer_xl_layer.19} parent=0 // pred_check_branch
    %27 = sbr.rel (%p25) target = $region29
  $region28: #{transformer_xl_layer.19} parent=0 // pred_region
    %vm28 = vcmask 261120
    %29 = vst.msk [vmem:[#allocation2] sm:$0xff] %vm28, 0.0
    %30 = vst.msk [vmem:[#allocation2 + $0x8] sm:$0xff] %vm28, 0.0
    %31 = vst.msk [vmem:[#allocation2 + $0x10] sm:$0xff] %vm28, 0.0
  $region29: #{transformer_xl_layer.19} parent=0 // pred_fallthru
    _
  %v32 = vld [vmem:[#allocation2] sm:$0xff]
  %v33 = vld [vmem:[#allocation2 + $0x8] sm:$0xff]
  %v34 = vld [vmem:[#allocation2 + $0x10] sm:$0xff]
  %v35 = vld [vmem:[%s0] sm:$0xf]
  %v36 = vld [vmem:[%s0 + $0x4] sm:$0xf]
  %v37 = vld [vmem:[%s0 + $0x8] sm:$0xf]
  %v38 = vld [vmem:[%s1] sm:$0xf]
  %v39 = vld [vmem:[%s1 + $0x4] sm:$0xf]
  %v40 = vld [vmem:[%s1 + $0x8] sm:$0xf]
  %v41 = vld [vmem:[%s1 + $0xc] sm:$0xf]
  %v42 = vld [vmem:[%s1 + $0x10] sm:$0xf]
  %v43 = vld [vmem:[%s1 + $0x14] sm:$0xf]
  %v44 = vld [vmem:[%s1 + $0x18] sm:$0xf]
  %v45 = vld [vmem:[%s1 + $0x1c] sm:$0xf]
  %v49 = vunpack.c.l.b16 %v35
  %v50 = vunpack.c.l.b16 %v36
  %v51 = vunpack.c.l.b16 %v37
  %v52 = vpack.c.b16 %v50, %v49
  %v53 = vpack.c.b16 %v51, %v51
  %v62 = vunpack.c.l.b16 %v38
  %v63 = vunpack.c.l.b16 %v39
  %v64 = vunpack.c.l.b16 %v40
  %v65 = vunpack.c.l.b16 %v41
  %v66 = vunpack.c.l.b16 %v42
  %v67 = vunpack.c.l.b16 %v43
  %v68 = vunpack.c.l.b16 %v44
  %v69 = vunpack.c.l.b16 %v45
  %v70 = vpack.c.b16 %v63, %v62
  %v71 = vpack.c.b16 %v65, %v64
  %v72 = vpack.c.b16 %v67, %v66
  %v73 = vpack.c.b16 %v69, %v68
  %vm78 = vcmask 523264
  %v80 = vsel %vm78, %v52, 0
  %v83 = vsel %vm78, %v53, 0
  %85 = vmatpush.bf16.msra.mxu0 0
  %86 = vmatpush.bf16.msra.mxu0 0
  %87 = vmatpush.bf16.msra.mxu0 0
  %88 = vmatpush.bf16.msra.mxu0 0
  %89 = vmatpush.bf16.msra.mxu0 %v73
  %90 = vmatpush.bf16.msra.mxu0 %v72
  %91 = vmatpush.bf16.msra.mxu0 %v71
  %92 = vmatpush.bf16.msra.mxu0 %v70
  %93 = vmatmul.bf16.gmra.mxu0 %v80
  %v94 = vpop.f32.mrf.mxu0
  %v95 = vadd.f32 0.0, %v94
  %v96 = vpop.f32.mrf.mxu0
  %v97 = vadd.f32 0.0, %v96
  %98 = vmatmul.bf16.gmra.mxu0 %v83
  %v99 = vpop.f32.mrf.mxu0
  %v100 = vadd.f32 0.0, %v99
  %v101 = vpop.f32.mrf.mxu0
  %102 = vdwg.mxu0
  %v103 = vadd.f32 %v32, %v95
  %v104 = vadd.f32 %v33, %v97
  %v105 = vadd.f32 %v34, %v100
  %vm106 = vcmask 261120
  %107 = vst.msk [vmem:[#allocation2] sm:$0xff] %vm106, %v103
  %108 = vst.msk [vmem:[#allocation2 + $0x8] sm:$0xff] %vm106, %v104
  %109 = vst.msk [vmem:[#allocation2 + $0x10] sm:$0xff] %vm106, %v105
  // Predicated region
  $region30: #{transformer_xl_layer.19} parent=0 // pred_check
    %p110 = pneg %p24
  $region31: #{transformer_xl_layer.19} parent=0 // pred_check_branch
    %112 = sbr.rel (%p110) target = $region33
  $region32: #{transformer_xl_layer.19} parent=0 // pred_region
    %v113 = vld [vmem:[#allocation2] sm:$0xff]
    %v114 = vld [vmem:[#allocation2 + $0x8] sm:$0xff]
    %v115 = vld [vmem:[#allocation2 + $0x10] sm:$0xff]
    %v116 = vld [vmem:[%s3] sm:$0xf]
    %v117 = vld [vmem:[%s3 + $0x4] sm:$0xf]
    %v118 = vld [vmem:[%s3 + $0x8] sm:$0xf]
    %v119 = vunpack.c.l.bf16 %v116
    %v120 = vunpack.c.l.bf16 %v117
    %v121 = vunpack.c.l.bf16 %v118
    %v122 = vadd.f32 %v113, %v119
    %v123 = vadd.f32 %v114, %v120
    %v124 = vadd.f32 %v115, %v121
    %v125 = vld [vmem:[%s2] sm:$0x1]
    %v127 = vperm.slane %v125, 0
    %v129 = vadd.f32 %v122, %v127
    %v130 = vadd.f32 %v123, %v127
    %v131 = vadd.f32 %v124, %v127
    %v132 = vsel %vm106, %v129, 0.0
    %133 = vadd.xlane.f32.xlu0 %v132
    %v134 = vpop.xlane.xlu0 %133
    %v135 = vsel %vm106, %v130, 0.0
    %136 = vadd.xlane.f32.xlu0 %v135
    %v137 = vpop.xlane.xlu0 %136
    %v138 = vsel %vm106, %v131, 0.0
    %139 = vadd.xlane.f32.xlu0 %v138
    %v140 = vpop.xlane.xlu0 %139
    %v141 = vrcp.pop 32.0
    %v142 = vmul.f32 32.0, %v141
    %v143 = vsub.f32 1.0, %v142
    %v144 = vmul.f32 %v141, %v143
    %v145 = vadd.f32 %v141, %v144
    %vm146 = vweird.f32 %v141
    %v147 = vsel %vm146, %v141, %v145
    %v148 = vmul.f32 %v134, %v147
    %v149 = vmul.f32 %v137, %v147
    %v150 = vmul.f32 %v140, %v147
    %v151 = vsub.f32 %v129, %v148
    %v152 = vsub.f32 %v130, %v149
    %v153 = vsub.f32 %v131, %v150
    %v154 = vmul.f32 %v151, %v151
    %v155 = vmul.f32 %v152, %v152
    %v156 = vmul.f32 %v153, %v153
    %v157 = vsel %vm106, %v154, 0.0
    %158 = vadd.xlane.f32.xlu0 %v157
    %v159 = vpop.xlane.xlu0 %158
    %v160 = vsel %vm106, %v155, 0.0
    %161 = vadd.xlane.f32.xlu0 %v160
    %v162 = vpop.xlane.xlu0 %161
    %v163 = vsel %vm106, %v156, 0.0
    %164 = vadd.xlane.f32.xlu0 %v163
    %v165 = vpop.xlane.xlu0 %164
    %v166 = vmul.f32 %v159, %v147
    %v167 = vmul.f32 %v162, %v147
    %v168 = vmul.f32 %v165, %v147
    %v169 = vadd.f32 %v166, 1e-12
    %v170 = vadd.f32 %v167, 1e-12
    %v171 = vadd.f32 %v168, 1e-12
    %v172 = vrsqrt.pop %v169
    %v173 = vmul.f32 %v172, %v169
    %v174 = vmul.f32 %v173, %v172
    %v175 = vmul.f32 0.5, %v174
    %v176 = vsub.f32 1.5, %v175
    %v177 = vmul.f32 %v172, %v176
    %vm178 = vweird.f32 %v169
    %vm179 = vweird.f32 %v172
    %vm180 = vmor %vm178, %vm179
    %v181 = vsel %vm180, %v172, %v177
    %v182 = vrsqrt.pop %v170
    %v183 = vmul.f32 %v182, %v170
    %v184 = vmul.f32 %v183, %v182
    %v185 = vmul.f32 0.5, %v184
    %v186 = vsub.f32 1.5, %v185
    %v187 = vmul.f32 %v182, %v186
    %vm188 = vweird.f32 %v170
    %vm189 = vweird.f32 %v182
    %vm190 = vmor %vm188, %vm189
    %v191 = vsel %vm190, %v182, %v187
    %v192 = vrsqrt.pop %v171
    %v193 = vmul.f32 %v192, %v171
    %v194 = vmul.f32 %v193, %v192
    %v195 = vmul.f32 0.5, %v194
    %v196 = vsub.f32 1.5, %v195
    %v197 = vmul.f32 %v192, %v196
    %vm198 = vweird.f32 %v171
    %vm199 = vweird.f32 %v192
    %vm200 = vmor %vm198, %vm199
    %v201 = vsel %vm200, %v192, %v197
    %v202 = vmul.f32 %v151, %v181
    %v203 = vmul.f32 %v152, %v191
    %v204 = vmul.f32 %v153, %v201
    %v205 = vld [vmem:[%s4] sm:$0x1]
    %v207 = vperm.slane %v205, 0
    %v209 = vmul.f32 %v202, %v207
    %v210 = vmul.f32 %v203, %v207
    %v211 = vmul.f32 %v204, %v207
    %v212 = vld [vmem:[%s5] sm:$0x1]
    %v214 = vperm.slane %v212, 0
    %v216 = vadd.f32 %v209, %v214
    %v217 = vadd.f32 %v210, %v214
    %v218 = vadd.f32 %v211, %v214
    %219 = vst.msk [vmem:[%s6] sm:$0xff] %vm106, %v216
    %220 = vst.msk [vmem:[%s6 + $0x8] sm:$0xff] %vm106, %v217
    %221 = vst.msk [vmem:[%s6 + $0x10] sm:$0xff] %vm106, %v218
  $region33: #{transformer_xl_layer.19} parent=0 // pred_fallthru
    _
  // Predicated region
  $region34: #{transformer_xl_layer.19} parent=0 // pred_check
    _
  $region35: #{transformer_xl_layer.19} parent=0 // pred_check_branch
    %223 = sbr.rel (0) target = $region37
  $region36: #{transformer_xl_layer.19} parent=0 // pred_region
    _
  $region37: #{transformer_xl_layer.19} parent=0 // pred_fallthru
    _
  // Predicated region
  $region38: #{transformer_xl_layer.19} parent=0 // pred_check
    _
  $region39: #{transformer_xl_layer.19} parent=0 // pred_check_branch
    %225 = sbr.rel (0) target = $region41
  $region40: #{transformer_xl_layer.19} parent=0 // pred_region
    _
  $region41: #{transformer_xl_layer.19} parent=0 // pred_fallthru
    _

</llo_original>
